<compile_context>
chip_gen: v5e
topology: v5e:2x2
jax: 0.10.0
libtpu: 0.0.40
codegen_flags: <defaults>
</compile_context>

<pallas_src>
import math
import functools

import jax
import jax.numpy as jnp
from jax.experimental import pallas as pl
from jax.experimental.pallas import tpu as pltpu

_LN_EPS = 1e-5       # PyTorch nn.LayerNorm default
_NEG_BIG = -1e30     # finite additive mask value (avoids -inf NaN hazards)

# rows of the packed per-layer vector slab (each row is C lanes wide)
_ROW_BQ, _ROW_BK, _ROW_BV, _ROW_BO, _ROW_B2 = 0, 1, 2, 3, 4
_ROW_LN1G, _ROW_LN1B, _ROW_LN2G, _ROW_LN2B = 5, 6, 7, 8
_N_VEC_ROWS = 9


# ----------------------------- shared helpers -----------------------------

def _layernorm(x, g, b):
    mu = jnp.mean(x, axis=-1, keepdims=True)
    var = jnp.mean(jnp.square(x - mu), axis=-1, keepdims=True)
    return (x - mu) * jax.lax.rsqrt(var + _LN_EPS) * g + b


def _gelu_tanh(x):
    # TODO(synk): PyTorch nn.GELU() default is exact erf; tanh approximation used so the
    # transcendental lands on the EUP (max abs deviation ~3e-3).
    c = math.sqrt(2.0 / math.pi)
    return 0.5 * x * (1.0 + jnp.tanh(c * (x + 0.044715 * x * x * x)))


# ------------------------- fused transformer stack -------------------------

def _stack_kernel(x_ref, bias_ref, wqkv_ref, wo_ref, w1_ref, w2_ref, b1_ref, vecs_ref,
                  out_ref, *, n_layers, n_heads):
    """All transformer Blocks fused in one kernel invocation (weights VMEM-resident).

    x_ref:    (M, C)     f32  activations, M = B * S
    bias_ref: (M, M)     f32  additive block-diagonal + causal mask
    wqkv_ref: (L, C, 3C) bf16 fused Q|K|V weights
    wo_ref:   (L, C, C)  bf16 attention output projection
    w1_ref:   (L, C, 4C) bf16 / w2_ref: (L, 4C, C) bf16  MLP weights
    b1_ref:   (L, 1, 4C) f32  MLP hidden bias
    vecs_ref: (L, 9, C)  f32  packed [bq, bk, bv, bo, b2, ln1g, ln1b, ln2g, ln2b]
    """
    bf16 = jnp.bfloat16
    x = x_ref[...]                          # (M, C) f32
    M, C = x.shape
    H = n_heads
    D = C // H
    scale = 1.0 / math.sqrt(float(D))
    bias = bias_ref[...]                    # (M, M) f32, resident

    # Static unroll over layers (L is small); all weights are already VMEM-resident.
    # TODO(synk): for large L / C where the weight stack exceeds VMEM, switch back to a
    # grid=(L,) streaming pipeline with per-layer BlockSpecs (and M-tiling for megacore).
    for l in range(n_layers):
        vecs = vecs_ref[l]                  # (9, C) f32 — one load per layer
        x_b = x.astype(bf16)

        # ---- fused QKV projection: one (M, C) @ (C, 3C) MXU dot ----
        qkv = jnp.dot(x_b, wqkv_ref[l], preferred_element_type=jnp.float32)  # (M, 3C)
        q = qkv[:, 0 * C:1 * C] + vecs[_ROW_BQ:_ROW_BQ + 1]
        k = qkv[:, 1 * C:2 * C] + vecs[_ROW_BK:_ROW_BK + 1]
        v = qkv[:, 2 * C:3 * C] + vecs[_ROW_BV:_ROW_BV + 1]

        # ---- per-head attention; batch folded into the (M, M) block-diagonal bias ----
        heads = []
        for h in range(H):                  # static unroll over heads
            sl = slice(h * D, (h + 1) * D)
            qh = q[:, sl].astype(bf16)      # (M, D)
            kh = k[:, sl].astype(bf16)
            vh = v[:, sl].astype(bf16)
            s = jax.lax.dot_general(qh, kh, (((1,), (1,)), ((), ())),
                                    preferred_element_type=jnp.float32)      # (M, M)
            s = s * scale + bias
            m = jnp.max(s, axis=-1, keepdims=True)
            e = jnp.exp(s - m)
            p = e * pl.reciprocal(jnp.sum(e, axis=-1, keepdims=True), approx=True)
            oh = jnp.dot(p.astype(bf16), vh, preferred_element_type=jnp.float32)
            heads.append(oh.astype(bf16))   # (M, D)
        attn_cat = jnp.concatenate(heads, axis=-1)                            # (M, C) bf16

        # ---- fused output projection: one (M, C) @ (C, C) dot ----
        attn = jnp.dot(attn_cat, wo_ref[l], preferred_element_type=jnp.float32)
        attn = attn + vecs[_ROW_BO:_ROW_BO + 1]

        # ---- residual 1 + LN1 ----
        y = _layernorm(x + attn,
                       vecs[_ROW_LN1G:_ROW_LN1G + 1], vecs[_ROW_LN1B:_ROW_LN1B + 1])

        # ---- MLP C -> 4C -> C (GELU on EUP) ----
        h1 = jnp.dot(y.astype(bf16), w1_ref[l], preferred_element_type=jnp.float32)
        h1 = _gelu_tanh(h1 + b1_ref[l])
        h2 = jnp.dot(h1.astype(bf16), w2_ref[l], preferred_element_type=jnp.float32)
        h2 = h2 + vecs[_ROW_B2:_ROW_B2 + 1]

        # ---- residual 2 + LN2 ----
        x = _layernorm(y + h2,
                       vecs[_ROW_LN2G:_ROW_LN2G + 1], vecs[_ROW_LN2B:_ROW_LN2B + 1])

    out_ref[...] = x                        # single HBM writeback


def transformer_stack(x2d, bias_mm, stack, *, n_heads):
    """Run all transformer blocks in a single Pallas call with resident weights.

    x2d:     (M, C) f32 activations, M = batch * seq_len.
    bias_mm: (M, M) f32 additive block-diagonal + causal mask.
    stack:   dict of weight slabs stacked along a leading layer axis.
    """
    M, C = x2d.shape
    L = stack['wqkv'].shape[0]

    def full_spec(shape):
        nd = len(shape)
        return pl.BlockSpec(tuple(shape), lambda i, _nd=nd: (0,) * _nd)

    args = (x2d, bias_mm, stack['wqkv'], stack['wo'], stack['w1'], stack['w2'],
            stack['b1'], stack['vecs'])
    kernel = functools.partial(_stack_kernel, n_layers=L, n_heads=n_heads)

    return pl.pallas_call(
        kernel,
        out_shape=jax.ShapeDtypeStruct((M, C), jnp.float32),
        grid=(1,),
        in_specs=[full_spec(a.shape) for a in args],
        out_specs=full_spec((M, C)),
        compiler_params=pltpu.CompilerParams(
            dimension_semantics=("arbitrary",),
            vmem_limit_bytes=32 * 1024 * 1024,
        ),
    )(*args)


# --------------------------- parameters (synthetic) ---------------------------

def init_params(key, *, state_dim, act_dim, n_blocks, h_dim, n_heads, max_timestep):
    C = h_dim * n_heads
    keys = iter(jax.random.split(key, 1024))

    def lin(din, dout):
        w = 0.02 * jax.random.normal(next(keys), (din, dout), jnp.float32)
        b = 0.01 * jax.random.normal(next(keys), (1, dout), jnp.float32)
        return w, b

    p = {
        'embed_timestep': 0.02 * jax.random.normal(next(keys), (max_timestep, h_dim), jnp.float32),
        'embed_rtg': lin(1, h_dim),
        'embed_state': lin(state_dim, h_dim),
        'embed_action': lin(act_dim, h_dim),
        'embed_ln_g': jnp.ones((h_dim,), jnp.float32),
        'embed_ln_b': jnp.zeros((h_dim,), jnp.float32),
        'merge_heads': lin(C, h_dim),
        'predict_rtg': lin(h_dim, 1),
        'predict_state': lin(h_dim, state_dim),
        'predict_action': lin(h_dim, act_dim),
    }

    wqkv_l, wo_l, w1_l, w2_l, b1_l, vecs_l = [], [], [], [], [], []
    for _ in range(n_blocks):
        wq, bq = lin(C, C)
        wk, bk = lin(C, C)
        wv, bv = lin(C, C)
        wo, bo = lin(C, C)
        w1, b1 = lin(C, 4 * C)
        w2, b2 = lin(4 * C, C)
        wqkv_l.append(jnp.concatenate([wq, wk, wv], axis=1))          # (C, 3C)
        wo_l.append(wo)
        w1_l.append(w1)
        w2_l.append(w2)
        b1_l.append(b1)                                               # (1, 4C)
        vecs_l.append(jnp.stack([bq[0], bk[0], bv[0], bo[0], b2[0],
                                 jnp.ones((C,), jnp.float32), jnp.zeros((C,), jnp.float32),
                                 jnp.ones((C,), jnp.float32), jnp.zeros((C,), jnp.float32)]))

    p['stack'] = {
        'wqkv': jnp.stack(wqkv_l).astype(jnp.bfloat16),   # (L, C, 3C)
        'wo':   jnp.stack(wo_l).astype(jnp.bfloat16),     # (L, C, C)
        'w1':   jnp.stack(w1_l).astype(jnp.bfloat16),     # (L, C, 4C)
        'w2':   jnp.stack(w2_l).astype(jnp.bfloat16),     # (L, 4C, C)
        'b1':   jnp.stack(b1_l),                          # (L, 1, 4C) f32
        'vecs': jnp.stack(vecs_l),                        # (L, 9, C)  f32
    }
    return p


# --------------------------------- forward ------------------------------------

def forward(params, timesteps, states, actions, returns_to_go, *, h_dim, n_heads):
    B, T, _ = states.shape
    C = h_dim * n_heads
    S = 3 * T
    M = B * S

    # --- embeddings (glue, plain JAX / XLA) ---
    te = params['embed_timestep'][timesteps]                                   # (B, T, h)
    s_emb = states @ params['embed_state'][0] + params['embed_state'][1] + te
    a_emb = actions @ params['embed_action'][0] + params['embed_action'][1] + te
    r_emb = returns_to_go @ params['embed_rtg'][0] + params['embed_rtg'][1] + te

    # interleave per-timestep (rtg, state, action) tokens -> (B, 3T, h)
    h = jnp.stack((r_emb, s_emb, a_emb), axis=1)                               # (B, 3, T, h)
    h = jnp.transpose(h, (0, 2, 1, 3)).reshape(B, S, h_dim)
    h = _layernorm(h, params['embed_ln_g'], params['embed_ln_b'])
    # Matches the reference `h.repeat((1, 1, n_heads))`: features replicated across heads.
    h = jnp.tile(h, (1, 1, n_heads))                                           # (B, 3T, C)

    # --- block-diagonal (per sequence) causal additive bias over the flattened M rows ---
    row = jnp.arange(M)
    same_batch = (row[:, None] // S) == (row[None, :] // S)
    causal = row[None, :] <= row[:, None]
    bias_mm = jnp.where(same_batch & causal, 0.0, _NEG_BIG).astype(jnp.float32)

    # --- fused transformer stack (single Pallas call, hot path) ---
    x2d = h.reshape(M, C).astype(jnp.float32)
    x2d = transformer_stack(x2d, bias_mm, params['stack'], n_heads=n_heads)
    h = x2d.reshape(B, S, C)

    # --- tiny heads in plain XLA (lane-sparse outputs) ---
    h = h @ params['merge_heads'][0] + params['merge_heads'][1]                # (B, 3T, h)
    h = h.reshape(B, T, 3, h_dim).transpose(0, 2, 1, 3)                        # (B, 3, T, h)

    return_preds = h[:, 2] @ params['predict_rtg'][0] + params['predict_rtg'][1]
    state_preds = h[:, 2] @ params['predict_state'][0] + params['predict_state'][1]
    action_preds = h[:, 1] @ params['predict_action'][0] + params['predict_action'][1]
    # TODO(synk): optional `target_token` prepend path of the reference is not implemented.
    return state_preds, action_preds, return_preds


# ----------------------------------- main --------------------------------------

if __name__ == "__main__":
    # Small config consistent with the module; channel dim C = h_dim * n_heads = 128 is
    # lane-dense and M = B * 3T = 48 rows is sublane-aligned.
    B, T = 2, 8                     # batch, context_len -> sequence S = 3*T = 24
    state_dim, act_dim = 8, 4
    h_dim, n_heads, n_blocks = 32, 4, 2
    max_timestep = 64

    key = jax.random.PRNGKey(0)
    kp, kt, ks, ka, kr = jax.random.split(key, 5)

    params = init_params(kp, state_dim=state_dim, act_dim=act_dim,
                         n_blocks=n_blocks, h_dim=h_dim, n_heads=n_heads,
                         max_timestep=max_timestep)

    timesteps = jax.random.randint(kt, (B, T), 0, max_timestep, dtype=jnp.int32)
    states = jax.random.normal(ks, (B, T, state_dim), jnp.float32)
    actions = jax.random.normal(ka, (B, T, act_dim), jnp.float32)
    returns_to_go = jax.random.normal(kr, (B, T, 1), jnp.float32)

    fwd = jax.jit(functools.partial(forward, h_dim=h_dim, n_heads=n_heads))
    state_preds, action_preds, return_preds = fwd(params, timesteps, states,
                                                  actions, returns_to_go)
    jax.block_until_ready((state_preds, action_preds, return_preds))

    assert state_preds.shape == (B, T, state_dim)
    assert action_preds.shape == (B, T, act_dim)
    assert return_preds.shape == (B, T, 1)
    assert jnp.all(jnp.isfinite(state_preds))
    assert jnp.all(jnp.isfinite(action_preds))
    assert jnp.all(jnp.isfinite(return_preds))

    print("KERNEL_OK")
</pallas_src>

<mosaic_0001>
module attributes {stable_mosaic.version = 11 : i64} {
  func.func @_stack_kernel(%arg0: i32, %arg1: memref<48x128xf32, #tpu.memory_space<vmem>>, %arg2: memref<48x48xf32, #tpu.memory_space<vmem>>, %arg3: memref<2x128x384xbf16, #tpu.memory_space<vmem>>, %arg4: memref<2x128x128xbf16, #tpu.memory_space<vmem>>, %arg5: memref<2x128x512xbf16, #tpu.memory_space<vmem>>, %arg6: memref<2x512x128xbf16, #tpu.memory_space<vmem>>, %arg7: memref<2x1x512xf32, #tpu.memory_space<vmem>>, %arg8: memref<2x9x128xf32, #tpu.memory_space<vmem>>, %arg9: memref<48x128xf32, #tpu.memory_space<vmem>>) attributes {dimension_semantics = [#tpu.dimension_semantics<arbitrary>], iteration_bounds = array<i64: 1>, scalar_prefetch = 0 : i64, scratch_operands = 0 : i64, tpu.core_type = #tpu.core_type<tc>, window_params = [{pipeline_mode = #tpu.pipeline_mode<synchronous>, transform_indices = @transform_0, window_bounds = array<i64: 48, 128>}, {pipeline_mode = #tpu.pipeline_mode<synchronous>, transform_indices = @transform_1, window_bounds = array<i64: 48, 48>}, {pipeline_mode = #tpu.pipeline_mode<synchronous>, transform_indices = @transform_2, window_bounds = array<i64: 2, 128, 384>}, {pipeline_mode = #tpu.pipeline_mode<synchronous>, transform_indices = @transform_3, window_bounds = array<i64: 2, 128, 128>}, {pipeline_mode = #tpu.pipeline_mode<synchronous>, transform_indices = @transform_4, window_bounds = array<i64: 2, 128, 512>}, {pipeline_mode = #tpu.pipeline_mode<synchronous>, transform_indices = @transform_5, window_bounds = array<i64: 2, 512, 128>}, {pipeline_mode = #tpu.pipeline_mode<synchronous>, transform_indices = @transform_6, window_bounds = array<i64: 2, 1, 512>}, {pipeline_mode = #tpu.pipeline_mode<synchronous>, transform_indices = @transform_7, window_bounds = array<i64: 2, 9, 128>}, {pipeline_mode = #tpu.pipeline_mode<synchronous>, transform_indices = @transform_8, window_bounds = array<i64: 48, 128>}]} {
    %c0 = arith.constant 0 : index
    %c0_0 = arith.constant 0 : index
    %0 = vector.load %arg1[%c0, %c0_0] : memref<48x128xf32, #tpu.memory_space<vmem>>, vector<48x128xf32>
    %c0_1 = arith.constant 0 : index
    %c0_2 = arith.constant 0 : index
    %1 = vector.load %arg2[%c0_1, %c0_2] : memref<48x48xf32, #tpu.memory_space<vmem>>, vector<48x48xf32>
    %c0_3 = arith.constant 0 : index
    %c0_4 = arith.constant 0 : index
    %c0_5 = arith.constant 0 : index
    %2 = vector.load %arg8[%c0_3, %c0_4, %c0_5] : memref<2x9x128xf32, #tpu.memory_space<vmem>>, vector<1x9x128xf32>
    %3 = vector.shape_cast %2 : vector<1x9x128xf32> to vector<9x128xf32>
    %4 = arith.truncf %0 : vector<48x128xf32> to vector<48x128xbf16>
    %c0_6 = arith.constant 0 : index
    %c0_7 = arith.constant 0 : index
    %c0_8 = arith.constant 0 : index
    %5 = vector.load %arg3[%c0_6, %c0_7, %c0_8] : memref<2x128x384xbf16, #tpu.memory_space<vmem>>, vector<1x128x384xbf16>
    %6 = vector.shape_cast %5 : vector<1x128x384xbf16> to vector<128x384xbf16>
    %cst = arith.constant dense<0.000000e+00> : vector<48x384xf32>
    %7 = tpu.matmul %4, %6, %cst {dimension_numbers = #tpu.dot_dimension_numbers<[1], [0], [0], [1], [0, 0, 1, 1], [], []>} : vector<48x128xbf16>, vector<128x384xbf16>, vector<48x384xf32> -> vector<48x384xf32>
    %8 = vector.extract_strided_slice %7 {offsets = [0, 0], sizes = [48, 128], strides = [1, 1]} : vector<48x384xf32> to vector<48x128xf32>
    %9 = vector.extract_strided_slice %3 {offsets = [0, 0], sizes = [1, 128], strides = [1, 1]} : vector<9x128xf32> to vector<1x128xf32>
    %10 = vector.broadcast %9 : vector<1x128xf32> to vector<48x128xf32>
    %11 = arith.addf %8, %10 : vector<48x128xf32>
    %12 = vector.extract_strided_slice %7 {offsets = [0, 128], sizes = [48, 128], strides = [1, 1]} : vector<48x384xf32> to vector<48x128xf32>
    %13 = vector.extract_strided_slice %3 {offsets = [1, 0], sizes = [1, 128], strides = [1, 1]} : vector<9x128xf32> to vector<1x128xf32>
    %14 = vector.broadcast %13 : vector<1x128xf32> to vector<48x128xf32>
    %15 = arith.addf %12, %14 : vector<48x128xf32>
    %16 = vector.extract_strided_slice %7 {offsets = [0, 256], sizes = [48, 128], strides = [1, 1]} : vector<48x384xf32> to vector<48x128xf32>
    %17 = vector.extract_strided_slice %3 {offsets = [2, 0], sizes = [1, 128], strides = [1, 1]} : vector<9x128xf32> to vector<1x128xf32>
    %18 = vector.broadcast %17 : vector<1x128xf32> to vector<48x128xf32>
    %19 = arith.addf %16, %18 : vector<48x128xf32>
    %20 = vector.extract_strided_slice %11 {offsets = [0, 0], sizes = [48, 32], strides = [1, 1]} : vector<48x128xf32> to vector<48x32xf32>
    %21 = arith.truncf %20 : vector<48x32xf32> to vector<48x32xbf16>
    %22 = vector.extract_strided_slice %15 {offsets = [0, 0], sizes = [48, 32], strides = [1, 1]} : vector<48x128xf32> to vector<48x32xf32>
    %23 = arith.truncf %22 : vector<48x32xf32> to vector<48x32xbf16>
    %24 = vector.extract_strided_slice %19 {offsets = [0, 0], sizes = [48, 32], strides = [1, 1]} : vector<48x128xf32> to vector<48x32xf32>
    %25 = arith.truncf %24 : vector<48x32xf32> to vector<48x32xbf16>
    %cst_9 = arith.constant dense<0.000000e+00> : vector<48x48xf32>
    %26 = tpu.matmul %21, %23, %cst_9 {dimension_numbers = #tpu.dot_dimension_numbers<[1], [1], [0], [0], [0, 0, 1, 0], [], []>} : vector<48x32xbf16>, vector<48x32xbf16>, vector<48x48xf32> -> vector<48x48xf32>
    %cst_10 = arith.constant 0.176776692 : f32
    %27 = vector.broadcast %cst_10 : f32 to vector<48x48xf32>
    %28 = arith.mulf %26, %27 : vector<48x48xf32>
    %29 = arith.addf %28, %1 : vector<48x48xf32>
    %cst_11 = arith.constant dense<0xFF800000> : vector<48xf32>
    %30 = vector.multi_reduction <maximumf>, %29, %cst_11 [1] : vector<48x48xf32> to vector<48xf32>
    %31 = vector.shape_cast %30 : vector<48xf32> to vector<48x1xf32>
    %32 = vector.broadcast %31 : vector<48x1xf32> to vector<48x48xf32>
    %33 = arith.subf %29, %32 : vector<48x48xf32>
    %34 = math.exp %33 : vector<48x48xf32>
    %cst_12 = arith.constant dense<0.000000e+00> : vector<48xf32>
    %35 = vector.multi_reduction <add>, %34, %cst_12 [1] : vector<48x48xf32> to vector<48xf32>
    %36 = vector.shape_cast %35 : vector<48xf32> to vector<48x1xf32>
    %37 = tpu.reciprocal %36 {approx = true} : vector<48x1xf32> -> vector<48x1xf32>
    %38 = vector.broadcast %37 : vector<48x1xf32> to vector<48x48xf32>
    %39 = arith.mulf %34, %38 : vector<48x48xf32>
    %40 = arith.truncf %39 : vector<48x48xf32> to vector<48x48xbf16>
    %cst_13 = arith.constant dense<0.000000e+00> : vector<48x32xf32>
    %41 = tpu.matmul %40, %25, %cst_13 {dimension_numbers = #tpu.dot_dimension_numbers<[1], [0], [0], [1], [0, 0, 1, 1], [], []>} : vector<48x48xbf16>, vector<48x32xbf16>, vector<48x32xf32> -> vector<48x32xf32>
    %42 = arith.truncf %41 : vector<48x32xf32> to vector<48x32xbf16>
    %43 = vector.extract_strided_slice %11 {offsets = [0, 32], sizes = [48, 32], strides = [1, 1]} : vector<48x128xf32> to vector<48x32xf32>
    %44 = arith.truncf %43 : vector<48x32xf32> to vector<48x32xbf16>
    %45 = vector.extract_strided_slice %15 {offsets = [0, 32], sizes = [48, 32], strides = [1, 1]} : vector<48x128xf32> to vector<48x32xf32>
    %46 = arith.truncf %45 : vector<48x32xf32> to vector<48x32xbf16>
    %47 = vector.extract_strided_slice %19 {offsets = [0, 32], sizes = [48, 32], strides = [1, 1]} : vector<48x128xf32> to vector<48x32xf32>
    %48 = arith.truncf %47 : vector<48x32xf32> to vector<48x32xbf16>
    %cst_14 = arith.constant dense<0.000000e+00> : vector<48x48xf32>
    %49 = tpu.matmul %44, %46, %cst_14 {dimension_numbers = #tpu.dot_dimension_numbers<[1], [1], [0], [0], [0, 0, 1, 0], [], []>} : vector<48x32xbf16>, vector<48x32xbf16>, vector<48x48xf32> -> vector<48x48xf32>
    %cst_15 = arith.constant 0.176776692 : f32
    %50 = vector.broadcast %cst_15 : f32 to vector<48x48xf32>
    %51 = arith.mulf %49, %50 : vector<48x48xf32>
    %52 = arith.addf %51, %1 : vector<48x48xf32>
    %cst_16 = arith.constant dense<0xFF800000> : vector<48xf32>
    %53 = vector.multi_reduction <maximumf>, %52, %cst_16 [1] : vector<48x48xf32> to vector<48xf32>
    %54 = vector.shape_cast %53 : vector<48xf32> to vector<48x1xf32>
    %55 = vector.broadcast %54 : vector<48x1xf32> to vector<48x48xf32>
    %56 = arith.subf %52, %55 : vector<48x48xf32>
    %57 = math.exp %56 : vector<48x48xf32>
    %cst_17 = arith.constant dense<0.000000e+00> : vector<48xf32>
    %58 = vector.multi_reduction <add>, %57, %cst_17 [1] : vector<48x48xf32> to vector<48xf32>
    %59 = vector.shape_cast %58 : vector<48xf32> to vector<48x1xf32>
    %60 = tpu.reciprocal %59 {approx = true} : vector<48x1xf32> -> vector<48x1xf32>
    %61 = vector.broadcast %60 : vector<48x1xf32> to vector<48x48xf32>
    %62 = arith.mulf %57, %61 : vector<48x48xf32>
    %63 = arith.truncf %62 : vector<48x48xf32> to vector<48x48xbf16>
    %cst_18 = arith.constant dense<0.000000e+00> : vector<48x32xf32>
    %64 = tpu.matmul %63, %48, %cst_18 {dimension_numbers = #tpu.dot_dimension_numbers<[1], [0], [0], [1], [0, 0, 1, 1], [], []>} : vector<48x48xbf16>, vector<48x32xbf16>, vector<48x32xf32> -> vector<48x32xf32>
    %65 = arith.truncf %64 : vector<48x32xf32> to vector<48x32xbf16>
    %66 = vector.extract_strided_slice %11 {offsets = [0, 64], sizes = [48, 32], strides = [1, 1]} : vector<48x128xf32> to vector<48x32xf32>
    %67 = arith.truncf %66 : vector<48x32xf32> to vector<48x32xbf16>
    %68 = vector.extract_strided_slice %15 {offsets = [0, 64], sizes = [48, 32], strides = [1, 1]} : vector<48x128xf32> to vector<48x32xf32>
    %69 = arith.truncf %68 : vector<48x32xf32> to vector<48x32xbf16>
    %70 = vector.extract_strided_slice %19 {offsets = [0, 64], sizes = [48, 32], strides = [1, 1]} : vector<48x128xf32> to vector<48x32xf32>
    %71 = arith.truncf %70 : vector<48x32xf32> to vector<48x32xbf16>
    %cst_19 = arith.constant dense<0.000000e+00> : vector<48x48xf32>
    %72 = tpu.matmul %67, %69, %cst_19 {dimension_numbers = #tpu.dot_dimension_numbers<[1], [1], [0], [0], [0, 0, 1, 0], [], []>} : vector<48x32xbf16>, vector<48x32xbf16>, vector<48x48xf32> -> vector<48x48xf32>
    %cst_20 = arith.constant 0.176776692 : f32
    %73 = vector.broadcast %cst_20 : f32 to vector<48x48xf32>
    %74 = arith.mulf %72, %73 : vector<48x48xf32>
    %75 = arith.addf %74, %1 : vector<48x48xf32>
    %cst_21 = arith.constant dense<0xFF800000> : vector<48xf32>
    %76 = vector.multi_reduction <maximumf>, %75, %cst_21 [1] : vector<48x48xf32> to vector<48xf32>
    %77 = vector.shape_cast %76 : vector<48xf32> to vector<48x1xf32>
    %78 = vector.broadcast %77 : vector<48x1xf32> to vector<48x48xf32>
    %79 = arith.subf %75, %78 : vector<48x48xf32>
    %80 = math.exp %79 : vector<48x48xf32>
    %cst_22 = arith.constant dense<0.000000e+00> : vector<48xf32>
    %81 = vector.multi_reduction <add>, %80, %cst_22 [1] : vector<48x48xf32> to vector<48xf32>
    %82 = vector.shape_cast %81 : vector<48xf32> to vector<48x1xf32>
    %83 = tpu.reciprocal %82 {approx = true} : vector<48x1xf32> -> vector<48x1xf32>
    %84 = vector.broadcast %83 : vector<48x1xf32> to vector<48x48xf32>
    %85 = arith.mulf %80, %84 : vector<48x48xf32>
    %86 = arith.truncf %85 : vector<48x48xf32> to vector<48x48xbf16>
    %cst_23 = arith.constant dense<0.000000e+00> : vector<48x32xf32>
    %87 = tpu.matmul %86, %71, %cst_23 {dimension_numbers = #tpu.dot_dimension_numbers<[1], [0], [0], [1], [0, 0, 1, 1], [], []>} : vector<48x48xbf16>, vector<48x32xbf16>, vector<48x32xf32> -> vector<48x32xf32>
    %88 = arith.truncf %87 : vector<48x32xf32> to vector<48x32xbf16>
    %89 = vector.extract_strided_slice %11 {offsets = [0, 96], sizes = [48, 32], strides = [1, 1]} : vector<48x128xf32> to vector<48x32xf32>
    %90 = arith.truncf %89 : vector<48x32xf32> to vector<48x32xbf16>
    %91 = vector.extract_strided_slice %15 {offsets = [0, 96], sizes = [48, 32], strides = [1, 1]} : vector<48x128xf32> to vector<48x32xf32>
    %92 = arith.truncf %91 : vector<48x32xf32> to vector<48x32xbf16>
    %93 = vector.extract_strided_slice %19 {offsets = [0, 96], sizes = [48, 32], strides = [1, 1]} : vector<48x128xf32> to vector<48x32xf32>
    %94 = arith.truncf %93 : vector<48x32xf32> to vector<48x32xbf16>
    %cst_24 = arith.constant dense<0.000000e+00> : vector<48x48xf32>
    %95 = tpu.matmul %90, %92, %cst_24 {dimension_numbers = #tpu.dot_dimension_numbers<[1], [1], [0], [0], [0, 0, 1, 0], [], []>} : vector<48x32xbf16>, vector<48x32xbf16>, vector<48x48xf32> -> vector<48x48xf32>
    %cst_25 = arith.constant 0.176776692 : f32
    %96 = vector.broadcast %cst_25 : f32 to vector<48x48xf32>
    %97 = arith.mulf %95, %96 : vector<48x48xf32>
    %98 = arith.addf %97, %1 : vector<48x48xf32>
    %cst_26 = arith.constant dense<0xFF800000> : vector<48xf32>
    %99 = vector.multi_reduction <maximumf>, %98, %cst_26 [1] : vector<48x48xf32> to vector<48xf32>
    %100 = vector.shape_cast %99 : vector<48xf32> to vector<48x1xf32>
    %101 = vector.broadcast %100 : vector<48x1xf32> to vector<48x48xf32>
    %102 = arith.subf %98, %101 : vector<48x48xf32>
    %103 = math.exp %102 : vector<48x48xf32>
    %cst_27 = arith.constant dense<0.000000e+00> : vector<48xf32>
    %104 = vector.multi_reduction <add>, %103, %cst_27 [1] : vector<48x48xf32> to vector<48xf32>
    %105 = vector.shape_cast %104 : vector<48xf32> to vector<48x1xf32>
    %106 = tpu.reciprocal %105 {approx = true} : vector<48x1xf32> -> vector<48x1xf32>
    %107 = vector.broadcast %106 : vector<48x1xf32> to vector<48x48xf32>
    %108 = arith.mulf %103, %107 : vector<48x48xf32>
    %109 = arith.truncf %108 : vector<48x48xf32> to vector<48x48xbf16>
    %cst_28 = arith.constant dense<0.000000e+00> : vector<48x32xf32>
    %110 = tpu.matmul %109, %94, %cst_28 {dimension_numbers = #tpu.dot_dimension_numbers<[1], [0], [0], [1], [0, 0, 1, 1], [], []>} : vector<48x48xbf16>, vector<48x32xbf16>, vector<48x32xf32> -> vector<48x32xf32>
    %111 = arith.truncf %110 : vector<48x32xf32> to vector<48x32xbf16>
    %112 = tpu.concatenate %42, %65, %88, %111 in 1 : vector<48x32xbf16>, vector<48x32xbf16>, vector<48x32xbf16>, vector<48x32xbf16> -> vector<48x128xbf16>
    %c0_29 = arith.constant 0 : index
    %c0_30 = arith.constant 0 : index
    %c0_31 = arith.constant 0 : index
    %113 = vector.load %arg4[%c0_29, %c0_30, %c0_31] : memref<2x128x128xbf16, #tpu.memory_space<vmem>>, vector<1x128x128xbf16>
    %114 = vector.shape_cast %113 : vector<1x128x128xbf16> to vector<128x128xbf16>
    %cst_32 = arith.constant dense<0.000000e+00> : vector<48x128xf32>
    %115 = tpu.matmul %112, %114, %cst_32 {dimension_numbers = #tpu.dot_dimension_numbers<[1], [0], [0], [1], [0, 0, 1, 1], [], []>} : vector<48x128xbf16>, vector<128x128xbf16>, vector<48x128xf32> -> vector<48x128xf32>
    %116 = vector.extract_strided_slice %3 {offsets = [3, 0], sizes = [1, 128], strides = [1, 1]} : vector<9x128xf32> to vector<1x128xf32>
    %117 = vector.broadcast %116 : vector<1x128xf32> to vector<48x128xf32>
    %118 = arith.addf %115, %117 : vector<48x128xf32>
    %119 = arith.addf %0, %118 : vector<48x128xf32>
    %120 = vector.extract_strided_slice %3 {offsets = [5, 0], sizes = [1, 128], strides = [1, 1]} : vector<9x128xf32> to vector<1x128xf32>
    %121 = vector.extract_strided_slice %3 {offsets = [6, 0], sizes = [1, 128], strides = [1, 1]} : vector<9x128xf32> to vector<1x128xf32>
    %cst_33 = arith.constant dense<0.000000e+00> : vector<48xf32>
    %122 = vector.multi_reduction <add>, %119, %cst_33 [1] : vector<48x128xf32> to vector<48xf32>
    %123 = vector.shape_cast %122 : vector<48xf32> to vector<48x1xf32>
    %cst_34 = arith.constant 1.280000e+02 : f32
    %124 = vector.broadcast %cst_34 : f32 to vector<48x1xf32>
    %125 = arith.divf %123, %124 : vector<48x1xf32>
    %126 = vector.broadcast %125 : vector<48x1xf32> to vector<48x128xf32>
    %127 = arith.subf %119, %126 : vector<48x128xf32>
    %128 = arith.mulf %127, %127 : vector<48x128xf32>
    %cst_35 = arith.constant dense<0.000000e+00> : vector<48xf32>
    %129 = vector.multi_reduction <add>, %128, %cst_35 [1] : vector<48x128xf32> to vector<48xf32>
    %130 = vector.shape_cast %129 : vector<48xf32> to vector<48x1xf32>
    %cst_36 = arith.constant 1.280000e+02 : f32
    %131 = vector.broadcast %cst_36 : f32 to vector<48x1xf32>
    %132 = arith.divf %130, %131 : vector<48x1xf32>
    %133 = vector.broadcast %125 : vector<48x1xf32> to vector<48x128xf32>
    %134 = arith.subf %119, %133 : vector<48x128xf32>
    %cst_37 = arith.constant 9.99999974E-6 : f32
    %135 = vector.broadcast %cst_37 : f32 to vector<48x1xf32>
    %136 = arith.addf %132, %135 : vector<48x1xf32>
    %137 = math.rsqrt %136 : vector<48x1xf32>
    %138 = vector.broadcast %137 : vector<48x1xf32> to vector<48x128xf32>
    %139 = arith.mulf %134, %138 : vector<48x128xf32>
    %140 = vector.broadcast %120 : vector<1x128xf32> to vector<48x128xf32>
    %141 = arith.mulf %139, %140 : vector<48x128xf32>
    %142 = vector.broadcast %121 : vector<1x128xf32> to vector<48x128xf32>
    %143 = arith.addf %141, %142 : vector<48x128xf32>
    %144 = arith.truncf %143 : vector<48x128xf32> to vector<48x128xbf16>
    %c0_38 = arith.constant 0 : index
    %c0_39 = arith.constant 0 : index
    %c0_40 = arith.constant 0 : index
    %145 = vector.load %arg5[%c0_38, %c0_39, %c0_40] : memref<2x128x512xbf16, #tpu.memory_space<vmem>>, vector<1x128x512xbf16>
    %146 = vector.shape_cast %145 : vector<1x128x512xbf16> to vector<128x512xbf16>
    %cst_41 = arith.constant dense<0.000000e+00> : vector<48x512xf32>
    %147 = tpu.matmul %144, %146, %cst_41 {dimension_numbers = #tpu.dot_dimension_numbers<[1], [0], [0], [1], [0, 0, 1, 1], [], []>} : vector<48x128xbf16>, vector<128x512xbf16>, vector<48x512xf32> -> vector<48x512xf32>
    %c0_42 = arith.constant 0 : index
    %c0_43 = arith.constant 0 : index
    %c0_44 = arith.constant 0 : index
    %148 = vector.load %arg7[%c0_42, %c0_43, %c0_44] : memref<2x1x512xf32, #tpu.memory_space<vmem>>, vector<1x1x512xf32>
    %149 = vector.shape_cast %148 : vector<1x1x512xf32> to vector<1x512xf32>
    %150 = vector.broadcast %149 : vector<1x512xf32> to vector<48x512xf32>
    %151 = arith.addf %147, %150 : vector<48x512xf32>
    %cst_45 = arith.constant 5.000000e-01 : f32
    %152 = vector.broadcast %cst_45 : f32 to vector<48x512xf32>
    %153 = arith.mulf %152, %151 : vector<48x512xf32>
    %cst_46 = arith.constant 4.471500e-02 : f32
    %154 = vector.broadcast %cst_46 : f32 to vector<48x512xf32>
    %155 = arith.mulf %154, %151 : vector<48x512xf32>
    %156 = arith.mulf %155, %151 : vector<48x512xf32>
    %157 = arith.mulf %156, %151 : vector<48x512xf32>
    %158 = arith.addf %151, %157 : vector<48x512xf32>
    %cst_47 = arith.constant 0.797884583 : f32
    %159 = vector.broadcast %cst_47 : f32 to vector<48x512xf32>
    %160 = arith.mulf %159, %158 : vector<48x512xf32>
    %161 = math.tanh %160 : vector<48x512xf32>
    %cst_48 = arith.constant 1.000000e+00 : f32
    %162 = vector.broadcast %cst_48 : f32 to vector<48x512xf32>
    %163 = arith.addf %162, %161 : vector<48x512xf32>
    %164 = arith.mulf %153, %163 : vector<48x512xf32>
    %165 = arith.truncf %164 : vector<48x512xf32> to vector<48x512xbf16>
    %c0_49 = arith.constant 0 : index
    %c0_50 = arith.constant 0 : index
    %c0_51 = arith.constant 0 : index
    %166 = vector.load %arg6[%c0_49, %c0_50, %c0_51] : memref<2x512x128xbf16, #tpu.memory_space<vmem>>, vector<1x512x128xbf16>
    %167 = vector.shape_cast %166 : vector<1x512x128xbf16> to vector<512x128xbf16>
    %cst_52 = arith.constant dense<0.000000e+00> : vector<48x128xf32>
    %168 = tpu.matmul %165, %167, %cst_52 {dimension_numbers = #tpu.dot_dimension_numbers<[1], [0], [0], [1], [0, 0, 1, 1], [], []>} : vector<48x512xbf16>, vector<512x128xbf16>, vector<48x128xf32> -> vector<48x128xf32>
    %169 = vector.extract_strided_slice %3 {offsets = [4, 0], sizes = [1, 128], strides = [1, 1]} : vector<9x128xf32> to vector<1x128xf32>
    %170 = vector.broadcast %169 : vector<1x128xf32> to vector<48x128xf32>
    %171 = arith.addf %168, %170 : vector<48x128xf32>
    %172 = arith.addf %143, %171 : vector<48x128xf32>
    %173 = vector.extract_strided_slice %3 {offsets = [7, 0], sizes = [1, 128], strides = [1, 1]} : vector<9x128xf32> to vector<1x128xf32>
    %174 = vector.extract_strided_slice %3 {offsets = [8, 0], sizes = [1, 128], strides = [1, 1]} : vector<9x128xf32> to vector<1x128xf32>
    %cst_53 = arith.constant dense<0.000000e+00> : vector<48xf32>
    %175 = vector.multi_reduction <add>, %172, %cst_53 [1] : vector<48x128xf32> to vector<48xf32>
    %176 = vector.shape_cast %175 : vector<48xf32> to vector<48x1xf32>
    %cst_54 = arith.constant 1.280000e+02 : f32
    %177 = vector.broadcast %cst_54 : f32 to vector<48x1xf32>
    %178 = arith.divf %176, %177 : vector<48x1xf32>
    %179 = vector.broadcast %178 : vector<48x1xf32> to vector<48x128xf32>
    %180 = arith.subf %172, %179 : vector<48x128xf32>
    %181 = arith.mulf %180, %180 : vector<48x128xf32>
    %cst_55 = arith.constant dense<0.000000e+00> : vector<48xf32>
    %182 = vector.multi_reduction <add>, %181, %cst_55 [1] : vector<48x128xf32> to vector<48xf32>
    %183 = vector.shape_cast %182 : vector<48xf32> to vector<48x1xf32>
    %cst_56 = arith.constant 1.280000e+02 : f32
    %184 = vector.broadcast %cst_56 : f32 to vector<48x1xf32>
    %185 = arith.divf %183, %184 : vector<48x1xf32>
    %186 = vector.broadcast %178 : vector<48x1xf32> to vector<48x128xf32>
    %187 = arith.subf %172, %186 : vector<48x128xf32>
    %cst_57 = arith.constant 9.99999974E-6 : f32
    %188 = vector.broadcast %cst_57 : f32 to vector<48x1xf32>
    %189 = arith.addf %185, %188 : vector<48x1xf32>
    %190 = math.rsqrt %189 : vector<48x1xf32>
    %191 = vector.broadcast %190 : vector<48x1xf32> to vector<48x128xf32>
    %192 = arith.mulf %187, %191 : vector<48x128xf32>
    %193 = vector.broadcast %173 : vector<1x128xf32> to vector<48x128xf32>
    %194 = arith.mulf %192, %193 : vector<48x128xf32>
    %195 = vector.broadcast %174 : vector<1x128xf32> to vector<48x128xf32>
    %196 = arith.addf %194, %195 : vector<48x128xf32>
    %c1 = arith.constant 1 : index
    %c0_58 = arith.constant 0 : index
    %c0_59 = arith.constant 0 : index
    %197 = vector.load %arg8[%c1, %c0_58, %c0_59] : memref<2x9x128xf32, #tpu.memory_space<vmem>>, vector<1x9x128xf32>
    %198 = vector.shape_cast %197 : vector<1x9x128xf32> to vector<9x128xf32>
    %199 = arith.truncf %196 : vector<48x128xf32> to vector<48x128xbf16>
    %c1_60 = arith.constant 1 : index
    %c0_61 = arith.constant 0 : index
    %c0_62 = arith.constant 0 : index
    %200 = vector.load %arg3[%c1_60, %c0_61, %c0_62] : memref<2x128x384xbf16, #tpu.memory_space<vmem>>, vector<1x128x384xbf16>
    %201 = vector.shape_cast %200 : vector<1x128x384xbf16> to vector<128x384xbf16>
    %cst_63 = arith.constant dense<0.000000e+00> : vector<48x384xf32>
    %202 = tpu.matmul %199, %201, %cst_63 {dimension_numbers = #tpu.dot_dimension_numbers<[1], [0], [0], [1], [0, 0, 1, 1], [], []>} : vector<48x128xbf16>, vector<128x384xbf16>, vector<48x384xf32> -> vector<48x384xf32>
    %203 = vector.extract_strided_slice %202 {offsets = [0, 0], sizes = [48, 128], strides = [1, 1]} : vector<48x384xf32> to vector<48x128xf32>
    %204 = vector.extract_strided_slice %198 {offsets = [0, 0], sizes = [1, 128], strides = [1, 1]} : vector<9x128xf32> to vector<1x128xf32>
    %205 = vector.broadcast %204 : vector<1x128xf32> to vector<48x128xf32>
    %206 = arith.addf %203, %205 : vector<48x128xf32>
    %207 = vector.extract_strided_slice %202 {offsets = [0, 128], sizes = [48, 128], strides = [1, 1]} : vector<48x384xf32> to vector<48x128xf32>
    %208 = vector.extract_strided_slice %198 {offsets = [1, 0], sizes = [1, 128], strides = [1, 1]} : vector<9x128xf32> to vector<1x128xf32>
    %209 = vector.broadcast %208 : vector<1x128xf32> to vector<48x128xf32>
    %210 = arith.addf %207, %209 : vector<48x128xf32>
    %211 = vector.extract_strided_slice %202 {offsets = [0, 256], sizes = [48, 128], strides = [1, 1]} : vector<48x384xf32> to vector<48x128xf32>
    %212 = vector.extract_strided_slice %198 {offsets = [2, 0], sizes = [1, 128], strides = [1, 1]} : vector<9x128xf32> to vector<1x128xf32>
    %213 = vector.broadcast %212 : vector<1x128xf32> to vector<48x128xf32>
    %214 = arith.addf %211, %213 : vector<48x128xf32>
    %215 = vector.extract_strided_slice %206 {offsets = [0, 0], sizes = [48, 32], strides = [1, 1]} : vector<48x128xf32> to vector<48x32xf32>
    %216 = arith.truncf %215 : vector<48x32xf32> to vector<48x32xbf16>
    %217 = vector.extract_strided_slice %210 {offsets = [0, 0], sizes = [48, 32], strides = [1, 1]} : vector<48x128xf32> to vector<48x32xf32>
    %218 = arith.truncf %217 : vector<48x32xf32> to vector<48x32xbf16>
    %219 = vector.extract_strided_slice %214 {offsets = [0, 0], sizes = [48, 32], strides = [1, 1]} : vector<48x128xf32> to vector<48x32xf32>
    %220 = arith.truncf %219 : vector<48x32xf32> to vector<48x32xbf16>
    %cst_64 = arith.constant dense<0.000000e+00> : vector<48x48xf32>
    %221 = tpu.matmul %216, %218, %cst_64 {dimension_numbers = #tpu.dot_dimension_numbers<[1], [1], [0], [0], [0, 0, 1, 0], [], []>} : vector<48x32xbf16>, vector<48x32xbf16>, vector<48x48xf32> -> vector<48x48xf32>
    %cst_65 = arith.constant 0.176776692 : f32
    %222 = vector.broadcast %cst_65 : f32 to vector<48x48xf32>
    %223 = arith.mulf %221, %222 : vector<48x48xf32>
    %224 = arith.addf %223, %1 : vector<48x48xf32>
    %cst_66 = arith.constant dense<0xFF800000> : vector<48xf32>
    %225 = vector.multi_reduction <maximumf>, %224, %cst_66 [1] : vector<48x48xf32> to vector<48xf32>
    %226 = vector.shape_cast %225 : vector<48xf32> to vector<48x1xf32>
    %227 = vector.broadcast %226 : vector<48x1xf32> to vector<48x48xf32>
    %228 = arith.subf %224, %227 : vector<48x48xf32>
    %229 = math.exp %228 : vector<48x48xf32>
    %cst_67 = arith.constant dense<0.000000e+00> : vector<48xf32>
    %230 = vector.multi_reduction <add>, %229, %cst_67 [1] : vector<48x48xf32> to vector<48xf32>
    %231 = vector.shape_cast %230 : vector<48xf32> to vector<48x1xf32>
    %232 = tpu.reciprocal %231 {approx = true} : vector<48x1xf32> -> vector<48x1xf32>
    %233 = vector.broadcast %232 : vector<48x1xf32> to vector<48x48xf32>
    %234 = arith.mulf %229, %233 : vector<48x48xf32>
    %235 = arith.truncf %234 : vector<48x48xf32> to vector<48x48xbf16>
    %cst_68 = arith.constant dense<0.000000e+00> : vector<48x32xf32>
    %236 = tpu.matmul %235, %220, %cst_68 {dimension_numbers = #tpu.dot_dimension_numbers<[1], [0], [0], [1], [0, 0, 1, 1], [], []>} : vector<48x48xbf16>, vector<48x32xbf16>, vector<48x32xf32> -> vector<48x32xf32>
    %237 = arith.truncf %236 : vector<48x32xf32> to vector<48x32xbf16>
    %238 = vector.extract_strided_slice %206 {offsets = [0, 32], sizes = [48, 32], strides = [1, 1]} : vector<48x128xf32> to vector<48x32xf32>
    %239 = arith.truncf %238 : vector<48x32xf32> to vector<48x32xbf16>
    %240 = vector.extract_strided_slice %210 {offsets = [0, 32], sizes = [48, 32], strides = [1, 1]} : vector<48x128xf32> to vector<48x32xf32>
    %241 = arith.truncf %240 : vector<48x32xf32> to vector<48x32xbf16>
    %242 = vector.extract_strided_slice %214 {offsets = [0, 32], sizes = [48, 32], strides = [1, 1]} : vector<48x128xf32> to vector<48x32xf32>
    %243 = arith.truncf %242 : vector<48x32xf32> to vector<48x32xbf16>
    %cst_69 = arith.constant dense<0.000000e+00> : vector<48x48xf32>
    %244 = tpu.matmul %239, %241, %cst_69 {dimension_numbers = #tpu.dot_dimension_numbers<[1], [1], [0], [0], [0, 0, 1, 0], [], []>} : vector<48x32xbf16>, vector<48x32xbf16>, vector<48x48xf32> -> vector<48x48xf32>
    %cst_70 = arith.constant 0.176776692 : f32
    %245 = vector.broadcast %cst_70 : f32 to vector<48x48xf32>
    %246 = arith.mulf %244, %245 : vector<48x48xf32>
    %247 = arith.addf %246, %1 : vector<48x48xf32>
    %cst_71 = arith.constant dense<0xFF800000> : vector<48xf32>
    %248 = vector.multi_reduction <maximumf>, %247, %cst_71 [1] : vector<48x48xf32> to vector<48xf32>
    %249 = vector.shape_cast %248 : vector<48xf32> to vector<48x1xf32>
    %250 = vector.broadcast %249 : vector<48x1xf32> to vector<48x48xf32>
    %251 = arith.subf %247, %250 : vector<48x48xf32>
    %252 = math.exp %251 : vector<48x48xf32>
    %cst_72 = arith.constant dense<0.000000e+00> : vector<48xf32>
    %253 = vector.multi_reduction <add>, %252, %cst_72 [1] : vector<48x48xf32> to vector<48xf32>
    %254 = vector.shape_cast %253 : vector<48xf32> to vector<48x1xf32>
    %255 = tpu.reciprocal %254 {approx = true} : vector<48x1xf32> -> vector<48x1xf32>
    %256 = vector.broadcast %255 : vector<48x1xf32> to vector<48x48xf32>
    %257 = arith.mulf %252, %256 : vector<48x48xf32>
    %258 = arith.truncf %257 : vector<48x48xf32> to vector<48x48xbf16>
    %cst_73 = arith.constant dense<0.000000e+00> : vector<48x32xf32>
    %259 = tpu.matmul %258, %243, %cst_73 {dimension_numbers = #tpu.dot_dimension_numbers<[1], [0], [0], [1], [0, 0, 1, 1], [], []>} : vector<48x48xbf16>, vector<48x32xbf16>, vector<48x32xf32> -> vector<48x32xf32>
    %260 = arith.truncf %259 : vector<48x32xf32> to vector<48x32xbf16>
    %261 = vector.extract_strided_slice %206 {offsets = [0, 64], sizes = [48, 32], strides = [1, 1]} : vector<48x128xf32> to vector<48x32xf32>
    %262 = arith.truncf %261 : vector<48x32xf32> to vector<48x32xbf16>
    %263 = vector.extract_strided_slice %210 {offsets = [0, 64], sizes = [48, 32], strides = [1, 1]} : vector<48x128xf32> to vector<48x32xf32>
    %264 = arith.truncf %263 : vector<48x32xf32> to vector<48x32xbf16>
    %265 = vector.extract_strided_slice %214 {offsets = [0, 64], sizes = [48, 32], strides = [1, 1]} : vector<48x128xf32> to vector<48x32xf32>
    %266 = arith.truncf %265 : vector<48x32xf32> to vector<48x32xbf16>
    %cst_74 = arith.constant dense<0.000000e+00> : vector<48x48xf32>
    %267 = tpu.matmul %262, %264, %cst_74 {dimension_numbers = #tpu.dot_dimension_numbers<[1], [1], [0], [0], [0, 0, 1, 0], [], []>} : vector<48x32xbf16>, vector<48x32xbf16>, vector<48x48xf32> -> vector<48x48xf32>
    %cst_75 = arith.constant 0.176776692 : f32
    %268 = vector.broadcast %cst_75 : f32 to vector<48x48xf32>
    %269 = arith.mulf %267, %268 : vector<48x48xf32>
    %270 = arith.addf %269, %1 : vector<48x48xf32>
    %cst_76 = arith.constant dense<0xFF800000> : vector<48xf32>
    %271 = vector.multi_reduction <maximumf>, %270, %cst_76 [1] : vector<48x48xf32> to vector<48xf32>
    %272 = vector.shape_cast %271 : vector<48xf32> to vector<48x1xf32>
    %273 = vector.broadcast %272 : vector<48x1xf32> to vector<48x48xf32>
    %274 = arith.subf %270, %273 : vector<48x48xf32>
    %275 = math.exp %274 : vector<48x48xf32>
    %cst_77 = arith.constant dense<0.000000e+00> : vector<48xf32>
    %276 = vector.multi_reduction <add>, %275, %cst_77 [1] : vector<48x48xf32> to vector<48xf32>
    %277 = vector.shape_cast %276 : vector<48xf32> to vector<48x1xf32>
    %278 = tpu.reciprocal %277 {approx = true} : vector<48x1xf32> -> vector<48x1xf32>
    %279 = vector.broadcast %278 : vector<48x1xf32> to vector<48x48xf32>
    %280 = arith.mulf %275, %279 : vector<48x48xf32>
    %281 = arith.truncf %280 : vector<48x48xf32> to vector<48x48xbf16>
    %cst_78 = arith.constant dense<0.000000e+00> : vector<48x32xf32>
    %282 = tpu.matmul %281, %266, %cst_78 {dimension_numbers = #tpu.dot_dimension_numbers<[1], [0], [0], [1], [0, 0, 1, 1], [], []>} : vector<48x48xbf16>, vector<48x32xbf16>, vector<48x32xf32> -> vector<48x32xf32>
    %283 = arith.truncf %282 : vector<48x32xf32> to vector<48x32xbf16>
    %284 = vector.extract_strided_slice %206 {offsets = [0, 96], sizes = [48, 32], strides = [1, 1]} : vector<48x128xf32> to vector<48x32xf32>
    %285 = arith.truncf %284 : vector<48x32xf32> to vector<48x32xbf16>
    %286 = vector.extract_strided_slice %210 {offsets = [0, 96], sizes = [48, 32], strides = [1, 1]} : vector<48x128xf32> to vector<48x32xf32>
    %287 = arith.truncf %286 : vector<48x32xf32> to vector<48x32xbf16>
    %288 = vector.extract_strided_slice %214 {offsets = [0, 96], sizes = [48, 32], strides = [1, 1]} : vector<48x128xf32> to vector<48x32xf32>
    %289 = arith.truncf %288 : vector<48x32xf32> to vector<48x32xbf16>
    %cst_79 = arith.constant dense<0.000000e+00> : vector<48x48xf32>
    %290 = tpu.matmul %285, %287, %cst_79 {dimension_numbers = #tpu.dot_dimension_numbers<[1], [1], [0], [0], [0, 0, 1, 0], [], []>} : vector<48x32xbf16>, vector<48x32xbf16>, vector<48x48xf32> -> vector<48x48xf32>
    %cst_80 = arith.constant 0.176776692 : f32
    %291 = vector.broadcast %cst_80 : f32 to vector<48x48xf32>
    %292 = arith.mulf %290, %291 : vector<48x48xf32>
    %293 = arith.addf %292, %1 : vector<48x48xf32>
    %cst_81 = arith.constant dense<0xFF800000> : vector<48xf32>
    %294 = vector.multi_reduction <maximumf>, %293, %cst_81 [1] : vector<48x48xf32> to vector<48xf32>
    %295 = vector.shape_cast %294 : vector<48xf32> to vector<48x1xf32>
    %296 = vector.broadcast %295 : vector<48x1xf32> to vector<48x48xf32>
    %297 = arith.subf %293, %296 : vector<48x48xf32>
    %298 = math.exp %297 : vector<48x48xf32>
    %cst_82 = arith.constant dense<0.000000e+00> : vector<48xf32>
    %299 = vector.multi_reduction <add>, %298, %cst_82 [1] : vector<48x48xf32> to vector<48xf32>
    %300 = vector.shape_cast %299 : vector<48xf32> to vector<48x1xf32>
    %301 = tpu.reciprocal %300 {approx = true} : vector<48x1xf32> -> vector<48x1xf32>
    %302 = vector.broadcast %301 : vector<48x1xf32> to vector<48x48xf32>
    %303 = arith.mulf %298, %302 : vector<48x48xf32>
    %304 = arith.truncf %303 : vector<48x48xf32> to vector<48x48xbf16>
    %cst_83 = arith.constant dense<0.000000e+00> : vector<48x32xf32>
    %305 = tpu.matmul %304, %289, %cst_83 {dimension_numbers = #tpu.dot_dimension_numbers<[1], [0], [0], [1], [0, 0, 1, 1], [], []>} : vector<48x48xbf16>, vector<48x32xbf16>, vector<48x32xf32> -> vector<48x32xf32>
    %306 = arith.truncf %305 : vector<48x32xf32> to vector<48x32xbf16>
    %307 = tpu.concatenate %237, %260, %283, %306 in 1 : vector<48x32xbf16>, vector<48x32xbf16>, vector<48x32xbf16>, vector<48x32xbf16> -> vector<48x128xbf16>
    %c1_84 = arith.constant 1 : index
    %c0_85 = arith.constant 0 : index
    %c0_86 = arith.constant 0 : index
    %308 = vector.load %arg4[%c1_84, %c0_85, %c0_86] : memref<2x128x128xbf16, #tpu.memory_space<vmem>>, vector<1x128x128xbf16>
    %309 = vector.shape_cast %308 : vector<1x128x128xbf16> to vector<128x128xbf16>
    %cst_87 = arith.constant dense<0.000000e+00> : vector<48x128xf32>
    %310 = tpu.matmul %307, %309, %cst_87 {dimension_numbers = #tpu.dot_dimension_numbers<[1], [0], [0], [1], [0, 0, 1, 1], [], []>} : vector<48x128xbf16>, vector<128x128xbf16>, vector<48x128xf32> -> vector<48x128xf32>
    %311 = vector.extract_strided_slice %198 {offsets = [3, 0], sizes = [1, 128], strides = [1, 1]} : vector<9x128xf32> to vector<1x128xf32>
    %312 = vector.broadcast %311 : vector<1x128xf32> to vector<48x128xf32>
    %313 = arith.addf %310, %312 : vector<48x128xf32>
    %314 = arith.addf %196, %313 : vector<48x128xf32>
    %315 = vector.extract_strided_slice %198 {offsets = [5, 0], sizes = [1, 128], strides = [1, 1]} : vector<9x128xf32> to vector<1x128xf32>
    %316 = vector.extract_strided_slice %198 {offsets = [6, 0], sizes = [1, 128], strides = [1, 1]} : vector<9x128xf32> to vector<1x128xf32>
    %cst_88 = arith.constant dense<0.000000e+00> : vector<48xf32>
    %317 = vector.multi_reduction <add>, %314, %cst_88 [1] : vector<48x128xf32> to vector<48xf32>
    %318 = vector.shape_cast %317 : vector<48xf32> to vector<48x1xf32>
    %cst_89 = arith.constant 1.280000e+02 : f32
    %319 = vector.broadcast %cst_89 : f32 to vector<48x1xf32>
    %320 = arith.divf %318, %319 : vector<48x1xf32>
    %321 = vector.broadcast %320 : vector<48x1xf32> to vector<48x128xf32>
    %322 = arith.subf %314, %321 : vector<48x128xf32>
    %323 = arith.mulf %322, %322 : vector<48x128xf32>
    %cst_90 = arith.constant dense<0.000000e+00> : vector<48xf32>
    %324 = vector.multi_reduction <add>, %323, %cst_90 [1] : vector<48x128xf32> to vector<48xf32>
    %325 = vector.shape_cast %324 : vector<48xf32> to vector<48x1xf32>
    %cst_91 = arith.constant 1.280000e+02 : f32
    %326 = vector.broadcast %cst_91 : f32 to vector<48x1xf32>
    %327 = arith.divf %325, %326 : vector<48x1xf32>
    %328 = vector.broadcast %320 : vector<48x1xf32> to vector<48x128xf32>
    %329 = arith.subf %314, %328 : vector<48x128xf32>
    %cst_92 = arith.constant 9.99999974E-6 : f32
    %330 = vector.broadcast %cst_92 : f32 to vector<48x1xf32>
    %331 = arith.addf %327, %330 : vector<48x1xf32>
    %332 = math.rsqrt %331 : vector<48x1xf32>
    %333 = vector.broadcast %332 : vector<48x1xf32> to vector<48x128xf32>
    %334 = arith.mulf %329, %333 : vector<48x128xf32>
    %335 = vector.broadcast %315 : vector<1x128xf32> to vector<48x128xf32>
    %336 = arith.mulf %334, %335 : vector<48x128xf32>
    %337 = vector.broadcast %316 : vector<1x128xf32> to vector<48x128xf32>
    %338 = arith.addf %336, %337 : vector<48x128xf32>
    %339 = arith.truncf %338 : vector<48x128xf32> to vector<48x128xbf16>
    %c1_93 = arith.constant 1 : index
    %c0_94 = arith.constant 0 : index
    %c0_95 = arith.constant 0 : index
    %340 = vector.load %arg5[%c1_93, %c0_94, %c0_95] : memref<2x128x512xbf16, #tpu.memory_space<vmem>>, vector<1x128x512xbf16>
    %341 = vector.shape_cast %340 : vector<1x128x512xbf16> to vector<128x512xbf16>
    %cst_96 = arith.constant dense<0.000000e+00> : vector<48x512xf32>
    %342 = tpu.matmul %339, %341, %cst_96 {dimension_numbers = #tpu.dot_dimension_numbers<[1], [0], [0], [1], [0, 0, 1, 1], [], []>} : vector<48x128xbf16>, vector<128x512xbf16>, vector<48x512xf32> -> vector<48x512xf32>
    %c1_97 = arith.constant 1 : index
    %c0_98 = arith.constant 0 : index
    %c0_99 = arith.constant 0 : index
    %343 = vector.load %arg7[%c1_97, %c0_98, %c0_99] : memref<2x1x512xf32, #tpu.memory_space<vmem>>, vector<1x1x512xf32>
    %344 = vector.shape_cast %343 : vector<1x1x512xf32> to vector<1x512xf32>
    %345 = vector.broadcast %344 : vector<1x512xf32> to vector<48x512xf32>
    %346 = arith.addf %342, %345 : vector<48x512xf32>
    %cst_100 = arith.constant 5.000000e-01 : f32
    %347 = vector.broadcast %cst_100 : f32 to vector<48x512xf32>
    %348 = arith.mulf %347, %346 : vector<48x512xf32>
    %cst_101 = arith.constant 4.471500e-02 : f32
    %349 = vector.broadcast %cst_101 : f32 to vector<48x512xf32>
    %350 = arith.mulf %349, %346 : vector<48x512xf32>
    %351 = arith.mulf %350, %346 : vector<48x512xf32>
    %352 = arith.mulf %351, %346 : vector<48x512xf32>
    %353 = arith.addf %346, %352 : vector<48x512xf32>
    %cst_102 = arith.constant 0.797884583 : f32
    %354 = vector.broadcast %cst_102 : f32 to vector<48x512xf32>
    %355 = arith.mulf %354, %353 : vector<48x512xf32>
    %356 = math.tanh %355 : vector<48x512xf32>
    %cst_103 = arith.constant 1.000000e+00 : f32
    %357 = vector.broadcast %cst_103 : f32 to vector<48x512xf32>
    %358 = arith.addf %357, %356 : vector<48x512xf32>
    %359 = arith.mulf %348, %358 : vector<48x512xf32>
    %360 = arith.truncf %359 : vector<48x512xf32> to vector<48x512xbf16>
    %c1_104 = arith.constant 1 : index
    %c0_105 = arith.constant 0 : index
    %c0_106 = arith.constant 0 : index
    %361 = vector.load %arg6[%c1_104, %c0_105, %c0_106] : memref<2x512x128xbf16, #tpu.memory_space<vmem>>, vector<1x512x128xbf16>
    %362 = vector.shape_cast %361 : vector<1x512x128xbf16> to vector<512x128xbf16>
    %cst_107 = arith.constant dense<0.000000e+00> : vector<48x128xf32>
    %363 = tpu.matmul %360, %362, %cst_107 {dimension_numbers = #tpu.dot_dimension_numbers<[1], [0], [0], [1], [0, 0, 1, 1], [], []>} : vector<48x512xbf16>, vector<512x128xbf16>, vector<48x128xf32> -> vector<48x128xf32>
    %364 = vector.extract_strided_slice %198 {offsets = [4, 0], sizes = [1, 128], strides = [1, 1]} : vector<9x128xf32> to vector<1x128xf32>
    %365 = vector.broadcast %364 : vector<1x128xf32> to vector<48x128xf32>
    %366 = arith.addf %363, %365 : vector<48x128xf32>
    %367 = arith.addf %338, %366 : vector<48x128xf32>
    %368 = vector.extract_strided_slice %198 {offsets = [7, 0], sizes = [1, 128], strides = [1, 1]} : vector<9x128xf32> to vector<1x128xf32>
    %369 = vector.extract_strided_slice %198 {offsets = [8, 0], sizes = [1, 128], strides = [1, 1]} : vector<9x128xf32> to vector<1x128xf32>
    %cst_108 = arith.constant dense<0.000000e+00> : vector<48xf32>
    %370 = vector.multi_reduction <add>, %367, %cst_108 [1] : vector<48x128xf32> to vector<48xf32>
    %371 = vector.shape_cast %370 : vector<48xf32> to vector<48x1xf32>
    %cst_109 = arith.constant 1.280000e+02 : f32
    %372 = vector.broadcast %cst_109 : f32 to vector<48x1xf32>
    %373 = arith.divf %371, %372 : vector<48x1xf32>
    %374 = vector.broadcast %373 : vector<48x1xf32> to vector<48x128xf32>
    %375 = arith.subf %367, %374 : vector<48x128xf32>
    %376 = arith.mulf %375, %375 : vector<48x128xf32>
    %cst_110 = arith.constant dense<0.000000e+00> : vector<48xf32>
    %377 = vector.multi_reduction <add>, %376, %cst_110 [1] : vector<48x128xf32> to vector<48xf32>
    %378 = vector.shape_cast %377 : vector<48xf32> to vector<48x1xf32>
    %cst_111 = arith.constant 1.280000e+02 : f32
    %379 = vector.broadcast %cst_111 : f32 to vector<48x1xf32>
    %380 = arith.divf %378, %379 : vector<48x1xf32>
    %381 = vector.broadcast %373 : vector<48x1xf32> to vector<48x128xf32>
    %382 = arith.subf %367, %381 : vector<48x128xf32>
    %cst_112 = arith.constant 9.99999974E-6 : f32
    %383 = vector.broadcast %cst_112 : f32 to vector<48x1xf32>
    %384 = arith.addf %380, %383 : vector<48x1xf32>
    %385 = math.rsqrt %384 : vector<48x1xf32>
    %386 = vector.broadcast %385 : vector<48x1xf32> to vector<48x128xf32>
    %387 = arith.mulf %382, %386 : vector<48x128xf32>
    %388 = vector.broadcast %368 : vector<1x128xf32> to vector<48x128xf32>
    %389 = arith.mulf %387, %388 : vector<48x128xf32>
    %390 = vector.broadcast %369 : vector<1x128xf32> to vector<48x128xf32>
    %391 = arith.addf %389, %390 : vector<48x128xf32>
    %c0_113 = arith.constant 0 : index
    %c0_114 = arith.constant 0 : index
    %392 = vector.load %arg9[%c0_113, %c0_114] : memref<48x128xf32, #tpu.memory_space<vmem>>, vector<48x128xf32>
    tpu.vector_store %arg9[%c0_113, %c0_114], %391 {strides = array<i32>} : memref<48x128xf32, #tpu.memory_space<vmem>>, vector<48x128xf32>,
    return
  }
  func.func @transform_0(%arg0: i32) -> (i32, i32) {
    %c0_i32 = arith.constant 0 : i32
    %c0_i32_0 = arith.constant 0 : i32
    %c0_i32_1 = arith.constant 0 : i32
    return %c0_i32, %c0_i32_0 : i32, i32
  }
  func.func @transform_1(%arg0: i32) -> (i32, i32) {
    %c0_i32 = arith.constant 0 : i32
    %c0_i32_0 = arith.constant 0 : i32
    %c0_i32_1 = arith.constant 0 : i32
    return %c0_i32, %c0_i32_0 : i32, i32
  }
  func.func @transform_2(%arg0: i32) -> (i32, i32, i32) {
    %c0_i32 = arith.constant 0 : i32
    %c0_i32_0 = arith.constant 0 : i32
    %c0_i32_1 = arith.constant 0 : i32
    %c0_i32_2 = arith.constant 0 : i32
    return %c0_i32, %c0_i32_0, %c0_i32_1 : i32, i32, i32
  }
  func.func @transform_3(%arg0: i32) -> (i32, i32, i32) {
    %c0_i32 = arith.constant 0 : i32
    %c0_i32_0 = arith.constant 0 : i32
    %c0_i32_1 = arith.constant 0 : i32
    %c0_i32_2 = arith.constant 0 : i32
    return %c0_i32, %c0_i32_0, %c0_i32_1 : i32, i32, i32
  }
  func.func @transform_4(%arg0: i32) -> (i32, i32, i32) {
    %c0_i32 = arith.constant 0 : i32
    %c0_i32_0 = arith.constant 0 : i32
    %c0_i32_1 = arith.constant 0 : i32
    %c0_i32_2 = arith.constant 0 : i32
    return %c0_i32, %c0_i32_0, %c0_i32_1 : i32, i32, i32
  }
  func.func @transform_5(%arg0: i32) -> (i32, i32, i32) {
    %c0_i32 = arith.constant 0 : i32
    %c0_i32_0 = arith.constant 0 : i32
    %c0_i32_1 = arith.constant 0 : i32
    %c0_i32_2 = arith.constant 0 : i32
    return %c0_i32, %c0_i32_0, %c0_i32_1 : i32, i32, i32
  }
  func.func @transform_6(%arg0: i32) -> (i32, i32, i32) {
    %c0_i32 = arith.constant 0 : i32
    %c0_i32_0 = arith.constant 0 : i32
    %c0_i32_1 = arith.constant 0 : i32
    %c0_i32_2 = arith.constant 0 : i32
    return %c0_i32, %c0_i32_0, %c0_i32_1 : i32, i32, i32
  }
  func.func @transform_7(%arg0: i32) -> (i32, i32, i32) {
    %c0_i32 = arith.constant 0 : i32
    %c0_i32_0 = arith.constant 0 : i32
    %c0_i32_1 = arith.constant 0 : i32
    %c0_i32_2 = arith.constant 0 : i32
    return %c0_i32, %c0_i32_0, %c0_i32_1 : i32, i32, i32
  }
  func.func @transform_8(%arg0: i32) -> (i32, i32) {
    %c0_i32 = arith.constant 0 : i32
    %c0_i32_0 = arith.constant 0 : i32
    %c0_i32_1 = arith.constant 0 : i32
    return %c0_i32, %c0_i32_0 : i32, i32
  }
}

</mosaic_0001>

<llo_original>
// kernel: tile.9
$region0: #{tile.9}
  %s0 = inlined_call_operand.vmem [shape: f32[2,1,24,4,32], index: 0, kind: input, shape index: {}]
  %s1 = inlined_call_operand.vmem [shape: f32[48,128], index: 1, kind: output, shape index: {}]
  $region1: #{tile.9} parent=0
    #allocation0 [shape = 'u8[196608]{0}', space=vmem, size = 0x30000, scoped, tag = 'scoped mem for input reshape']
    %s3 = ssub.s32 16, 1
    %s4 = scalar_lea.vmem %s0, 188
    %v5 = vld [vmem:[%s4] sm:%s3]
    %s6 = scalar_lea.vmem [#allocation0], 376
    %7 = vst [vmem:[%s6] sm:%s3] %v5
    %s8 = scalar_lea.vmem %s0, 184
    %v9 = vld [vmem:[%s8] sm:%s3]
    %s10 = scalar_lea.vmem [#allocation0], 368
    %11 = vst [vmem:[%s10] sm:%s3] %v9
    %s12 = scalar_lea.vmem %s0, 180
    %v13 = vld [vmem:[%s12] sm:%s3]
    %s14 = scalar_lea.vmem [#allocation0], 360
    %15 = vst [vmem:[%s14] sm:%s3] %v13
    %s16 = scalar_lea.vmem %s0, 176
    %v17 = vld [vmem:[%s16] sm:%s3]
    %s18 = scalar_lea.vmem [#allocation0], 352
    %19 = vst [vmem:[%s18] sm:%s3] %v17
    %s20 = scalar_lea.vmem %s0, 172
    %v21 = vld [vmem:[%s20] sm:%s3]
    %s22 = scalar_lea.vmem [#allocation0], 344
    %23 = vst [vmem:[%s22] sm:%s3] %v21
    %s24 = scalar_lea.vmem %s0, 168
    %v25 = vld [vmem:[%s24] sm:%s3]
    %s26 = scalar_lea.vmem [#allocation0], 336
    %27 = vst [vmem:[%s26] sm:%s3] %v25
    %s28 = scalar_lea.vmem %s0, 164
    %v29 = vld [vmem:[%s28] sm:%s3]
    %s30 = scalar_lea.vmem [#allocation0], 328
    %31 = vst [vmem:[%s30] sm:%s3] %v29
    %s32 = scalar_lea.vmem %s0, 160
    %v33 = vld [vmem:[%s32] sm:%s3]
    %s34 = scalar_lea.vmem [#allocation0], 320
    %35 = vst [vmem:[%s34] sm:%s3] %v33
    %s36 = scalar_lea.vmem %s0, 156
    %v37 = vld [vmem:[%s36] sm:%s3]
    %s38 = scalar_lea.vmem [#allocation0], 312
    %39 = vst [vmem:[%s38] sm:%s3] %v37
    %s40 = scalar_lea.vmem %s0, 152
    %v41 = vld [vmem:[%s40] sm:%s3]
    %s42 = scalar_lea.vmem [#allocation0], 304
    %43 = vst [vmem:[%s42] sm:%s3] %v41
    %s44 = scalar_lea.vmem %s0, 148
    %v45 = vld [vmem:[%s44] sm:%s3]
    %s46 = scalar_lea.vmem [#allocation0], 296
    %47 = vst [vmem:[%s46] sm:%s3] %v45
    %s48 = scalar_lea.vmem %s0, 144
    %v49 = vld [vmem:[%s48] sm:%s3]
    %s50 = scalar_lea.vmem [#allocation0], 288
    %51 = vst [vmem:[%s50] sm:%s3] %v49
    %s52 = scalar_lea.vmem %s0, 140
    %v53 = vld [vmem:[%s52] sm:%s3]
    %s54 = scalar_lea.vmem [#allocation0], 280
    %55 = vst [vmem:[%s54] sm:%s3] %v53
    %s56 = scalar_lea.vmem %s0, 136
    %v57 = vld [vmem:[%s56] sm:%s3]
    %s58 = scalar_lea.vmem [#allocation0], 272
    %59 = vst [vmem:[%s58] sm:%s3] %v57
    %s60 = scalar_lea.vmem %s0, 132
    %v61 = vld [vmem:[%s60] sm:%s3]
    %s62 = scalar_lea.vmem [#allocation0], 264
    %63 = vst [vmem:[%s62] sm:%s3] %v61
    %s64 = scalar_lea.vmem %s0, 128
    %v65 = vld [vmem:[%s64] sm:%s3]
    %s66 = scalar_lea.vmem [#allocation0], 256
    %67 = vst [vmem:[%s66] sm:%s3] %v65
    %s68 = scalar_lea.vmem %s0, 124
    %v69 = vld [vmem:[%s68] sm:%s3]
    %s70 = scalar_lea.vmem [#allocation0], 248
    %71 = vst [vmem:[%s70] sm:%s3] %v69
    %s72 = scalar_lea.vmem %s0, 120
    %v73 = vld [vmem:[%s72] sm:%s3]
    %s74 = scalar_lea.vmem [#allocation0], 240
    %75 = vst [vmem:[%s74] sm:%s3] %v73
    %s76 = scalar_lea.vmem %s0, 116
    %v77 = vld [vmem:[%s76] sm:%s3]
    %s78 = scalar_lea.vmem [#allocation0], 232
    %79 = vst [vmem:[%s78] sm:%s3] %v77
    %s80 = scalar_lea.vmem %s0, 112
    %v81 = vld [vmem:[%s80] sm:%s3]
    %s82 = scalar_lea.vmem [#allocation0], 224
    %83 = vst [vmem:[%s82] sm:%s3] %v81
    %s84 = scalar_lea.vmem %s0, 108
    %v85 = vld [vmem:[%s84] sm:%s3]
    %s86 = scalar_lea.vmem [#allocation0], 216
    %87 = vst [vmem:[%s86] sm:%s3] %v85
    %s88 = scalar_lea.vmem %s0, 104
    %v89 = vld [vmem:[%s88] sm:%s3]
    %s90 = scalar_lea.vmem [#allocation0], 208
    %91 = vst [vmem:[%s90] sm:%s3] %v89
    %s92 = scalar_lea.vmem %s0, 100
    %v93 = vld [vmem:[%s92] sm:%s3]
    %s94 = scalar_lea.vmem [#allocation0], 200
    %95 = vst [vmem:[%s94] sm:%s3] %v93
    %s96 = scalar_lea.vmem %s0, 96
    %v97 = vld [vmem:[%s96] sm:%s3]
    %s98 = scalar_lea.vmem [#allocation0], 192
    %99 = vst [vmem:[%s98] sm:%s3] %v97
    %s100 = scalar_lea.vmem %s0, 92
    %v101 = vld [vmem:[%s100] sm:%s3]
    %s102 = scalar_lea.vmem [#allocation0], 184
    %103 = vst [vmem:[%s102] sm:%s3] %v101
    %s104 = scalar_lea.vmem %s0, 88
    %v105 = vld [vmem:[%s104] sm:%s3]
    %s106 = scalar_lea.vmem [#allocation0], 176
    %107 = vst [vmem:[%s106] sm:%s3] %v105
    %s108 = scalar_lea.vmem %s0, 84
    %v109 = vld [vmem:[%s108] sm:%s3]
    %s110 = scalar_lea.vmem [#allocation0], 168
    %111 = vst [vmem:[%s110] sm:%s3] %v109
    %s112 = scalar_lea.vmem %s0, 80
    %v113 = vld [vmem:[%s112] sm:%s3]
    %s114 = scalar_lea.vmem [#allocation0], 160
    %115 = vst [vmem:[%s114] sm:%s3] %v113
    %s116 = scalar_lea.vmem %s0, 76
    %v117 = vld [vmem:[%s116] sm:%s3]
    %s118 = scalar_lea.vmem [#allocation0], 152
    %119 = vst [vmem:[%s118] sm:%s3] %v117
    %s120 = scalar_lea.vmem %s0, 72
    %v121 = vld [vmem:[%s120] sm:%s3]
    %s122 = scalar_lea.vmem [#allocation0], 144
    %123 = vst [vmem:[%s122] sm:%s3] %v121
    %s124 = scalar_lea.vmem %s0, 68
    %v125 = vld [vmem:[%s124] sm:%s3]
    %s126 = scalar_lea.vmem [#allocation0], 136
    %127 = vst [vmem:[%s126] sm:%s3] %v125
    %s128 = scalar_lea.vmem %s0, 64
    %v129 = vld [vmem:[%s128] sm:%s3]
    %s130 = scalar_lea.vmem [#allocation0], 128
    %131 = vst [vmem:[%s130] sm:%s3] %v129
    %s132 = scalar_lea.vmem %s0, 60
    %v133 = vld [vmem:[%s132] sm:%s3]
    %s134 = scalar_lea.vmem [#allocation0], 120
    %135 = vst [vmem:[%s134] sm:%s3] %v133
    %s136 = scalar_lea.vmem %s0, 56
    %v137 = vld [vmem:[%s136] sm:%s3]
    %s138 = scalar_lea.vmem [#allocation0], 112
    %139 = vst [vmem:[%s138] sm:%s3] %v137
    %s140 = scalar_lea.vmem %s0, 52
    %v141 = vld [vmem:[%s140] sm:%s3]
    %s142 = scalar_lea.vmem [#allocation0], 104
    %143 = vst [vmem:[%s142] sm:%s3] %v141
    %s144 = scalar_lea.vmem %s0, 48
    %v145 = vld [vmem:[%s144] sm:%s3]
    %s146 = scalar_lea.vmem [#allocation0], 96
    %147 = vst [vmem:[%s146] sm:%s3] %v145
    %s148 = scalar_lea.vmem %s0, 44
    %v149 = vld [vmem:[%s148] sm:%s3]
    %s150 = scalar_lea.vmem [#allocation0], 88
    %151 = vst [vmem:[%s150] sm:%s3] %v149
    %s152 = scalar_lea.vmem %s0, 40
    %v153 = vld [vmem:[%s152] sm:%s3]
    %s154 = scalar_lea.vmem [#allocation0], 80
    %155 = vst [vmem:[%s154] sm:%s3] %v153
    %s156 = scalar_lea.vmem %s0, 36
    %v157 = vld [vmem:[%s156] sm:%s3]
    %s158 = scalar_lea.vmem [#allocation0], 72
    %159 = vst [vmem:[%s158] sm:%s3] %v157
    %s160 = scalar_lea.vmem %s0, 32
    %v161 = vld [vmem:[%s160] sm:%s3]
    %s162 = scalar_lea.vmem [#allocation0], 64
    %163 = vst [vmem:[%s162] sm:%s3] %v161
    %s164 = scalar_lea.vmem %s0, 28
    %v165 = vld [vmem:[%s164] sm:%s3]
    %s166 = scalar_lea.vmem [#allocation0], 56
    %167 = vst [vmem:[%s166] sm:%s3] %v165
    %s168 = scalar_lea.vmem %s0, 24
    %v169 = vld [vmem:[%s168] sm:%s3]
    %s170 = scalar_lea.vmem [#allocation0], 48
    %171 = vst [vmem:[%s170] sm:%s3] %v169
    %s172 = scalar_lea.vmem %s0, 20
    %v173 = vld [vmem:[%s172] sm:%s3]
    %s174 = scalar_lea.vmem [#allocation0], 40
    %175 = vst [vmem:[%s174] sm:%s3] %v173
    %s176 = scalar_lea.vmem %s0, 16
    %v177 = vld [vmem:[%s176] sm:%s3]
    %s178 = scalar_lea.vmem [#allocation0], 32
    %179 = vst [vmem:[%s178] sm:%s3] %v177
    %s180 = scalar_lea.vmem %s0, 12
    %v181 = vld [vmem:[%s180] sm:%s3]
    %s182 = scalar_lea.vmem [#allocation0], 24
    %183 = vst [vmem:[%s182] sm:%s3] %v181
    %s184 = scalar_lea.vmem %s0, 8
    %v185 = vld [vmem:[%s184] sm:%s3]
    %s186 = scalar_lea.vmem [#allocation0], 16
    %187 = vst [vmem:[%s186] sm:%s3] %v185
    %s188 = scalar_lea.vmem %s0, 4
    %v189 = vld [vmem:[%s188] sm:%s3]
    %s190 = scalar_lea.vmem [#allocation0], 8
    %191 = vst [vmem:[%s190] sm:%s3] %v189
    %v192 = vld [vmem:[%s0] sm:%s3]
    %193 = vst [vmem:[#allocation0] sm:%s3] %v192
    %v194 = vld [vmem:[#allocation0] ss:$8 sm:$0xf]
    %v195 = vld [vmem:[#allocation0] ss:$8 sm:$0xf0]
    %vm196 = vcmask 1047556
    %v197 = vsel %vm196, %v195, %v194
    %vm198 = vcmask 261120
    %199 = vst.msk [vmem:[%s1] sm:$0xff] %vm198, %v197
    %s200 = scalar_lea.vmem [#allocation0], 64
    %v201 = vld [vmem:[%s200] ss:$8 sm:$0xf]
    %s202 = scalar_lea.vmem [#allocation0], 64
    %v203 = vld [vmem:[%s202] ss:$8 sm:$0xf0]
    %vm204 = vcmask 1047556
    %v205 = vsel %vm204, %v203, %v201
    %vm206 = vcmask 261120
    %s207 = scalar_lea.vmem %s1, 8
    %208 = vst.msk [vmem:[%s207] sm:$0xff] %vm206, %v205
    %s209 = scalar_lea.vmem [#allocation0], 128
    %v210 = vld [vmem:[%s209] ss:$8 sm:$0xf]
    %s211 = scalar_lea.vmem [#allocation0], 128
    %v212 = vld [vmem:[%s211] ss:$8 sm:$0xf0]
    %vm213 = vcmask 1047556
    %v214 = vsel %vm213, %v212, %v210
    %vm215 = vcmask 261120
    %s216 = scalar_lea.vmem %s1, 16
    %217 = vst.msk [vmem:[%s216] sm:$0xff] %vm215, %v214
    %s218 = scalar_lea.vmem [#allocation0], 192
    %v219 = vld [vmem:[%s218] ss:$8 sm:$0xf]
    %s220 = scalar_lea.vmem [#allocation0], 192
    %v221 = vld [vmem:[%s220] ss:$8 sm:$0xf0]
    %vm222 = vcmask 1047556
    %v223 = vsel %vm222, %v221, %v219
    %vm224 = vcmask 261120
    %s225 = scalar_lea.vmem %s1, 24
    %226 = vst.msk [vmem:[%s225] sm:$0xff] %vm224, %v223
    %s227 = scalar_lea.vmem [#allocation0], 256
    %v228 = vld [vmem:[%s227] ss:$8 sm:$0xf]
    %s229 = scalar_lea.vmem [#allocation0], 256
    %v230 = vld [vmem:[%s229] ss:$8 sm:$0xf0]
    %vm231 = vcmask 1047556
    %v232 = vsel %vm231, %v230, %v228
    %vm233 = vcmask 261120
    %s234 = scalar_lea.vmem %s1, 32
    %235 = vst.msk [vmem:[%s234] sm:$0xff] %vm233, %v232
    %s236 = scalar_lea.vmem [#allocation0], 320
    %v237 = vld [vmem:[%s236] ss:$8 sm:$0xf]
    %s238 = scalar_lea.vmem [#allocation0], 320
    %v239 = vld [vmem:[%s238] ss:$8 sm:$0xf0]
    %vm240 = vcmask 1047556
    %v241 = vsel %vm240, %v239, %v237
    %vm242 = vcmask 261120
    %s243 = scalar_lea.vmem %s1, 40
    %244 = vst.msk [vmem:[%s243] sm:$0xff] %vm242, %v241
    %s245 = scalar_lea.vmem [#allocation0], 3
    %v246 = vld [vmem:[%s245] ss:$8 sm:$0xf]
    %s247 = scalar_lea.vmem [#allocation0], 3
    %v248 = vld [vmem:[%s247] ss:$8 sm:$0xf0]
    %vm249 = vcmask 1047556
    %v250 = vsel %vm249, %v248, %v246
    %251 = vrot.lane.b32.xlu0 %v250, 96
    %v252 = vpop.permute.xlu0 %251
    %vm253 = vcmask 1048320
    %254 = vst.msk [vmem:[%s1] sm:$0xff] %vm253, %v252
    %s255 = scalar_lea.vmem [#allocation0], 259
    %v256 = vld [vmem:[%s255] ss:$8 sm:$0xf]
    %s257 = scalar_lea.vmem [#allocation0], 259
    %v258 = vld [vmem:[%s257] ss:$8 sm:$0xf0]
    %vm259 = vcmask 1047556
    %v260 = vsel %vm259, %v258, %v256
    %261 = vrot.lane.b32.xlu0 %v260, 96
    %v262 = vpop.permute.xlu0 %261
    %vm263 = vcmask 1048320
    %s264 = scalar_lea.vmem %s1, 32
    %265 = vst.msk [vmem:[%s264] sm:$0xff] %vm263, %v262
    %s266 = scalar_lea.vmem [#allocation0], 67
    %v267 = vld [vmem:[%s266] ss:$8 sm:$0xf]
    %s268 = scalar_lea.vmem [#allocation0], 67
    %v269 = vld [vmem:[%s268] ss:$8 sm:$0xf0]
    %vm270 = vcmask 1047556
    %v271 = vsel %vm270, %v269, %v267
    %272 = vrot.lane.b32.xlu0 %v271, 96
    %v273 = vpop.permute.xlu0 %272
    %vm274 = vcmask 1048320
    %s275 = scalar_lea.vmem %s1, 8
    %276 = vst.msk [vmem:[%s275] sm:$0xff] %vm274, %v273
    %s277 = scalar_lea.vmem [#allocation0], 323
    %v278 = vld [vmem:[%s277] ss:$8 sm:$0xf]
    %s279 = scalar_lea.vmem [#allocation0], 323
    %v280 = vld [vmem:[%s279] ss:$8 sm:$0xf0]
    %vm281 = vcmask 1047556
    %v282 = vsel %vm281, %v280, %v278
    %283 = vrot.lane.b32.xlu0 %v282, 96
    %v284 = vpop.permute.xlu0 %283
    %vm285 = vcmask 1048320
    %s286 = scalar_lea.vmem %s1, 40
    %287 = vst.msk [vmem:[%s286] sm:$0xff] %vm285, %v284
    %s288 = scalar_lea.vmem [#allocation0], 131
    %v289 = vld [vmem:[%s288] ss:$8 sm:$0xf]
    %s290 = scalar_lea.vmem [#allocation0], 131
    %v291 = vld [vmem:[%s290] ss:$8 sm:$0xf0]
    %vm292 = vcmask 1047556
    %v293 = vsel %vm292, %v291, %v289
    %294 = vrot.lane.b32.xlu0 %v293, 96
    %v295 = vpop.permute.xlu0 %294
    %vm296 = vcmask 1048320
    %s297 = scalar_lea.vmem %s1, 16
    %298 = vst.msk [vmem:[%s297] sm:$0xff] %vm296, %v295
    %s299 = scalar_lea.vmem [#allocation0], 195
    %v300 = vld [vmem:[%s299] ss:$8 sm:$0xf]
    %s301 = scalar_lea.vmem [#allocation0], 195
    %v302 = vld [vmem:[%s301] ss:$8 sm:$0xf0]
    %vm303 = vcmask 1047556
    %v304 = vsel %vm303, %v302, %v300
    %305 = vrot.lane.b32.xlu0 %v304, 96
    %v306 = vpop.permute.xlu0 %305
    %vm307 = vcmask 1048320
    %s308 = scalar_lea.vmem %s1, 24
    %309 = vst.msk [vmem:[%s308] sm:$0xff] %vm307, %v306
    %s310 = scalar_lea.vmem [#allocation0], 2
    %v311 = vld [vmem:[%s310] ss:$8 sm:$0xf]
    %s312 = scalar_lea.vmem [#allocation0], 2
    %v313 = vld [vmem:[%s312] ss:$8 sm:$0xf0]
    %vm314 = vcmask 1047556
    %v315 = vsel %vm314, %v313, %v311
    %316 = vrot.lane.b32.xlu0 %v315, 64
    %v317 = vpop.permute.xlu0 %316
    %vm318 = vcmask 785920
    %319 = vst.msk [vmem:[%s1] sm:$0xff] %vm318, %v317
    %s320 = scalar_lea.vmem [#allocation0], 258
    %v321 = vld [vmem:[%s320] ss:$8 sm:$0xf]
    %s322 = scalar_lea.vmem [#allocation0], 258
    %v323 = vld [vmem:[%s322] ss:$8 sm:$0xf0]
    %vm324 = vcmask 1047556
    %v325 = vsel %vm324, %v323, %v321
    %326 = vrot.lane.b32.xlu0 %v325, 64
    %v327 = vpop.permute.xlu0 %326
    %vm328 = vcmask 785920
    %s329 = scalar_lea.vmem %s1, 32
    %330 = vst.msk [vmem:[%s329] sm:$0xff] %vm328, %v327
    %s331 = scalar_lea.vmem [#allocation0], 66
    %v332 = vld [vmem:[%s331] ss:$8 sm:$0xf]
    %s333 = scalar_lea.vmem [#allocation0], 66
    %v334 = vld [vmem:[%s333] ss:$8 sm:$0xf0]
    %vm335 = vcmask 1047556
    %v336 = vsel %vm335, %v334, %v332
    %337 = vrot.lane.b32.xlu0 %v336, 64
    %v338 = vpop.permute.xlu0 %337
    %vm339 = vcmask 785920
    %s340 = scalar_lea.vmem %s1, 8
    %341 = vst.msk [vmem:[%s340] sm:$0xff] %vm339, %v338
    %s342 = scalar_lea.vmem [#allocation0], 322
    %v343 = vld [vmem:[%s342] ss:$8 sm:$0xf]
    %s344 = scalar_lea.vmem [#allocation0], 322
    %v345 = vld [vmem:[%s344] ss:$8 sm:$0xf0]
    %vm346 = vcmask 1047556
    %v347 = vsel %vm346, %v345, %v343
    %348 = vrot.lane.b32.xlu0 %v347, 64
    %v349 = vpop.permute.xlu0 %348
    %vm350 = vcmask 785920
    %s351 = scalar_lea.vmem %s1, 40
    %352 = vst.msk [vmem:[%s351] sm:$0xff] %vm350, %v349
    %s353 = scalar_lea.vmem [#allocation0], 130
    %v354 = vld [vmem:[%s353] ss:$8 sm:$0xf]
    %s355 = scalar_lea.vmem [#allocation0], 130
    %v356 = vld [vmem:[%s355] ss:$8 sm:$0xf0]
    %vm357 = vcmask 1047556
    %v358 = vsel %vm357, %v356, %v354
    %359 = vrot.lane.b32.xlu0 %v358, 64
    %v360 = vpop.permute.xlu0 %359
    %vm361 = vcmask 785920
    %s362 = scalar_lea.vmem %s1, 16
    %363 = vst.msk [vmem:[%s362] sm:$0xff] %vm361, %v360
    %s364 = scalar_lea.vmem [#allocation0], 194
    %v365 = vld [vmem:[%s364] ss:$8 sm:$0xf]
    %s366 = scalar_lea.vmem [#allocation0], 194
    %v367 = vld [vmem:[%s366] ss:$8 sm:$0xf0]
    %vm368 = vcmask 1047556
    %v369 = vsel %vm368, %v367, %v365
    %370 = vrot.lane.b32.xlu0 %v369, 64
    %v371 = vpop.permute.xlu0 %370
    %vm372 = vcmask 785920
    %s373 = scalar_lea.vmem %s1, 24
    %374 = vst.msk [vmem:[%s373] sm:$0xff] %vm372, %v371
    %s375 = scalar_lea.vmem [#allocation0], 1
    %v376 = vld [vmem:[%s375] ss:$8 sm:$0xf]
    %s377 = scalar_lea.vmem [#allocation0], 1
    %v378 = vld [vmem:[%s377] ss:$8 sm:$0xf0]
    %vm379 = vcmask 1047556
    %v380 = vsel %vm379, %v378, %v376
    %381 = vrot.lane.b32.xlu0 %v380, 32
    %v382 = vpop.permute.xlu0 %381
    %vm383 = vcmask 523520
    %384 = vst.msk [vmem:[%s1] sm:$0xff] %vm383, %v382
    %s385 = scalar_lea.vmem [#allocation0], 257
    %v386 = vld [vmem:[%s385] ss:$8 sm:$0xf]
    %s387 = scalar_lea.vmem [#allocation0], 257
    %v388 = vld [vmem:[%s387] ss:$8 sm:$0xf0]
    %vm389 = vcmask 1047556
    %v390 = vsel %vm389, %v388, %v386
    %391 = vrot.lane.b32.xlu0 %v390, 32
    %v392 = vpop.permute.xlu0 %391
    %vm393 = vcmask 523520
    %s394 = scalar_lea.vmem %s1, 32
    %395 = vst.msk [vmem:[%s394] sm:$0xff] %vm393, %v392
    %s396 = scalar_lea.vmem [#allocation0], 65
    %v397 = vld [vmem:[%s396] ss:$8 sm:$0xf]
    %s398 = scalar_lea.vmem [#allocation0], 65
    %v399 = vld [vmem:[%s398] ss:$8 sm:$0xf0]
    %vm400 = vcmask 1047556
    %v401 = vsel %vm400, %v399, %v397
    %402 = vrot.lane.b32.xlu0 %v401, 32
    %v403 = vpop.permute.xlu0 %402
    %vm404 = vcmask 523520
    %s405 = scalar_lea.vmem %s1, 8
    %406 = vst.msk [vmem:[%s405] sm:$0xff] %vm404, %v403
    %s407 = scalar_lea.vmem [#allocation0], 321
    %v408 = vld [vmem:[%s407] ss:$8 sm:$0xf]
    %s409 = scalar_lea.vmem [#allocation0], 321
    %v410 = vld [vmem:[%s409] ss:$8 sm:$0xf0]
    %vm411 = vcmask 1047556
    %v412 = vsel %vm411, %v410, %v408
    %413 = vrot.lane.b32.xlu0 %v412, 32
    %v414 = vpop.permute.xlu0 %413
    %vm415 = vcmask 523520
    %s416 = scalar_lea.vmem %s1, 40
    %417 = vst.msk [vmem:[%s416] sm:$0xff] %vm415, %v414
    %s418 = scalar_lea.vmem [#allocation0], 129
    %v419 = vld [vmem:[%s418] ss:$8 sm:$0xf]
    %s420 = scalar_lea.vmem [#allocation0], 129
    %v421 = vld [vmem:[%s420] ss:$8 sm:$0xf0]
    %vm422 = vcmask 1047556
    %v423 = vsel %vm422, %v421, %v419
    %424 = vrot.lane.b32.xlu0 %v423, 32
    %v425 = vpop.permute.xlu0 %424
    %vm426 = vcmask 523520
    %s427 = scalar_lea.vmem %s1, 16
    %428 = vst.msk [vmem:[%s427] sm:$0xff] %vm426, %v425
    %s429 = scalar_lea.vmem [#allocation0], 193
    %v430 = vld [vmem:[%s429] ss:$8 sm:$0xf]
    %s431 = scalar_lea.vmem [#allocation0], 193
    %v432 = vld [vmem:[%s431] ss:$8 sm:$0xf0]
    %vm433 = vcmask 1047556
    %v434 = vsel %vm433, %v432, %v430
    %435 = vrot.lane.b32.xlu0 %v434, 32
    %v436 = vpop.permute.xlu0 %435
    %vm437 = vcmask 523520
    %s438 = scalar_lea.vmem %s1, 24
    %439 = vst.msk [vmem:[%s438] sm:$0xff] %vm437, %v436

// kernel: forward.1
$region0: #{forward.1}
  #allocation0 [shape = 'u32[]', space=smem, size = 0x4, offset = 0x4, fixed_abs, tag = 'smem constant byte address 0x4 - core index']
  #allocation1 [shape = 'u32[72,128]{1,0:T(1,128)}', space=vmem, size = 0x9000, scoped, tag = 'internal scratch']
  %s0 = inlined_call_operand.vmem [shape: f32[48,128], index: 0, kind: input, shape index: {}]
  %s1 = inlined_call_operand.vmem [shape: f32[48,48], index: 1, kind: input, shape index: {}]
  %s2 = inlined_call_operand.hbm [shape: bf16[2,128,384], index: 2, kind: input, shape index: {}]
  %s3 = inlined_call_operand.vmem [shape: bf16[2,128,128], index: 3, kind: input, shape index: {}]
  %s4 = inlined_call_operand.vmem [shape: bf16[2,128,512], index: 4, kind: input, shape index: {}]
  %s5 = inlined_call_operand.vmem [shape: bf16[2,512,128], index: 5, kind: input, shape index: {}]
  %s6 = inlined_call_operand.vmem [shape: f32[2,1,512], index: 6, kind: input, shape index: {}]
  %s7 = inlined_call_operand.vmem [shape: f32[2,9,128], index: 7, kind: input, shape index: {}]
  %s8 = inlined_call_operand.vmem [shape: f32[48,128], index: 8, kind: output, shape index: {}]
  %s9 = sld [smem:[#allocation0]]
  $region46: #{forward.1} parent=0
    _
  %s11 = ssub.s32 1, %s9
  %s12 = scalar_select 0, %s11, %s9
  $region1: #{forward.1} parent=0
    #allocation2 [shape = 'u8[196608]{0}', space=vmem, size = 0x30000, scoped, tag = 'input window, operand 2, single buffered']
    #allocation3 [shape = 's32[1]{0}', space=sflag, size = 0x4, scoped, tag = 'scoped memory for forward.1']
    %13 = vsyncpa [#allocation3], 0
    // Predicated region
    $region2: #{forward.1} parent=1 // pred_check
      _
    $region3: #{forward.1} parent=1 // pred_check_branch
      %15 = sbr.rel (0) target = $region5
    $region4: #{forward.1} parent=1 // pred_region
      _
    $region5: #{forward.1} parent=1 // pred_fallthru
      _
    // Predicated region
    $region6: #{forward.1} parent=1 // pred_check
      _
    $region7: #{forward.1} parent=1 // pred_check_branch
      %17 = sbr.rel (0) target = $region9
    $region8: #{forward.1} parent=1 // pred_region
      _
    $region9: #{forward.1} parent=1 // pred_fallthru
      _
    // Predicated region
    $region10: #{forward.1} parent=1 // pred_check
      _
    $region11: #{forward.1} parent=1 // pred_check_branch
      %19 = sbr.rel (0) target = $region13
    $region12: #{forward.1} parent=1 // pred_region
      %21 = vsyncadd [#allocation3], 0
      %s22 = sshll.u32 %s2, 4
      %s23 = int_to_ptr.hbm [resolvable:$true] %s22
      %s24 = sshll.u32 [#allocation2], 4
      %s25 = int_to_ptr.vmem [resolvable:$true] %s24
      %30 = dma.hbm_to_vmem [thread:$0]  %s23, 6144, %s25, [#allocation3], 192, 192, 12
    $region13: #{forward.1} parent=1 // pred_fallthru
      _
    // Predicated region
    $region14: #{forward.1} parent=1 // pred_check
      _
    $region15: #{forward.1} parent=1 // pred_check_branch
      %32 = sbr.rel (0) target = $region17
    $region16: #{forward.1} parent=1 // pred_region
      _
    $region17: #{forward.1} parent=1 // pred_fallthru
      _
    // Predicated region
    $region18: #{forward.1} parent=1 // pred_check
      _
    $region19: #{forward.1} parent=1 // pred_check_branch
      %34 = sbr.rel (0) target = $region21
    $region20: #{forward.1} parent=1 // pred_region
      _
    $region21: #{forward.1} parent=1 // pred_fallthru
      _
    // Predicated region
    $region22: #{forward.1} parent=1 // pred_check
      _
    $region23: #{forward.1} parent=1 // pred_check_branch
      %36 = sbr.rel (0) target = $region25
    $region24: #{forward.1} parent=1 // pred_region
      _
    $region25: #{forward.1} parent=1 // pred_fallthru
      _
    // Predicated region
    $region26: #{forward.1} parent=1 // pred_check
      _
    $region27: #{forward.1} parent=1 // pred_check_branch
      %38 = sbr.rel (0) target = $region29
    $region28: #{forward.1} parent=1 // pred_region
      _
    $region29: #{forward.1} parent=1 // pred_fallthru
      _
    // Predicated region
    $region30: #{forward.1} parent=1 // pred_check
      _
    $region31: #{forward.1} parent=1 // pred_check_branch
      %40 = sbr.rel (0) target = $region33
    $region32: #{forward.1} parent=1 // pred_region
      _
    $region33: #{forward.1} parent=1 // pred_fallthru
      _
    // Predicated region
    $region34: #{forward.1} parent=1 // pred_check
      _
    $region35: #{forward.1} parent=1 // pred_check_branch
      %42 = sbr.rel (0) target = $region37
    $region36: #{forward.1} parent=1 // pred_region
      %44 = dma.done [#allocation3], 6144
    $region37: #{forward.1} parent=1 // pred_fallthru
      _
    %v46 = vld [vmem:[%s0] sm:$0xff]
    %v47 = vld [vmem:[%s0 + $0x8] sm:$0xff]
    %v48 = vld [vmem:[%s0 + $0x10] sm:$0xff]
    %v49 = vld [vmem:[%s0 + $0x18] sm:$0xff]
    %v50 = vld [vmem:[%s0 + $0x20] sm:$0xff]
    %v51 = vld [vmem:[%s0 + $0x28] sm:$0xff]
    %v52 = vld [vmem:[%s1] sm:$0xff]
    %v53 = vld [vmem:[%s1 + $0x8] sm:$0xff]
    %v54 = vld [vmem:[%s1 + $0x10] sm:$0xff]
    %v55 = vld [vmem:[%s1 + $0x18] sm:$0xff]
    %v56 = vld [vmem:[%s1 + $0x20] sm:$0xff]
    %v57 = vld [vmem:[%s1 + $0x28] sm:$0xff]
    %v58 = vld [vmem:[%s7] sm:$0xff]
    %v59 = vld [vmem:[%s7 + $0x8] sm:$0x1]
    %v60 = vpack.c.bf16 %v47, %v46
    %v61 = vpack.c.bf16 %v49, %v48
    %v62 = vpack.c.bf16 %v51, %v50
    %v63 = vld [vmem:[#allocation2] sm:$0xff]
    %v64 = vld [vmem:[#allocation2 + $0x8] sm:$0xf]
    %v65 = vld [vmem:[#allocation2 + $0xc] sm:$0xff]
    %v66 = vld [vmem:[#allocation2 + $0x14] sm:$0xf]
    %v67 = vld [vmem:[#allocation2 + $0x18] sm:$0xff]
    %v68 = vld [vmem:[#allocation2 + $0x20] sm:$0xf]
    %v69 = vld [vmem:[#allocation2 + $0x24] sm:$0xff]
    %v70 = vld [vmem:[#allocation2 + $0x2c] sm:$0xf]
    %v71 = vld [vmem:[#allocation2 + $0x30] sm:$0xff]
    %v72 = vld [vmem:[#allocation2 + $0x38] sm:$0xf]
    %v73 = vld [vmem:[#allocation2 + $0x3c] sm:$0xff]
    %v74 = vld [vmem:[#allocation2 + $0x44] sm:$0xf]
    %v75 = vld [vmem:[#allocation2 + $0x48] sm:$0xff]
    %v76 = vld [vmem:[#allocation2 + $0x50] sm:$0xf]
    %v77 = vld [vmem:[#allocation2 + $0x54] sm:$0xff]
    %v78 = vld [vmem:[#allocation2 + $0x5c] sm:$0xf]
    %v79 = vld [vmem:[#allocation2 + $0x60] sm:$0xff]
    %v80 = vld [vmem:[#allocation2 + $0x68] sm:$0xf]
    %v81 = vld [vmem:[#allocation2 + $0x6c] sm:$0xff]
    %v82 = vld [vmem:[#allocation2 + $0x74] sm:$0xf]
    %v83 = vld [vmem:[#allocation2 + $0x78] sm:$0xff]
    %v84 = vld [vmem:[#allocation2 + $0x80] sm:$0xf]
    %v85 = vld [vmem:[#allocation2 + $0x84] sm:$0xff]
    %v86 = vld [vmem:[#allocation2 + $0x8c] sm:$0xf]
    %v87 = vld [vmem:[#allocation2 + $0x90] sm:$0xff]
    %v88 = vld [vmem:[#allocation2 + $0x98] sm:$0xf]
    %v89 = vld [vmem:[#allocation2 + $0x9c] sm:$0xff]
    %v90 = vld [vmem:[#allocation2 + $0xa4] sm:$0xf]
    %v91 = vld [vmem:[#allocation2 + $0xa8] sm:$0xff]
    %v92 = vld [vmem:[#allocation2 + $0xb0] sm:$0xf]
    %v93 = vld [vmem:[#allocation2 + $0xb4] sm:$0xff]
    %v94 = vld [vmem:[#allocation2 + $0xbc] sm:$0xf]
    %v127 = vunpack.c.l.b16 %v63
    %v128 = vunpack.c.h.b16 %v63
    %v129 = vunpack.c.l.b16 %v64
    %v130 = vunpack.c.l.b16 %v65
    %v131 = vunpack.c.h.b16 %v65
    %v132 = vunpack.c.l.b16 %v66
    %v133 = vunpack.c.l.b16 %v67
    %v134 = vunpack.c.h.b16 %v67
    %v135 = vunpack.c.l.b16 %v68
    %v136 = vunpack.c.l.b16 %v69
    %v137 = vunpack.c.h.b16 %v69
    %v138 = vunpack.c.l.b16 %v70
    %v139 = vunpack.c.l.b16 %v71
    %v140 = vunpack.c.h.b16 %v71
    %v141 = vunpack.c.l.b16 %v72
    %v142 = vunpack.c.l.b16 %v73
    %v143 = vunpack.c.h.b16 %v73
    %v144 = vunpack.c.l.b16 %v74
    %v145 = vunpack.c.l.b16 %v75
    %v146 = vunpack.c.h.b16 %v75
    %v147 = vunpack.c.l.b16 %v76
    %v148 = vunpack.c.l.b16 %v77
    %v149 = vunpack.c.h.b16 %v77
    %v150 = vunpack.c.l.b16 %v78
    %v151 = vunpack.c.l.b16 %v79
    %v152 = vunpack.c.h.b16 %v79
    %v153 = vunpack.c.l.b16 %v80
    %v154 = vunpack.c.l.b16 %v81
    %v155 = vunpack.c.h.b16 %v81
    %v156 = vunpack.c.l.b16 %v82
    %v157 = vunpack.c.l.b16 %v83
    %v158 = vunpack.c.h.b16 %v83
    %v159 = vunpack.c.l.b16 %v84
    %v160 = vunpack.c.l.b16 %v85
    %v161 = vunpack.c.h.b16 %v85
    %v162 = vunpack.c.l.b16 %v86
    %v163 = vunpack.c.l.b16 %v87
    %v164 = vunpack.c.h.b16 %v87
    %v165 = vunpack.c.l.b16 %v88
    %v166 = vunpack.c.l.b16 %v89
    %v167 = vunpack.c.h.b16 %v89
    %v168 = vunpack.c.l.b16 %v90
    %v169 = vunpack.c.l.b16 %v91
    %v170 = vunpack.c.h.b16 %v91
    %v171 = vunpack.c.l.b16 %v92
    %v172 = vunpack.c.l.b16 %v93
    %v173 = vunpack.c.h.b16 %v93
    %v174 = vunpack.c.l.b16 %v94
    %v175 = vpack.c.b16 %v130, %v127
    %v176 = vpack.c.b16 %v131, %v128
    %v177 = vpack.c.b16 %v132, %v129
    %v178 = vpack.c.b16 %v136, %v133
    %v179 = vpack.c.b16 %v137, %v134
    %v180 = vpack.c.b16 %v138, %v135
    %v181 = vpack.c.b16 %v142, %v139
    %v182 = vpack.c.b16 %v143, %v140
    %v183 = vpack.c.b16 %v144, %v141
    %v184 = vpack.c.b16 %v148, %v145
    %v185 = vpack.c.b16 %v149, %v146
    %v186 = vpack.c.b16 %v150, %v147
    %v187 = vpack.c.b16 %v154, %v151
    %v188 = vpack.c.b16 %v155, %v152
    %v189 = vpack.c.b16 %v156, %v153
    %v190 = vpack.c.b16 %v160, %v157
    %v191 = vpack.c.b16 %v161, %v158
    %v192 = vpack.c.b16 %v162, %v159
    %v193 = vpack.c.b16 %v166, %v163
    %v194 = vpack.c.b16 %v167, %v164
    %v195 = vpack.c.b16 %v168, %v165
    %v196 = vpack.c.b16 %v172, %v169
    %v197 = vpack.c.b16 %v173, %v170
    %v198 = vpack.c.b16 %v174, %v171
    %223 = vmatpush.bf16.msra.mxu0 %v196
    %224 = vmatpush.bf16.msra.mxu0 %v193
    %225 = vmatpush.bf16.msra.mxu0 %v190
    %226 = vmatpush.bf16.msra.mxu0 %v187
    %227 = vmatpush.bf16.msra.mxu0 %v184
    %228 = vmatpush.bf16.msra.mxu0 %v181
    %229 = vmatpush.bf16.msra.mxu0 %v178
    %230 = vmatpush.bf16.msra.mxu0 %v175
    %231 = vmatmul.bf16.gmra.mxu0 %v60
    %v232 = vpop.f32.mrf.mxu0
    %v233 = vadd.f32 0.0, %v232
    %v234 = vpop.f32.mrf.mxu0
    %v235 = vadd.f32 0.0, %v234
    %236 = vmatmul.bf16.gmra.mxu0 %v61
    %v237 = vpop.f32.mrf.mxu0
    %v238 = vadd.f32 0.0, %v237
    %v239 = vpop.f32.mrf.mxu0
    %v240 = vadd.f32 0.0, %v239
    %241 = vmatmul.bf16.gmra.mxu0 %v62
    %v242 = vpop.f32.mrf.mxu0
    %v243 = vadd.f32 0.0, %v242
    %v244 = vpop.f32.mrf.mxu0
    %v245 = vadd.f32 0.0, %v244
    %246 = vdwg.mxu0
    %247 = vmatpush.bf16.msra.mxu0 %v197
    %248 = vmatpush.bf16.msra.mxu0 %v194
    %249 = vmatpush.bf16.msra.mxu0 %v191
    %250 = vmatpush.bf16.msra.mxu0 %v188
    %251 = vmatpush.bf16.msra.mxu0 %v185
    %252 = vmatpush.bf16.msra.mxu0 %v182
    %253 = vmatpush.bf16.msra.mxu0 %v179
    %254 = vmatpush.bf16.msra.mxu0 %v176
    %255 = vmatmul.bf16.gmra.mxu0 %v60
    %v256 = vpop.f32.mrf.mxu0
    %v257 = vadd.f32 0.0, %v256
    %v258 = vpop.f32.mrf.mxu0
    %v259 = vadd.f32 0.0, %v258
    %260 = vmatmul.bf16.gmra.mxu0 %v61
    %v261 = vpop.f32.mrf.mxu0
    %v262 = vadd.f32 0.0, %v261
    %v263 = vpop.f32.mrf.mxu0
    %v264 = vadd.f32 0.0, %v263
    %265 = vmatmul.bf16.gmra.mxu0 %v62
    %v266 = vpop.f32.mrf.mxu0
    %v267 = vadd.f32 0.0, %v266
    %v268 = vpop.f32.mrf.mxu0
    %v269 = vadd.f32 0.0, %v268
    %270 = vdwg.mxu0
    %271 = vmatpush.bf16.msra.mxu0 %v198
    %272 = vmatpush.bf16.msra.mxu0 %v195
    %273 = vmatpush.bf16.msra.mxu0 %v192
    %274 = vmatpush.bf16.msra.mxu0 %v189
    %275 = vmatpush.bf16.msra.mxu0 %v186
    %276 = vmatpush.bf16.msra.mxu0 %v183
    %277 = vmatpush.bf16.msra.mxu0 %v180
    %278 = vmatpush.bf16.msra.mxu0 %v177
    %279 = vmatmul.bf16.gmra.mxu0 %v60
    %v280 = vpop.f32.mrf.mxu0
    %v281 = vadd.f32 0.0, %v280
    %v282 = vpop.f32.mrf.mxu0
    %v283 = vadd.f32 0.0, %v282
    %284 = vmatmul.bf16.gmra.mxu0 %v61
    %v285 = vpop.f32.mrf.mxu0
    %v286 = vadd.f32 0.0, %v285
    %v287 = vpop.f32.mrf.mxu0
    %v288 = vadd.f32 0.0, %v287
    %289 = vmatmul.bf16.gmra.mxu0 %v62
    %v290 = vpop.f32.mrf.mxu0
    %v291 = vadd.f32 0.0, %v290
    %v292 = vpop.f32.mrf.mxu0
    %v293 = vadd.f32 0.0, %v292
    %294 = vdwg.mxu0
    %v295 = vperm.slane %v58, 0
    %v296 = vadd.f32 %v233, %v295
    %v297 = vadd.f32 %v235, %v295
    %v298 = vadd.f32 %v238, %v295
    %v299 = vadd.f32 %v240, %v295
    %v300 = vadd.f32 %v243, %v295
    %v301 = vadd.f32 %v245, %v295
    %v302 = vperm.slane %v58, 1
    %v303 = vadd.f32 %v257, %v302
    %v304 = vadd.f32 %v259, %v302
    %v305 = vadd.f32 %v262, %v302
    %v306 = vadd.f32 %v264, %v302
    %v307 = vadd.f32 %v267, %v302
    %v308 = vadd.f32 %v269, %v302
    %v309 = vperm.slane %v58, 2
    %v310 = vadd.f32 %v281, %v309
    %v311 = vadd.f32 %v283, %v309
    %v312 = vadd.f32 %v286, %v309
    %v313 = vadd.f32 %v288, %v309
    %v314 = vadd.f32 %v291, %v309
    %v315 = vadd.f32 %v293, %v309
    %v316 = vpack.c.bf16 %v297, %v296
    %v317 = vpack.c.bf16 %v299, %v298
    %v318 = vpack.c.bf16 %v301, %v300
    %v319 = vpack.c.bf16 %v304, %v303
    %v320 = vpack.c.bf16 %v306, %v305
    %v321 = vpack.c.bf16 %v308, %v307
    %v322 = vpack.c.bf16 %v311, %v310
    %v323 = vpack.c.bf16 %v313, %v312
    %v324 = vpack.c.bf16 %v315, %v314
    %vm325 = vcmask 261120
    %v327 = vsel %vm325, %v316, 0
    %v330 = vsel %vm325, %v317, 0
    %v333 = vsel %vm325, %v318, 0
    %v336 = vsel %vm325, %v319, 0
    %v339 = vsel %vm325, %v320, 0
    %v342 = vsel %vm325, %v321, 0
    %344 = vmatpush.bf16.xpose.msra.mxu0 0
    %345 = vmatpush.bf16.xpose.msra.mxu0 0
    %346 = vmatpush.bf16.xpose.msra.mxu0 0
    %347 = vmatpush.bf16.xpose.msra.mxu0 0
    %348 = vmatpush.bf16.xpose.msra.mxu0 0
    %349 = vmatpush.bf16.xpose.msra.mxu0 %v342
    %350 = vmatpush.bf16.xpose.msra.mxu0 %v339
    %351 = vmatpush.bf16.xpose.msra.mxu0 %v336
    %352 = vmatmul.bf16.gmra.mxu0 %v327
    %v353 = vpop.f32.mrf.mxu0
    %v354 = vadd.f32 0.0, %v353
    %v355 = vpop.f32.mrf.mxu0
    %v356 = vadd.f32 0.0, %v355
    %357 = vmatmul.bf16.gmra.mxu0 %v330
    %v358 = vpop.f32.mrf.mxu0
    %v359 = vadd.f32 0.0, %v358
    %v360 = vpop.f32.mrf.mxu0
    %v361 = vadd.f32 0.0, %v360
    %362 = vmatmul.bf16.gmra.mxu0 %v333
    %v363 = vpop.f32.mrf.mxu0
    %v364 = vadd.f32 0.0, %v363
    %v365 = vpop.f32.mrf.mxu0
    %v366 = vadd.f32 0.0, %v365
    %367 = vdwg.mxu0
    %v368 = vmul.f32 %v354, 0.17677669
    %v369 = vmul.f32 %v356, 0.17677669
    %v370 = vmul.f32 %v359, 0.17677669
    %v371 = vmul.f32 %v361, 0.17677669
    %v372 = vmul.f32 %v364, 0.17677669
    %v373 = vmul.f32 %v366, 0.17677669
    %v374 = vadd.f32 %v368, %v52
    %v375 = vadd.f32 %v369, %v53
    %v376 = vadd.f32 %v370, %v54
    %v377 = vadd.f32 %v371, %v55
    %v378 = vadd.f32 %v372, %v56
    %v379 = vadd.f32 %v373, %v57
    %vm380 = vcmask 392192
    %v381 = vsel %vm380, %v374, -inf
    %382 = vmax.xlane.f32.xlu0 %v381
    %v383 = vpop.xlane.xlu0 %382
    %v384 = vsel %vm380, %v375, -inf
    %385 = vmax.xlane.f32.xlu0 %v384
    %v386 = vpop.xlane.xlu0 %385
    %v387 = vsel %vm380, %v376, -inf
    %388 = vmax.xlane.f32.xlu0 %v387
    %v389 = vpop.xlane.xlu0 %388
    %v390 = vsel %vm380, %v377, -inf
    %391 = vmax.xlane.f32.xlu0 %v390
    %v392 = vpop.xlane.xlu0 %391
    %v393 = vsel %vm380, %v378, -inf
    %394 = vmax.xlane.f32.xlu0 %v393
    %v395 = vpop.xlane.xlu0 %394
    %v396 = vsel %vm380, %v379, -inf
    %397 = vmax.xlane.f32.xlu0 %v396
    %v398 = vpop.xlane.xlu0 %397
    %v399 = vsub.f32 %v374, %v383
    %v400 = vsub.f32 %v375, %v386
    %v401 = vsub.f32 %v376, %v389
    %v402 = vsub.f32 %v377, %v392
    %v403 = vsub.f32 %v378, %v395
    %v404 = vsub.f32 %v379, %v398
    %v405 = vmul.f32 %v399, 1.442695
    %v406 = vpow.pop %v405
    %v407 = vmul.f32 %v400, 1.442695
    %v408 = vpow.pop %v407
    %v409 = vmul.f32 %v401, 1.442695
    %v410 = vpow.pop %v409
    %v411 = vmul.f32 %v402, 1.442695
    %v412 = vpow.pop %v411
    %v413 = vmul.f32 %v403, 1.442695
    %v414 = vpow.pop %v413
    %v415 = vmul.f32 %v404, 1.442695
    %v416 = vpow.pop %v415
    %v417 = vsel %vm380, %v406, 0.0
    %418 = vadd.xlane.f32.xlu0 %v417
    %v419 = vpop.xlane.xlu0 %418
    %v420 = vsel %vm380, %v408, 0.0
    %421 = vadd.xlane.f32.xlu0 %v420
    %v422 = vpop.xlane.xlu0 %421
    %v423 = vsel %vm380, %v410, 0.0
    %424 = vadd.xlane.f32.xlu0 %v423
    %v425 = vpop.xlane.xlu0 %424
    %v426 = vsel %vm380, %v412, 0.0
    %427 = vadd.xlane.f32.xlu0 %v426
    %v428 = vpop.xlane.xlu0 %427
    %v429 = vsel %vm380, %v414, 0.0
    %430 = vadd.xlane.f32.xlu0 %v429
    %v431 = vpop.xlane.xlu0 %430
    %v432 = vsel %vm380, %v416, 0.0
    %433 = vadd.xlane.f32.xlu0 %v432
    %v434 = vpop.xlane.xlu0 %433
    %v435 = vrcp.pop %v419
    %v436 = vrcp.pop %v422
    %v437 = vrcp.pop %v425
    %v438 = vrcp.pop %v428
    %v439 = vrcp.pop %v431
    %v440 = vrcp.pop %v434
    %v441 = vmul.f32 %v406, %v435
    %v442 = vmul.f32 %v408, %v436
    %v443 = vmul.f32 %v410, %v437
    %v444 = vmul.f32 %v412, %v438
    %v445 = vmul.f32 %v414, %v439
    %v446 = vmul.f32 %v416, %v440
    %v447 = vpack.c.bf16 %v442, %v441
    %v448 = vpack.c.bf16 %v444, %v443
    %v449 = vpack.c.bf16 %v446, %v445
    %v451 = vsel %vm380, %v447, 0
    %v454 = vsel %vm380, %v448, 0
    %v457 = vsel %vm380, %v449, 0
    %459 = vmatpush.bf16.msra.mxu0 0
    %460 = vmatpush.bf16.msra.mxu0 0
    %461 = vmatpush.bf16.msra.mxu0 0
    %462 = vmatpush.bf16.msra.mxu0 0
    %463 = vmatpush.bf16.msra.mxu0 0
    %464 = vmatpush.bf16.msra.mxu0 %v324
    %465 = vmatpush.bf16.msra.mxu0 %v323
    %466 = vmatpush.bf16.msra.mxu0 %v322
    %467 = vmatmul.bf16.gmra.mxu0 %v451
    %v468 = vpop.f32.mrf.mxu0
    %v469 = vadd.f32 0.0, %v468
    %v470 = vpop.f32.mrf.mxu0
    %v471 = vadd.f32 0.0, %v470
    %472 = vmatmul.bf16.gmra.mxu0 %v454
    %v473 = vpop.f32.mrf.mxu0
    %v474 = vadd.f32 0.0, %v473
    %v475 = vpop.f32.mrf.mxu0
    %v476 = vadd.f32 0.0, %v475
    %477 = vmatmul.bf16.gmra.mxu0 %v457
    %v478 = vpop.f32.mrf.mxu0
    %v479 = vadd.f32 0.0, %v478
    %v480 = vpop.f32.mrf.mxu0
    %v481 = vadd.f32 0.0, %v480
    %482 = vdwg.mxu0
    %v483 = vpack.c.bf16 %v469, %v469
    %v484 = vpack.c.bf16 %v471, %v471
    %v485 = vpack.c.bf16 %v474, %v474
    %v486 = vpack.c.bf16 %v476, %v476
    %v487 = vpack.c.bf16 %v479, %v479
    %v488 = vpack.c.bf16 %v481, %v481
    %492 = vrot.lane.b32.xlu0 %v316, 96
    %v493 = vpop.permute.xlu0 %492
    %494 = vrot.lane.b32.xlu0 %v317, 96
    %v495 = vpop.permute.xlu0 %494
    %496 = vrot.lane.b32.xlu0 %v318, 96
    %v497 = vpop.permute.xlu0 %496
    %501 = vrot.lane.b32.xlu0 %v319, 96
    %v502 = vpop.permute.xlu0 %501
    %503 = vrot.lane.b32.xlu0 %v320, 96
    %v504 = vpop.permute.xlu0 %503
    %505 = vrot.lane.b32.xlu0 %v321, 96
    %v506 = vpop.permute.xlu0 %505
    %v508 = vsel %vm325, %v493, 0
    %v511 = vsel %vm325, %v495, 0
    %v514 = vsel %vm325, %v497, 0
    %v517 = vsel %vm325, %v502, 0
    %v520 = vsel %vm325, %v504, 0
    %v523 = vsel %vm325, %v506, 0
    %525 = vmatpush.bf16.xpose.msra.mxu0 0
    %526 = vmatpush.bf16.xpose.msra.mxu0 0
    %527 = vmatpush.bf16.xpose.msra.mxu0 0
    %528 = vmatpush.bf16.xpose.msra.mxu0 0
    %529 = vmatpush.bf16.xpose.msra.mxu0 0
    %530 = vmatpush.bf16.xpose.msra.mxu0 %v523
    %531 = vmatpush.bf16.xpose.msra.mxu0 %v520
    %532 = vmatpush.bf16.xpose.msra.mxu0 %v517
    %533 = vmatmul.bf16.gmra.mxu0 %v508
    %v534 = vpop.f32.mrf.mxu0
    %v535 = vadd.f32 0.0, %v534
    %v536 = vpop.f32.mrf.mxu0
    %v537 = vadd.f32 0.0, %v536
    %538 = vmatmul.bf16.gmra.mxu0 %v511
    %v539 = vpop.f32.mrf.mxu0
    %v540 = vadd.f32 0.0, %v539
    %v541 = vpop.f32.mrf.mxu0
    %v542 = vadd.f32 0.0, %v541
    %543 = vmatmul.bf16.gmra.mxu0 %v514
    %v544 = vpop.f32.mrf.mxu0
    %v545 = vadd.f32 0.0, %v544
    %v546 = vpop.f32.mrf.mxu0
    %v547 = vadd.f32 0.0, %v546
    %548 = vdwg.mxu0
    %v549 = vmul.f32 %v535, 0.17677669
    %v550 = vmul.f32 %v537, 0.17677669
    %v551 = vmul.f32 %v540, 0.17677669
    %v552 = vmul.f32 %v542, 0.17677669
    %v553 = vmul.f32 %v545, 0.17677669
    %v554 = vmul.f32 %v547, 0.17677669
    %v555 = vadd.f32 %v549, %v52
    %v556 = vadd.f32 %v550, %v53
    %v557 = vadd.f32 %v551, %v54
    %v558 = vadd.f32 %v552, %v55
    %v559 = vadd.f32 %v553, %v56
    %v560 = vadd.f32 %v554, %v57
    %v561 = vsel %vm380, %v555, -inf
    %562 = vmax.xlane.f32.xlu0 %v561
    %v563 = vpop.xlane.xlu0 %562
    %v564 = vsel %vm380, %v556, -inf
    %565 = vmax.xlane.f32.xlu0 %v564
    %v566 = vpop.xlane.xlu0 %565
    %v567 = vsel %vm380, %v557, -inf
    %568 = vmax.xlane.f32.xlu0 %v567
    %v569 = vpop.xlane.xlu0 %568
    %v570 = vsel %vm380, %v558, -inf
    %571 = vmax.xlane.f32.xlu0 %v570
    %v572 = vpop.xlane.xlu0 %571
    %v573 = vsel %vm380, %v559, -inf
    %574 = vmax.xlane.f32.xlu0 %v573
    %v575 = vpop.xlane.xlu0 %574
    %v576 = vsel %vm380, %v560, -inf
    %577 = vmax.xlane.f32.xlu0 %v576
    %v578 = vpop.xlane.xlu0 %577
    %v579 = vsub.f32 %v555, %v563
    %v580 = vsub.f32 %v556, %v566
    %v581 = vsub.f32 %v557, %v569
    %v582 = vsub.f32 %v558, %v572
    %v583 = vsub.f32 %v559, %v575
    %v584 = vsub.f32 %v560, %v578
    %v585 = vmul.f32 %v579, 1.442695
    %v586 = vpow.pop %v585
    %v587 = vmul.f32 %v580, 1.442695
    %v588 = vpow.pop %v587
    %v589 = vmul.f32 %v581, 1.442695
    %v590 = vpow.pop %v589
    %v591 = vmul.f32 %v582, 1.442695
    %v592 = vpow.pop %v591
    %v593 = vmul.f32 %v583, 1.442695
    %v594 = vpow.pop %v593
    %v595 = vmul.f32 %v584, 1.442695
    %v596 = vpow.pop %v595
    %v597 = vsel %vm380, %v586, 0.0
    %598 = vadd.xlane.f32.xlu0 %v597
    %v599 = vpop.xlane.xlu0 %598
    %v600 = vsel %vm380, %v588, 0.0
    %601 = vadd.xlane.f32.xlu0 %v600
    %v602 = vpop.xlane.xlu0 %601
    %v603 = vsel %vm380, %v590, 0.0
    %604 = vadd.xlane.f32.xlu0 %v603
    %v605 = vpop.xlane.xlu0 %604
    %v606 = vsel %vm380, %v592, 0.0
    %607 = vadd.xlane.f32.xlu0 %v606
    %v608 = vpop.xlane.xlu0 %607
    %v609 = vsel %vm380, %v594, 0.0
    %610 = vadd.xlane.f32.xlu0 %v609
    %v611 = vpop.xlane.xlu0 %610
    %v612 = vsel %vm380, %v596, 0.0
    %613 = vadd.xlane.f32.xlu0 %v612
    %v614 = vpop.xlane.xlu0 %613
    %v615 = vrcp.pop %v599
    %v616 = vrcp.pop %v602
    %v617 = vrcp.pop %v605
    %v618 = vrcp.pop %v608
    %v619 = vrcp.pop %v611
    %v620 = vrcp.pop %v614
    %v621 = vmul.f32 %v586, %v615
    %v622 = vmul.f32 %v588, %v616
    %v623 = vmul.f32 %v590, %v617
    %v624 = vmul.f32 %v592, %v618
    %v625 = vmul.f32 %v594, %v619
    %v626 = vmul.f32 %v596, %v620
    %v627 = vpack.c.bf16 %v622, %v621
    %v628 = vpack.c.bf16 %v624, %v623
    %v629 = vpack.c.bf16 %v626, %v625
    %633 = vrot.lane.b32.xlu0 %v322, 96
    %v634 = vpop.permute.xlu0 %633
    %635 = vrot.lane.b32.xlu0 %v323, 96
    %v636 = vpop.permute.xlu0 %635
    %637 = vrot.lane.b32.xlu0 %v324, 96
    %v638 = vpop.permute.xlu0 %637
    %v643 = vsel %vm380, %v627, 0
    %v646 = vsel %vm380, %v628, 0
    %v649 = vsel %vm380, %v629, 0
    %651 = vmatpush.bf16.msra.mxu0 0
    %652 = vmatpush.bf16.msra.mxu0 0
    %653 = vmatpush.bf16.msra.mxu0 0
    %654 = vmatpush.bf16.msra.mxu0 0
    %655 = vmatpush.bf16.msra.mxu0 0
    %656 = vmatpush.bf16.msra.mxu0 %v638
    %657 = vmatpush.bf16.msra.mxu0 %v636
    %658 = vmatpush.bf16.msra.mxu0 %v634
    %659 = vmatmul.bf16.gmra.mxu0 %v643
    %v660 = vpop.f32.mrf.mxu0
    %v661 = vadd.f32 0.0, %v660
    %v662 = vpop.f32.mrf.mxu0
    %v663 = vadd.f32 0.0, %v662
    %664 = vmatmul.bf16.gmra.mxu0 %v646
    %v665 = vpop.f32.mrf.mxu0
    %v666 = vadd.f32 0.0, %v665
    %v667 = vpop.f32.mrf.mxu0
    %v668 = vadd.f32 0.0, %v667
    %669 = vmatmul.bf16.gmra.mxu0 %v649
    %v670 = vpop.f32.mrf.mxu0
    %v671 = vadd.f32 0.0, %v670
    %v672 = vpop.f32.mrf.mxu0
    %v673 = vadd.f32 0.0, %v672
    %674 = vdwg.mxu0
    %v675 = vpack.c.bf16 %v661, %v661
    %v676 = vpack.c.bf16 %v663, %v663
    %v677 = vpack.c.bf16 %v666, %v666
    %v678 = vpack.c.bf16 %v668, %v668
    %v679 = vpack.c.bf16 %v671, %v671
    %v680 = vpack.c.bf16 %v673, %v673
    %681 = vrot.lane.b32.xlu0 %v316, 64
    %v682 = vpop.permute.xlu0 %681
    %683 = vrot.lane.b32.xlu0 %v317, 64
    %v684 = vpop.permute.xlu0 %683
    %685 = vrot.lane.b32.xlu0 %v318, 64
    %v686 = vpop.permute.xlu0 %685
    %687 = vrot.lane.b32.xlu0 %v319, 64
    %v688 = vpop.permute.xlu0 %687
    %689 = vrot.lane.b32.xlu0 %v320, 64
    %v690 = vpop.permute.xlu0 %689
    %691 = vrot.lane.b32.xlu0 %v321, 64
    %v692 = vpop.permute.xlu0 %691
    %v694 = vsel %vm325, %v682, 0
    %v697 = vsel %vm325, %v684, 0
    %v700 = vsel %vm325, %v686, 0
    %v703 = vsel %vm325, %v688, 0
    %v706 = vsel %vm325, %v690, 0
    %v709 = vsel %vm325, %v692, 0
    %711 = vmatpush.bf16.xpose.msra.mxu0 0
    %712 = vmatpush.bf16.xpose.msra.mxu0 0
    %713 = vmatpush.bf16.xpose.msra.mxu0 0
    %714 = vmatpush.bf16.xpose.msra.mxu0 0
    %715 = vmatpush.bf16.xpose.msra.mxu0 0
    %716 = vmatpush.bf16.xpose.msra.mxu0 %v709
    %717 = vmatpush.bf16.xpose.msra.mxu0 %v706
    %718 = vmatpush.bf16.xpose.msra.mxu0 %v703
    %719 = vmatmul.bf16.gmra.mxu0 %v694
    %v720 = vpop.f32.mrf.mxu0
    %v721 = vadd.f32 0.0, %v720
    %v722 = vpop.f32.mrf.mxu0
    %v723 = vadd.f32 0.0, %v722
    %724 = vmatmul.bf16.gmra.mxu0 %v697
    %v725 = vpop.f32.mrf.mxu0
    %v726 = vadd.f32 0.0, %v725
    %v727 = vpop.f32.mrf.mxu0
    %v728 = vadd.f32 0.0, %v727
    %729 = vmatmul.bf16.gmra.mxu0 %v700
    %v730 = vpop.f32.mrf.mxu0
    %v731 = vadd.f32 0.0, %v730
    %v732 = vpop.f32.mrf.mxu0
    %v733 = vadd.f32 0.0, %v732
    %734 = vdwg.mxu0
    %v735 = vmul.f32 %v721, 0.17677669
    %v736 = vmul.f32 %v723, 0.17677669
    %v737 = vmul.f32 %v726, 0.17677669
    %v738 = vmul.f32 %v728, 0.17677669
    %v739 = vmul.f32 %v731, 0.17677669
    %v740 = vmul.f32 %v733, 0.17677669
    %v741 = vadd.f32 %v735, %v52
    %v742 = vadd.f32 %v736, %v53
    %v743 = vadd.f32 %v737, %v54
    %v744 = vadd.f32 %v738, %v55
    %v745 = vadd.f32 %v739, %v56
    %v746 = vadd.f32 %v740, %v57
    %v747 = vsel %vm380, %v741, -inf
    %748 = vmax.xlane.f32.xlu0 %v747
    %v749 = vpop.xlane.xlu0 %748
    %v750 = vsel %vm380, %v742, -inf
    %751 = vmax.xlane.f32.xlu0 %v750
    %v752 = vpop.xlane.xlu0 %751
    %v753 = vsel %vm380, %v743, -inf
    %754 = vmax.xlane.f32.xlu0 %v753
    %v755 = vpop.xlane.xlu0 %754
    %v756 = vsel %vm380, %v744, -inf
    %757 = vmax.xlane.f32.xlu0 %v756
    %v758 = vpop.xlane.xlu0 %757
    %v759 = vsel %vm380, %v745, -inf
    %760 = vmax.xlane.f32.xlu0 %v759
    %v761 = vpop.xlane.xlu0 %760
    %v762 = vsel %vm380, %v746, -inf
    %763 = vmax.xlane.f32.xlu0 %v762
    %v764 = vpop.xlane.xlu0 %763
    %v765 = vsub.f32 %v741, %v749
    %v766 = vsub.f32 %v742, %v752
    %v767 = vsub.f32 %v743, %v755
    %v768 = vsub.f32 %v744, %v758
    %v769 = vsub.f32 %v745, %v761
    %v770 = vsub.f32 %v746, %v764
    %v771 = vmul.f32 %v765, 1.442695
    %v772 = vpow.pop %v771
    %v773 = vmul.f32 %v766, 1.442695
    %v774 = vpow.pop %v773
    %v775 = vmul.f32 %v767, 1.442695
    %v776 = vpow.pop %v775
    %v777 = vmul.f32 %v768, 1.442695
    %v778 = vpow.pop %v777
    %v779 = vmul.f32 %v769, 1.442695
    %v780 = vpow.pop %v779
    %v781 = vmul.f32 %v770, 1.442695
    %v782 = vpow.pop %v781
    %v783 = vsel %vm380, %v772, 0.0
    %784 = vadd.xlane.f32.xlu0 %v783
    %v785 = vpop.xlane.xlu0 %784
    %v786 = vsel %vm380, %v774, 0.0
    %787 = vadd.xlane.f32.xlu0 %v786
    %v788 = vpop.xlane.xlu0 %787
    %v789 = vsel %vm380, %v776, 0.0
    %790 = vadd.xlane.f32.xlu0 %v789
    %v791 = vpop.xlane.xlu0 %790
    %v792 = vsel %vm380, %v778, 0.0
    %793 = vadd.xlane.f32.xlu0 %v792
    %v794 = vpop.xlane.xlu0 %793
    %v795 = vsel %vm380, %v780, 0.0
    %796 = vadd.xlane.f32.xlu0 %v795
    %v797 = vpop.xlane.xlu0 %796
    %v798 = vsel %vm380, %v782, 0.0
    %799 = vadd.xlane.f32.xlu0 %v798
    %v800 = vpop.xlane.xlu0 %799
    %v801 = vrcp.pop %v785
    %v802 = vrcp.pop %v788
    %v803 = vrcp.pop %v791
    %v804 = vrcp.pop %v794
    %v805 = vrcp.pop %v797
    %v806 = vrcp.pop %v800
    %v807 = vmul.f32 %v772, %v801
    %v808 = vmul.f32 %v774, %v802
    %v809 = vmul.f32 %v776, %v803
    %v810 = vmul.f32 %v778, %v804
    %v811 = vmul.f32 %v780, %v805
    %v812 = vmul.f32 %v782, %v806
    %v813 = vpack.c.bf16 %v808, %v807
    %v814 = vpack.c.bf16 %v810, %v809
    %v815 = vpack.c.bf16 %v812, %v811
    %816 = vrot.lane.b32.xlu0 %v322, 64
    %v817 = vpop.permute.xlu0 %816
    %818 = vrot.lane.b32.xlu0 %v323, 64
    %v819 = vpop.permute.xlu0 %818
    %820 = vrot.lane.b32.xlu0 %v324, 64
    %v821 = vpop.permute.xlu0 %820
    %v826 = vsel %vm380, %v813, 0
    %v829 = vsel %vm380, %v814, 0
    %v832 = vsel %vm380, %v815, 0
    %834 = vmatpush.bf16.msra.mxu0 0
    %835 = vmatpush.bf16.msra.mxu0 0
    %836 = vmatpush.bf16.msra.mxu0 0
    %837 = vmatpush.bf16.msra.mxu0 0
    %838 = vmatpush.bf16.msra.mxu0 0
    %839 = vmatpush.bf16.msra.mxu0 %v821
    %840 = vmatpush.bf16.msra.mxu0 %v819
    %841 = vmatpush.bf16.msra.mxu0 %v817
    %842 = vmatmul.bf16.gmra.mxu0 %v826
    %v843 = vpop.f32.mrf.mxu0
    %v844 = vadd.f32 0.0, %v843
    %v845 = vpop.f32.mrf.mxu0
    %v846 = vadd.f32 0.0, %v845
    %847 = vmatmul.bf16.gmra.mxu0 %v829
    %v848 = vpop.f32.mrf.mxu0
    %v849 = vadd.f32 0.0, %v848
    %v850 = vpop.f32.mrf.mxu0
    %v851 = vadd.f32 0.0, %v850
    %852 = vmatmul.bf16.gmra.mxu0 %v832
    %v853 = vpop.f32.mrf.mxu0
    %v854 = vadd.f32 0.0, %v853
    %v855 = vpop.f32.mrf.mxu0
    %v856 = vadd.f32 0.0, %v855
    %857 = vdwg.mxu0
    %v858 = vpack.c.bf16 %v844, %v844
    %v859 = vpack.c.bf16 %v846, %v846
    %v860 = vpack.c.bf16 %v849, %v849
    %v861 = vpack.c.bf16 %v851, %v851
    %v862 = vpack.c.bf16 %v854, %v854
    %v863 = vpack.c.bf16 %v856, %v856
    %864 = vrot.lane.b32.xlu0 %v316, 32
    %v865 = vpop.permute.xlu0 %864
    %866 = vrot.lane.b32.xlu0 %v317, 32
    %v867 = vpop.permute.xlu0 %866
    %868 = vrot.lane.b32.xlu0 %v318, 32
    %v869 = vpop.permute.xlu0 %868
    %870 = vrot.lane.b32.xlu0 %v319, 32
    %v871 = vpop.permute.xlu0 %870
    %872 = vrot.lane.b32.xlu0 %v320, 32
    %v873 = vpop.permute.xlu0 %872
    %874 = vrot.lane.b32.xlu0 %v321, 32
    %v875 = vpop.permute.xlu0 %874
    %v877 = vsel %vm325, %v865, 0
    %v880 = vsel %vm325, %v867, 0
    %v883 = vsel %vm325, %v869, 0
    %v886 = vsel %vm325, %v871, 0
    %v889 = vsel %vm325, %v873, 0
    %v892 = vsel %vm325, %v875, 0
    %894 = vmatpush.bf16.xpose.msra.mxu0 0
    %895 = vmatpush.bf16.xpose.msra.mxu0 0
    %896 = vmatpush.bf16.xpose.msra.mxu0 0
    %897 = vmatpush.bf16.xpose.msra.mxu0 0
    %898 = vmatpush.bf16.xpose.msra.mxu0 0
    %899 = vmatpush.bf16.xpose.msra.mxu0 %v892
    %900 = vmatpush.bf16.xpose.msra.mxu0 %v889
    %901 = vmatpush.bf16.xpose.msra.mxu0 %v886
    %902 = vmatmul.bf16.gmra.mxu0 %v877
    %v903 = vpop.f32.mrf.mxu0
    %v904 = vadd.f32 0.0, %v903
    %v905 = vpop.f32.mrf.mxu0
    %v906 = vadd.f32 0.0, %v905
    %907 = vmatmul.bf16.gmra.mxu0 %v880
    %v908 = vpop.f32.mrf.mxu0
    %v909 = vadd.f32 0.0, %v908
    %v910 = vpop.f32.mrf.mxu0
    %v911 = vadd.f32 0.0, %v910
    %912 = vmatmul.bf16.gmra.mxu0 %v883
    %v913 = vpop.f32.mrf.mxu0
    %v914 = vadd.f32 0.0, %v913
    %v915 = vpop.f32.mrf.mxu0
    %v916 = vadd.f32 0.0, %v915
    %917 = vdwg.mxu0
    %v918 = vmul.f32 %v904, 0.17677669
    %v919 = vmul.f32 %v906, 0.17677669
    %v920 = vmul.f32 %v909, 0.17677669
    %v921 = vmul.f32 %v911, 0.17677669
    %v922 = vmul.f32 %v914, 0.17677669
    %v923 = vmul.f32 %v916, 0.17677669
    %v924 = vadd.f32 %v918, %v52
    %v925 = vadd.f32 %v919, %v53
    %v926 = vadd.f32 %v920, %v54
    %v927 = vadd.f32 %v921, %v55
    %v928 = vadd.f32 %v922, %v56
    %v929 = vadd.f32 %v923, %v57
    %v930 = vsel %vm380, %v924, -inf
    %931 = vmax.xlane.f32.xlu0 %v930
    %v932 = vpop.xlane.xlu0 %931
    %v933 = vsel %vm380, %v925, -inf
    %934 = vmax.xlane.f32.xlu0 %v933
    %v935 = vpop.xlane.xlu0 %934
    %v936 = vsel %vm380, %v926, -inf
    %937 = vmax.xlane.f32.xlu0 %v936
    %v938 = vpop.xlane.xlu0 %937
    %v939 = vsel %vm380, %v927, -inf
    %940 = vmax.xlane.f32.xlu0 %v939
    %v941 = vpop.xlane.xlu0 %940
    %v942 = vsel %vm380, %v928, -inf
    %943 = vmax.xlane.f32.xlu0 %v942
    %v944 = vpop.xlane.xlu0 %943
    %v945 = vsel %vm380, %v929, -inf
    %946 = vmax.xlane.f32.xlu0 %v945
    %v947 = vpop.xlane.xlu0 %946
    %v948 = vsub.f32 %v924, %v932
    %v949 = vsub.f32 %v925, %v935
    %v950 = vsub.f32 %v926, %v938
    %v951 = vsub.f32 %v927, %v941
    %v952 = vsub.f32 %v928, %v944
    %v953 = vsub.f32 %v929, %v947
    %v954 = vmul.f32 %v948, 1.442695
    %v955 = vpow.pop %v954
    %v956 = vmul.f32 %v949, 1.442695
    %v957 = vpow.pop %v956
    %v958 = vmul.f32 %v950, 1.442695
    %v959 = vpow.pop %v958
    %v960 = vmul.f32 %v951, 1.442695
    %v961 = vpow.pop %v960
    %v962 = vmul.f32 %v952, 1.442695
    %v963 = vpow.pop %v962
    %v964 = vmul.f32 %v953, 1.442695
    %v965 = vpow.pop %v964
    %v966 = vsel %vm380, %v955, 0.0
    %967 = vadd.xlane.f32.xlu0 %v966
    %v968 = vpop.xlane.xlu0 %967
    %v969 = vsel %vm380, %v957, 0.0
    %970 = vadd.xlane.f32.xlu0 %v969
    %v971 = vpop.xlane.xlu0 %970
    %v972 = vsel %vm380, %v959, 0.0
    %973 = vadd.xlane.f32.xlu0 %v972
    %v974 = vpop.xlane.xlu0 %973
    %v975 = vsel %vm380, %v961, 0.0
    %976 = vadd.xlane.f32.xlu0 %v975
    %v977 = vpop.xlane.xlu0 %976
    %v978 = vsel %vm380, %v963, 0.0
    %979 = vadd.xlane.f32.xlu0 %v978
    %v980 = vpop.xlane.xlu0 %979
    %v981 = vsel %vm380, %v965, 0.0
    %982 = vadd.xlane.f32.xlu0 %v981
    %v983 = vpop.xlane.xlu0 %982
    %v984 = vrcp.pop %v968
    %v985 = vrcp.pop %v971
    %v986 = vrcp.pop %v974
    %v987 = vrcp.pop %v977
    %v988 = vrcp.pop %v980
    %v989 = vrcp.pop %v983
    %v990 = vmul.f32 %v955, %v984
    %v991 = vmul.f32 %v957, %v985
    %v992 = vmul.f32 %v959, %v986
    %v993 = vmul.f32 %v961, %v987
    %v994 = vmul.f32 %v963, %v988
    %v995 = vmul.f32 %v965, %v989
    %v996 = vpack.c.bf16 %v991, %v990
    %v997 = vpack.c.bf16 %v993, %v992
    %v998 = vpack.c.bf16 %v995, %v994
    %999 = vrot.lane.b32.xlu0 %v322, 32
    %v1000 = vpop.permute.xlu0 %999
    %1001 = vrot.lane.b32.xlu0 %v323, 32
    %v1002 = vpop.permute.xlu0 %1001
    %1003 = vrot.lane.b32.xlu0 %v324, 32
    %v1004 = vpop.permute.xlu0 %1003
    %v1009 = vsel %vm380, %v996, 0
    %v1012 = vsel %vm380, %v997, 0
    %v1015 = vsel %vm380, %v998, 0
    %1017 = vmatpush.bf16.msra.mxu0 0
    %1018 = vmatpush.bf16.msra.mxu0 0
    %1019 = vmatpush.bf16.msra.mxu0 0
    %1020 = vmatpush.bf16.msra.mxu0 0
    %1021 = vmatpush.bf16.msra.mxu0 0
    %1022 = vmatpush.bf16.msra.mxu0 %v1004
    %1023 = vmatpush.bf16.msra.mxu0 %v1002
    %1024 = vmatpush.bf16.msra.mxu0 %v1000
    %1025 = vmatmul.bf16.gmra.mxu0 %v1009
    %v1026 = vpop.f32.mrf.mxu0
    %v1027 = vadd.f32 0.0, %v1026
    %v1028 = vpop.f32.mrf.mxu0
    %v1029 = vadd.f32 0.0, %v1028
    %1030 = vmatmul.bf16.gmra.mxu0 %v1012
    %v1031 = vpop.f32.mrf.mxu0
    %v1032 = vadd.f32 0.0, %v1031
    %v1033 = vpop.f32.mrf.mxu0
    %v1034 = vadd.f32 0.0, %v1033
    %1035 = vmatmul.bf16.gmra.mxu0 %v1015
    %v1036 = vpop.f32.mrf.mxu0
    %v1037 = vadd.f32 0.0, %v1036
    %v1038 = vpop.f32.mrf.mxu0
    %v1039 = vadd.f32 0.0, %v1038
    %1040 = vdwg.mxu0
    %v1041 = vpack.c.bf16 %v1027, %v1027
    %v1042 = vpack.c.bf16 %v1029, %v1029
    %v1043 = vpack.c.bf16 %v1032, %v1032
    %v1044 = vpack.c.bf16 %v1034, %v1034
    %v1045 = vpack.c.bf16 %v1037, %v1037
    %v1046 = vpack.c.bf16 %v1039, %v1039
    %v1053 = vunpack.c.l.b16 %v483
    %v1054 = vunpack.c.l.b16 %v484
    %v1055 = vunpack.c.l.b16 %v485
    %v1056 = vunpack.c.l.b16 %v486
    %v1057 = vunpack.c.l.b16 %v487
    %v1058 = vunpack.c.l.b16 %v488
    %v1059 = vpack.c.b16 %v1054, %v1053
    %v1060 = vpack.c.b16 %v1056, %v1055
    %v1061 = vpack.c.b16 %v1058, %v1057
    %v1068 = vunpack.c.l.b16 %v675
    %v1069 = vunpack.c.l.b16 %v676
    %v1070 = vunpack.c.l.b16 %v677
    %v1071 = vunpack.c.l.b16 %v678
    %v1072 = vunpack.c.l.b16 %v679
    %v1073 = vunpack.c.l.b16 %v680
    %v1074 = vpack.c.b16 %v1069, %v1068
    %v1075 = vpack.c.b16 %v1071, %v1070
    %v1076 = vpack.c.b16 %v1073, %v1072
    %1077 = vrot.lane.b32.xlu0 %v1074, 32
    %v1078 = vpop.permute.xlu0 %1077
    %1079 = vrot.lane.b32.xlu0 %v1075, 32
    %v1080 = vpop.permute.xlu0 %1079
    %1081 = vrot.lane.b32.xlu0 %v1076, 32
    %v1082 = vpop.permute.xlu0 %1081
    %v1089 = vunpack.c.l.b16 %v858
    %v1090 = vunpack.c.l.b16 %v859
    %v1091 = vunpack.c.l.b16 %v860
    %v1092 = vunpack.c.l.b16 %v861
    %v1093 = vunpack.c.l.b16 %v862
    %v1094 = vunpack.c.l.b16 %v863
    %v1095 = vpack.c.b16 %v1090, %v1089
    %v1096 = vpack.c.b16 %v1092, %v1091
    %v1097 = vpack.c.b16 %v1094, %v1093
    %1098 = vrot.lane.b32.xlu0 %v1095, 64
    %v1099 = vpop.permute.xlu0 %1098
    %1100 = vrot.lane.b32.xlu0 %v1096, 64
    %v1101 = vpop.permute.xlu0 %1100
    %1102 = vrot.lane.b32.xlu0 %v1097, 64
    %v1103 = vpop.permute.xlu0 %1102
    %v1110 = vunpack.c.l.b16 %v1041
    %v1111 = vunpack.c.l.b16 %v1042
    %v1112 = vunpack.c.l.b16 %v1043
    %v1113 = vunpack.c.l.b16 %v1044
    %v1114 = vunpack.c.l.b16 %v1045
    %v1115 = vunpack.c.l.b16 %v1046
    %v1116 = vpack.c.b16 %v1111, %v1110
    %v1117 = vpack.c.b16 %v1113, %v1112
    %v1118 = vpack.c.b16 %v1115, %v1114
    %1119 = vrot.lane.b32.xlu0 %v1116, 96
    %v1120 = vpop.permute.xlu0 %1119
    %1121 = vrot.lane.b32.xlu0 %v1117, 96
    %v1122 = vpop.permute.xlu0 %1121
    %1123 = vrot.lane.b32.xlu0 %v1118, 96
    %v1124 = vpop.permute.xlu0 %1123
    %v1127 = vsel %vm325, %v1059, %v1078
    %v1130 = vsel %vm325, %v1060, %v1080
    %v1133 = vsel %vm325, %v1061, %v1082
    %vm1134 = vcmask 523264
    %v1136 = vsel %vm1134, %v1127, %v1099
    %v1138 = vsel %vm1134, %v1130, %v1101
    %v1140 = vsel %vm1134, %v1133, %v1103
    %vm1141 = vcmask 785408
    %v1143 = vsel %vm1141, %v1136, %v1120
    %v1146 = vsel %vm1141, %v1138, %v1122
    %v1149 = vsel %vm1141, %v1140, %v1124
    %v1151 = vld [vmem:[%s3] sm:$0xf]
    %v1152 = vld [vmem:[%s3 + $0x4] sm:$0xf]
    %v1153 = vld [vmem:[%s3 + $0x8] sm:$0xf]
    %v1154 = vld [vmem:[%s3 + $0xc] sm:$0xf]
    %v1155 = vld [vmem:[%s3 + $0x10] sm:$0xf]
    %v1156 = vld [vmem:[%s3 + $0x14] sm:$0xf]
    %v1157 = vld [vmem:[%s3 + $0x18] sm:$0xf]
    %v1158 = vld [vmem:[%s3 + $0x1c] sm:$0xf]
    %v1159 = vld [vmem:[%s3 + $0x20] sm:$0xf]
    %v1160 = vld [vmem:[%s3 + $0x24] sm:$0xf]
    %v1161 = vld [vmem:[%s3 + $0x28] sm:$0xf]
    %v1162 = vld [vmem:[%s3 + $0x2c] sm:$0xf]
    %v1163 = vld [vmem:[%s3 + $0x30] sm:$0xf]
    %v1164 = vld [vmem:[%s3 + $0x34] sm:$0xf]
    %v1165 = vld [vmem:[%s3 + $0x38] sm:$0xf]
    %v1166 = vld [vmem:[%s3 + $0x3c] sm:$0xf]
    %v1167 = vperm.slane %v58, 3
    %v1184 = vunpack.c.l.b16 %v1151
    %v1185 = vunpack.c.l.b16 %v1152
    %v1186 = vunpack.c.l.b16 %v1153
    %v1187 = vunpack.c.l.b16 %v1154
    %v1188 = vunpack.c.l.b16 %v1155
    %v1189 = vunpack.c.l.b16 %v1156
    %v1190 = vunpack.c.l.b16 %v1157
    %v1191 = vunpack.c.l.b16 %v1158
    %v1192 = vunpack.c.l.b16 %v1159
    %v1193 = vunpack.c.l.b16 %v1160
    %v1194 = vunpack.c.l.b16 %v1161
    %v1195 = vunpack.c.l.b16 %v1162
    %v1196 = vunpack.c.l.b16 %v1163
    %v1197 = vunpack.c.l.b16 %v1164
    %v1198 = vunpack.c.l.b16 %v1165
    %v1199 = vunpack.c.l.b16 %v1166
    %v1200 = vpack.c.b16 %v1185, %v1184
    %v1201 = vpack.c.b16 %v1187, %v1186
    %v1202 = vpack.c.b16 %v1189, %v1188
    %v1203 = vpack.c.b16 %v1191, %v1190
    %v1204 = vpack.c.b16 %v1193, %v1192
    %v1205 = vpack.c.b16 %v1195, %v1194
    %v1206 = vpack.c.b16 %v1197, %v1196
    %v1207 = vpack.c.b16 %v1199, %v1198
    %1216 = vmatpush.bf16.msra.mxu0 %v1207
    %1217 = vmatpush.bf16.msra.mxu0 %v1206
    %1218 = vmatpush.bf16.msra.mxu0 %v1205
    %1219 = vmatpush.bf16.msra.mxu0 %v1204
    %1220 = vmatpush.bf16.msra.mxu0 %v1203
    %1221 = vmatpush.bf16.msra.mxu0 %v1202
    %1222 = vmatpush.bf16.msra.mxu0 %v1201
    %1223 = vmatpush.bf16.msra.mxu0 %v1200
    %1224 = vmatmul.bf16.gmra.mxu0 %v1143
    %v1225 = vpop.f32.mrf.mxu0
    %v1226 = vadd.f32 %v1167, %v1225
    %v1227 = vpop.f32.mrf.mxu0
    %v1228 = vadd.f32 %v1167, %v1227
    %1229 = vmatmul.bf16.gmra.mxu0 %v1146
    %v1230 = vpop.f32.mrf.mxu0
    %v1231 = vadd.f32 %v1167, %v1230
    %v1232 = vpop.f32.mrf.mxu0
    %v1233 = vadd.f32 %v1167, %v1232
    %1234 = vmatmul.bf16.gmra.mxu0 %v1149
    %v1235 = vpop.f32.mrf.mxu0
    %v1236 = vadd.f32 %v1167, %v1235
    %v1237 = vpop.f32.mrf.mxu0
    %v1238 = vadd.f32 %v1167, %v1237
    %1239 = vdwg.mxu0
    %v1240 = vadd.f32 %v46, %v1226
    %v1241 = vadd.f32 %v47, %v1228
    %v1242 = vadd.f32 %v48, %v1231
    %v1243 = vadd.f32 %v49, %v1233
    %v1244 = vadd.f32 %v50, %v1236
    %v1245 = vadd.f32 %v51, %v1238
    %1246 = vadd.xlane.f32.xlu0 %v1240
    %v1247 = vpop.xlane.xlu0 %1246
    %1248 = vadd.xlane.f32.xlu0 %v1241
    %v1249 = vpop.xlane.xlu0 %1248
    %1250 = vadd.xlane.f32.xlu0 %v1242
    %v1251 = vpop.xlane.xlu0 %1250
    %1252 = vadd.xlane.f32.xlu0 %v1243
    %v1253 = vpop.xlane.xlu0 %1252
    %1254 = vadd.xlane.f32.xlu0 %v1244
    %v1255 = vpop.xlane.xlu0 %1254
    %1256 = vadd.xlane.f32.xlu0 %v1245
    %v1257 = vpop.xlane.xlu0 %1256
    %v1258 = vrcp.pop 128.0
    %v1259 = vmul.f32 128.0, %v1258
    %v1260 = vsub.f32 1.0, %v1259
    %v1261 = vmul.f32 %v1258, %v1260
    %v1262 = vadd.f32 %v1258, %v1261
    %vm1263 = vweird.f32 %v1258
    %v1264 = vsel %vm1263, %v1258, %v1262
    %v1265 = vmul.f32 %v1247, %v1264
    %v1266 = vmul.f32 %v1249, %v1264
    %v1267 = vmul.f32 %v1251, %v1264
    %v1268 = vmul.f32 %v1253, %v1264
    %v1269 = vmul.f32 %v1255, %v1264
    %v1270 = vmul.f32 %v1257, %v1264
    %v1271 = vsub.f32 %v1240, %v1265
    %v1272 = vsub.f32 %v1241, %v1266
    %v1273 = vsub.f32 %v1242, %v1267
    %v1274 = vsub.f32 %v1243, %v1268
    %v1275 = vsub.f32 %v1244, %v1269
    %v1276 = vsub.f32 %v1245, %v1270
    %v1277 = vmul.f32 %v1271, %v1271
    %v1278 = vmul.f32 %v1272, %v1272
    %v1279 = vmul.f32 %v1273, %v1273
    %v1280 = vmul.f32 %v1274, %v1274
    %v1281 = vmul.f32 %v1275, %v1275
    %v1282 = vmul.f32 %v1276, %v1276
    %1283 = vadd.xlane.f32.xlu0 %v1277
    %v1284 = vpop.xlane.xlu0 %1283
    %1285 = vadd.xlane.f32.xlu0 %v1278
    %v1286 = vpop.xlane.xlu0 %1285
    %1287 = vadd.xlane.f32.xlu0 %v1279
    %v1288 = vpop.xlane.xlu0 %1287
    %1289 = vadd.xlane.f32.xlu0 %v1280
    %v1290 = vpop.xlane.xlu0 %1289
    %1291 = vadd.xlane.f32.xlu0 %v1281
    %v1292 = vpop.xlane.xlu0 %1291
    %1293 = vadd.xlane.f32.xlu0 %v1282
    %v1294 = vpop.xlane.xlu0 %1293
    %v1295 = vmul.f32 %v1284, %v1264
    %v1296 = vmul.f32 %v1286, %v1264
    %v1297 = vmul.f32 %v1288, %v1264
    %v1298 = vmul.f32 %v1290, %v1264
    %v1299 = vmul.f32 %v1292, %v1264
    %v1300 = vmul.f32 %v1294, %v1264
    %v1301 = vadd.f32 %v1295, 1e-05
    %v1302 = vadd.f32 %v1296, 1e-05
    %v1303 = vadd.f32 %v1297, 1e-05
    %v1304 = vadd.f32 %v1298, 1e-05
    %v1305 = vadd.f32 %v1299, 1e-05
    %v1306 = vadd.f32 %v1300, 1e-05
    %v1307 = vrsqrt.pop %v1301
    %v1308 = vmul.f32 %v1307, %v1301
    %v1309 = vmul.f32 %v1308, %v1307
    %v1310 = vmul.f32 0.5, %v1309
    %v1311 = vsub.f32 1.5, %v1310
    %v1312 = vmul.f32 %v1307, %v1311
    %vm1313 = vweird.f32 %v1301
    %vm1314 = vweird.f32 %v1307
    %vm1315 = vmor %vm1313, %vm1314
    %v1316 = vsel %vm1315, %v1307, %v1312
    %v1317 = vrsqrt.pop %v1302
    %v1318 = vmul.f32 %v1317, %v1302
    %v1319 = vmul.f32 %v1318, %v1317
    %v1320 = vmul.f32 0.5, %v1319
    %v1321 = vsub.f32 1.5, %v1320
    %v1322 = vmul.f32 %v1317, %v1321
    %vm1323 = vweird.f32 %v1302
    %vm1324 = vweird.f32 %v1317
    %vm1325 = vmor %vm1323, %vm1324
    %v1326 = vsel %vm1325, %v1317, %v1322
    %v1327 = vrsqrt.pop %v1303
    %v1328 = vmul.f32 %v1327, %v1303
    %v1329 = vmul.f32 %v1328, %v1327
    %v1330 = vmul.f32 0.5, %v1329
    %v1331 = vsub.f32 1.5, %v1330
    %v1332 = vmul.f32 %v1327, %v1331
    %vm1333 = vweird.f32 %v1303
    %vm1334 = vweird.f32 %v1327
    %vm1335 = vmor %vm1333, %vm1334
    %v1336 = vsel %vm1335, %v1327, %v1332
    %v1337 = vrsqrt.pop %v1304
    %v1338 = vmul.f32 %v1337, %v1304
    %v1339 = vmul.f32 %v1338, %v1337
    %v1340 = vmul.f32 0.5, %v1339
    %v1341 = vsub.f32 1.5, %v1340
    %v1342 = vmul.f32 %v1337, %v1341
    %vm1343 = vweird.f32 %v1304
    %vm1344 = vweird.f32 %v1337
    %vm1345 = vmor %vm1343, %vm1344
    %v1346 = vsel %vm1345, %v1337, %v1342
    %v1347 = vrsqrt.pop %v1305
    %v1348 = vmul.f32 %v1347, %v1305
    %v1349 = vmul.f32 %v1348, %v1347
    %v1350 = vmul.f32 0.5, %v1349
    %v1351 = vsub.f32 1.5, %v1350
    %v1352 = vmul.f32 %v1347, %v1351
    %vm1353 = vweird.f32 %v1305
    %vm1354 = vweird.f32 %v1347
    %vm1355 = vmor %vm1353, %vm1354
    %v1356 = vsel %vm1355, %v1347, %v1352
    %v1357 = vrsqrt.pop %v1306
    %v1358 = vmul.f32 %v1357, %v1306
    %v1359 = vmul.f32 %v1358, %v1357
    %v1360 = vmul.f32 0.5, %v1359
    %v1361 = vsub.f32 1.5, %v1360
    %v1362 = vmul.f32 %v1357, %v1361
    %vm1363 = vweird.f32 %v1306
    %vm1364 = vweird.f32 %v1357
    %vm1365 = vmor %vm1363, %vm1364
    %v1366 = vsel %vm1365, %v1357, %v1362
    %v1367 = vmul.f32 %v1271, %v1316
    %v1368 = vmul.f32 %v1272, %v1326
    %v1369 = vmul.f32 %v1273, %v1336
    %v1370 = vmul.f32 %v1274, %v1346
    %v1371 = vmul.f32 %v1275, %v1356
    %v1372 = vmul.f32 %v1276, %v1366
    %v1373 = vperm.slane %v58, 5
    %v1374 = vmul.f32 %v1367, %v1373
    %v1375 = vmul.f32 %v1368, %v1373
    %v1376 = vmul.f32 %v1369, %v1373
    %v1377 = vmul.f32 %v1370, %v1373
    %v1378 = vmul.f32 %v1371, %v1373
    %v1379 = vmul.f32 %v1372, %v1373
    %v1380 = vperm.slane %v58, 6
    %v1381 = vadd.f32 %v1374, %v1380
    %v1382 = vadd.f32 %v1375, %v1380
    %v1383 = vadd.f32 %v1376, %v1380
    %v1384 = vadd.f32 %v1377, %v1380
    %v1385 = vadd.f32 %v1378, %v1380
    %v1386 = vadd.f32 %v1379, %v1380
    %v1387 = vpack.c.bf16 %v1382, %v1381
    %v1388 = vpack.c.bf16 %v1384, %v1383
    %v1389 = vpack.c.bf16 %v1386, %v1385
    %v1390 = vld [vmem:[%s4] sm:$0xff]
    %v1391 = vld [vmem:[%s4 + $0x8] sm:$0xff]
    %v1392 = vld [vmem:[%s4 + $0x10] sm:$0xff]
    %v1393 = vld [vmem:[%s4 + $0x18] sm:$0xff]
    %v1394 = vld [vmem:[%s4 + $0x20] sm:$0xff]
    %v1395 = vld [vmem:[%s4 + $0x28] sm:$0xff]
    %v1396 = vld [vmem:[%s4 + $0x30] sm:$0xff]
    %v1397 = vld [vmem:[%s4 + $0x38] sm:$0xff]
    %v1398 = vld [vmem:[%s4 + $0x40] sm:$0xff]
    %v1399 = vld [vmem:[%s4 + $0x48] sm:$0xff]
    %v1400 = vld [vmem:[%s4 + $0x50] sm:$0xff]
    %v1401 = vld [vmem:[%s4 + $0x58] sm:$0xff]
    %v1402 = vld [vmem:[%s4 + $0x60] sm:$0xff]
    %v1403 = vld [vmem:[%s4 + $0x68] sm:$0xff]
    %v1404 = vld [vmem:[%s4 + $0x70] sm:$0xff]
    %v1405 = vld [vmem:[%s4 + $0x78] sm:$0xff]
    %v1406 = vld [vmem:[%s4 + $0x80] sm:$0xff]
    %v1407 = vld [vmem:[%s4 + $0x88] sm:$0xff]
    %v1408 = vld [vmem:[%s4 + $0x90] sm:$0xff]
    %v1409 = vld [vmem:[%s4 + $0x98] sm:$0xff]
    %v1410 = vld [vmem:[%s4 + $0xa0] sm:$0xff]
    %v1411 = vld [vmem:[%s4 + $0xa8] sm:$0xff]
    %v1412 = vld [vmem:[%s4 + $0xb0] sm:$0xff]
    %v1413 = vld [vmem:[%s4 + $0xb8] sm:$0xff]
    %v1414 = vld [vmem:[%s4 + $0xc0] sm:$0xff]
    %v1415 = vld [vmem:[%s4 + $0xc8] sm:$0xff]
    %v1416 = vld [vmem:[%s4 + $0xd0] sm:$0xff]
    %v1417 = vld [vmem:[%s4 + $0xd8] sm:$0xff]
    %v1418 = vld [vmem:[%s4 + $0xe0] sm:$0xff]
    %v1419 = vld [vmem:[%s4 + $0xe8] sm:$0xff]
    %v1420 = vld [vmem:[%s4 + $0xf0] sm:$0xff]
    %v1421 = vld [vmem:[%s4 + $0xf8] sm:$0xff]
    %v1422 = vld [vmem:[%s6] sm:$0xf]
    %v1424 = vperm.slane %v1422, 0
    %v1425 = vperm.slane %v1422, 1
    %v1426 = vperm.slane %v1422, 2
    %v1427 = vperm.slane %v1422, 3
    %v1464 = vunpack.c.l.b16 %v1390
    %v1465 = vunpack.c.h.b16 %v1390
    %v1466 = vunpack.c.l.b16 %v1391
    %v1467 = vunpack.c.h.b16 %v1391
    %v1468 = vunpack.c.l.b16 %v1392
    %v1469 = vunpack.c.h.b16 %v1392
    %v1470 = vunpack.c.l.b16 %v1393
    %v1471 = vunpack.c.h.b16 %v1393
    %v1472 = vunpack.c.l.b16 %v1394
    %v1473 = vunpack.c.h.b16 %v1394
    %v1474 = vunpack.c.l.b16 %v1395
    %v1475 = vunpack.c.h.b16 %v1395
    %v1476 = vunpack.c.l.b16 %v1396
    %v1477 = vunpack.c.h.b16 %v1396
    %v1478 = vunpack.c.l.b16 %v1397
    %v1479 = vunpack.c.h.b16 %v1397
    %v1480 = vunpack.c.l.b16 %v1398
    %v1481 = vunpack.c.h.b16 %v1398
    %v1482 = vunpack.c.l.b16 %v1399
    %v1483 = vunpack.c.h.b16 %v1399
    %v1484 = vunpack.c.l.b16 %v1400
    %v1485 = vunpack.c.h.b16 %v1400
    %v1486 = vunpack.c.l.b16 %v1401
    %v1487 = vunpack.c.h.b16 %v1401
    %v1488 = vunpack.c.l.b16 %v1402
    %v1489 = vunpack.c.h.b16 %v1402
    %v1490 = vunpack.c.l.b16 %v1403
    %v1491 = vunpack.c.h.b16 %v1403
    %v1492 = vunpack.c.l.b16 %v1404
    %v1493 = vunpack.c.h.b16 %v1404
    %v1494 = vunpack.c.l.b16 %v1405
    %v1495 = vunpack.c.h.b16 %v1405
    %v1496 = vunpack.c.l.b16 %v1406
    %v1497 = vunpack.c.h.b16 %v1406
    %v1498 = vunpack.c.l.b16 %v1407
    %v1499 = vunpack.c.h.b16 %v1407
    %v1500 = vunpack.c.l.b16 %v1408
    %v1501 = vunpack.c.h.b16 %v1408
    %v1502 = vunpack.c.l.b16 %v1409
    %v1503 = vunpack.c.h.b16 %v1409
    %v1504 = vunpack.c.l.b16 %v1410
    %v1505 = vunpack.c.h.b16 %v1410
    %v1506 = vunpack.c.l.b16 %v1411
    %v1507 = vunpack.c.h.b16 %v1411
    %v1508 = vunpack.c.l.b16 %v1412
    %v1509 = vunpack.c.h.b16 %v1412
    %v1510 = vunpack.c.l.b16 %v1413
    %v1511 = vunpack.c.h.b16 %v1413
    %v1512 = vunpack.c.l.b16 %v1414
    %v1513 = vunpack.c.h.b16 %v1414
    %v1514 = vunpack.c.l.b16 %v1415
    %v1515 = vunpack.c.h.b16 %v1415
    %v1516 = vunpack.c.l.b16 %v1416
    %v1517 = vunpack.c.h.b16 %v1416
    %v1518 = vunpack.c.l.b16 %v1417
    %v1519 = vunpack.c.h.b16 %v1417
    %v1520 = vunpack.c.l.b16 %v1418
    %v1521 = vunpack.c.h.b16 %v1418
    %v1522 = vunpack.c.l.b16 %v1419
    %v1523 = vunpack.c.h.b16 %v1419
    %v1524 = vunpack.c.l.b16 %v1420
    %v1525 = vunpack.c.h.b16 %v1420
    %v1526 = vunpack.c.l.b16 %v1421
    %v1527 = vunpack.c.h.b16 %v1421
    %v1528 = vpack.c.b16 %v1468, %v1464
    %v1529 = vpack.c.b16 %v1469, %v1465
    %v1530 = vpack.c.b16 %v1470, %v1466
    %v1531 = vpack.c.b16 %v1471, %v1467
    %v1532 = vpack.c.b16 %v1476, %v1472
    %v1533 = vpack.c.b16 %v1477, %v1473
    %v1534 = vpack.c.b16 %v1478, %v1474
    %v1535 = vpack.c.b16 %v1479, %v1475
    %v1536 = vpack.c.b16 %v1484, %v1480
    %v1537 = vpack.c.b16 %v1485, %v1481
    %v1538 = vpack.c.b16 %v1486, %v1482
    %v1539 = vpack.c.b16 %v1487, %v1483
    %v1540 = vpack.c.b16 %v1492, %v1488
    %v1541 = vpack.c.b16 %v1493, %v1489
    %v1542 = vpack.c.b16 %v1494, %v1490
    %v1543 = vpack.c.b16 %v1495, %v1491
    %v1544 = vpack.c.b16 %v1500, %v1496
    %v1545 = vpack.c.b16 %v1501, %v1497
    %v1546 = vpack.c.b16 %v1502, %v1498
    %v1547 = vpack.c.b16 %v1503, %v1499
    %v1548 = vpack.c.b16 %v1508, %v1504
    %v1549 = vpack.c.b16 %v1509, %v1505
    %v1550 = vpack.c.b16 %v1510, %v1506
    %v1551 = vpack.c.b16 %v1511, %v1507
    %v1552 = vpack.c.b16 %v1516, %v1512
    %v1553 = vpack.c.b16 %v1517, %v1513
    %v1554 = vpack.c.b16 %v1518, %v1514
    %v1555 = vpack.c.b16 %v1519, %v1515
    %v1556 = vpack.c.b16 %v1524, %v1520
    %v1557 = vpack.c.b16 %v1525, %v1521
    %v1558 = vpack.c.b16 %v1526, %v1522
    %v1559 = vpack.c.b16 %v1527, %v1523
    %1592 = vmatpush.bf16.msra.mxu0 %v1556
    %1593 = vmatpush.bf16.msra.mxu0 %v1552
    %1594 = vmatpush.bf16.msra.mxu0 %v1548
    %1595 = vmatpush.bf16.msra.mxu0 %v1544
    %1596 = vmatpush.bf16.msra.mxu0 %v1540
    %1597 = vmatpush.bf16.msra.mxu0 %v1536
    %1598 = vmatpush.bf16.msra.mxu0 %v1532
    %1599 = vmatpush.bf16.msra.mxu0 %v1528
    %1600 = vmatmul.bf16.gmra.mxu0 %v1387
    %v1601 = vpop.f32.mrf.mxu0
    %v1602 = vadd.f32 %v1424, %v1601
    %v1603 = vpop.f32.mrf.mxu0
    %v1604 = vadd.f32 %v1424, %v1603
    %1605 = vmatmul.bf16.gmra.mxu0 %v1388
    %v1606 = vpop.f32.mrf.mxu0
    %v1607 = vadd.f32 %v1424, %v1606
    %v1608 = vpop.f32.mrf.mxu0
    %v1609 = vadd.f32 %v1424, %v1608
    %1610 = vmatmul.bf16.gmra.mxu0 %v1389
    %v1611 = vpop.f32.mrf.mxu0
    %v1612 = vadd.f32 %v1424, %v1611
    %v1613 = vpop.f32.mrf.mxu0
    %v1614 = vadd.f32 %v1424, %v1613
    %1615 = vdwg.mxu0
    %1616 = vmatpush.bf16.msra.mxu0 %v1557
    %1617 = vmatpush.bf16.msra.mxu0 %v1553
    %1618 = vmatpush.bf16.msra.mxu0 %v1549
    %1619 = vmatpush.bf16.msra.mxu0 %v1545
    %1620 = vmatpush.bf16.msra.mxu0 %v1541
    %1621 = vmatpush.bf16.msra.mxu0 %v1537
    %1622 = vmatpush.bf16.msra.mxu0 %v1533
    %1623 = vmatpush.bf16.msra.mxu0 %v1529
    %1624 = vmatmul.bf16.gmra.mxu0 %v1387
    %v1625 = vpop.f32.mrf.mxu0
    %v1626 = vadd.f32 %v1425, %v1625
    %v1627 = vpop.f32.mrf.mxu0
    %v1628 = vadd.f32 %v1425, %v1627
    %1629 = vmatmul.bf16.gmra.mxu0 %v1388
    %v1630 = vpop.f32.mrf.mxu0
    %v1631 = vadd.f32 %v1425, %v1630
    %v1632 = vpop.f32.mrf.mxu0
    %v1633 = vadd.f32 %v1425, %v1632
    %1634 = vmatmul.bf16.gmra.mxu0 %v1389
    %v1635 = vpop.f32.mrf.mxu0
    %v1636 = vadd.f32 %v1425, %v1635
    %v1637 = vpop.f32.mrf.mxu0
    %v1638 = vadd.f32 %v1425, %v1637
    %1639 = vdwg.mxu0
    %1640 = vmatpush.bf16.msra.mxu0 %v1558
    %1641 = vmatpush.bf16.msra.mxu0 %v1554
    %1642 = vmatpush.bf16.msra.mxu0 %v1550
    %1643 = vmatpush.bf16.msra.mxu0 %v1546
    %1644 = vmatpush.bf16.msra.mxu0 %v1542
    %1645 = vmatpush.bf16.msra.mxu0 %v1538
    %1646 = vmatpush.bf16.msra.mxu0 %v1534
    %1647 = vmatpush.bf16.msra.mxu0 %v1530
    %1648 = vmatmul.bf16.gmra.mxu0 %v1387
    %v1649 = vpop.f32.mrf.mxu0
    %v1650 = vadd.f32 %v1426, %v1649
    %v1651 = vpop.f32.mrf.mxu0
    %v1652 = vadd.f32 %v1426, %v1651
    %1653 = vmatmul.bf16.gmra.mxu0 %v1388
    %v1654 = vpop.f32.mrf.mxu0
    %v1655 = vadd.f32 %v1426, %v1654
    %v1656 = vpop.f32.mrf.mxu0
    %v1657 = vadd.f32 %v1426, %v1656
    %1658 = vmatmul.bf16.gmra.mxu0 %v1389
    %v1659 = vpop.f32.mrf.mxu0
    %v1660 = vadd.f32 %v1426, %v1659
    %v1661 = vpop.f32.mrf.mxu0
    %v1662 = vadd.f32 %v1426, %v1661
    %1663 = vdwg.mxu0
    %1664 = vmatpush.bf16.msra.mxu0 %v1559
    %1665 = vmatpush.bf16.msra.mxu0 %v1555
    %1666 = vmatpush.bf16.msra.mxu0 %v1551
    %1667 = vmatpush.bf16.msra.mxu0 %v1547
    %1668 = vmatpush.bf16.msra.mxu0 %v1543
    %1669 = vmatpush.bf16.msra.mxu0 %v1539
    %1670 = vmatpush.bf16.msra.mxu0 %v1535
    %1671 = vmatpush.bf16.msra.mxu0 %v1531
    %1672 = vmatmul.bf16.gmra.mxu0 %v1387
    %v1673 = vpop.f32.mrf.mxu0
    %v1674 = vadd.f32 %v1427, %v1673
    %v1675 = vpop.f32.mrf.mxu0
    %v1676 = vadd.f32 %v1427, %v1675
    %1677 = vmatmul.bf16.gmra.mxu0 %v1388
    %v1678 = vpop.f32.mrf.mxu0
    %v1679 = vadd.f32 %v1427, %v1678
    %v1680 = vpop.f32.mrf.mxu0
    %v1681 = vadd.f32 %v1427, %v1680
    %1682 = vmatmul.bf16.gmra.mxu0 %v1389
    %v1683 = vpop.f32.mrf.mxu0
    %v1684 = vadd.f32 %v1427, %v1683
    %v1685 = vpop.f32.mrf.mxu0
    %v1686 = vadd.f32 %v1427, %v1685
    %1687 = vdwg.mxu0
    %v1688 = vmul.f32 %v1602, 0.5
    %v1689 = vmul.f32 %v1626, 0.5
    %v1690 = vmul.f32 %v1650, 0.5
    %v1691 = vmul.f32 %v1674, 0.5
    %v1692 = vmul.f32 %v1604, 0.5
    %v1693 = vmul.f32 %v1628, 0.5
    %v1694 = vmul.f32 %v1652, 0.5
    %v1695 = vmul.f32 %v1676, 0.5
    %v1696 = vmul.f32 %v1607, 0.5
    %v1697 = vmul.f32 %v1631, 0.5
    %v1698 = vmul.f32 %v1655, 0.5
    %v1699 = vmul.f32 %v1679, 0.5
    %v1700 = vmul.f32 %v1609, 0.5
    %v1701 = vmul.f32 %v1633, 0.5
    %v1702 = vmul.f32 %v1657, 0.5
    %v1703 = vmul.f32 %v1681, 0.5
    %v1704 = vmul.f32 %v1612, 0.5
    %v1705 = vmul.f32 %v1636, 0.5
    %v1706 = vmul.f32 %v1660, 0.5
    %v1707 = vmul.f32 %v1684, 0.5
    %v1708 = vmul.f32 %v1614, 0.5
    %v1709 = vmul.f32 %v1638, 0.5
    %v1710 = vmul.f32 %v1662, 0.5
    %v1711 = vmul.f32 %v1686, 0.5
    %v1712 = vmul.f32 %v1602, 0.044715
    %v1713 = vmul.f32 %v1626, 0.044715
    %v1714 = vmul.f32 %v1650, 0.044715
    %v1715 = vmul.f32 %v1674, 0.044715
    %v1716 = vmul.f32 %v1604, 0.044715
    %v1717 = vmul.f32 %v1628, 0.044715
    %v1718 = vmul.f32 %v1652, 0.044715
    %v1719 = vmul.f32 %v1676, 0.044715
    %v1720 = vmul.f32 %v1607, 0.044715
    %v1721 = vmul.f32 %v1631, 0.044715
    %v1722 = vmul.f32 %v1655, 0.044715
    %v1723 = vmul.f32 %v1679, 0.044715
    %v1724 = vmul.f32 %v1609, 0.044715
    %v1725 = vmul.f32 %v1633, 0.044715
    %v1726 = vmul.f32 %v1657, 0.044715
    %v1727 = vmul.f32 %v1681, 0.044715
    %v1728 = vmul.f32 %v1612, 0.044715
    %v1729 = vmul.f32 %v1636, 0.044715
    %v1730 = vmul.f32 %v1660, 0.044715
    %v1731 = vmul.f32 %v1684, 0.044715
    %v1732 = vmul.f32 %v1614, 0.044715
    %v1733 = vmul.f32 %v1638, 0.044715
    %v1734 = vmul.f32 %v1662, 0.044715
    %v1735 = vmul.f32 %v1686, 0.044715
    %v1736 = vmul.f32 %v1712, %v1602
    %v1737 = vmul.f32 %v1713, %v1626
    %v1738 = vmul.f32 %v1714, %v1650
    %v1739 = vmul.f32 %v1715, %v1674
    %v1740 = vmul.f32 %v1716, %v1604
    %v1741 = vmul.f32 %v1717, %v1628
    %v1742 = vmul.f32 %v1718, %v1652
    %v1743 = vmul.f32 %v1719, %v1676
    %v1744 = vmul.f32 %v1720, %v1607
    %v1745 = vmul.f32 %v1721, %v1631
    %v1746 = vmul.f32 %v1722, %v1655
    %v1747 = vmul.f32 %v1723, %v1679
    %v1748 = vmul.f32 %v1724, %v1609
    %v1749 = vmul.f32 %v1725, %v1633
    %v1750 = vmul.f32 %v1726, %v1657
    %v1751 = vmul.f32 %v1727, %v1681
    %v1752 = vmul.f32 %v1728, %v1612
    %v1753 = vmul.f32 %v1729, %v1636
    %v1754 = vmul.f32 %v1730, %v1660
    %v1755 = vmul.f32 %v1731, %v1684
    %v1756 = vmul.f32 %v1732, %v1614
    %v1757 = vmul.f32 %v1733, %v1638
    %v1758 = vmul.f32 %v1734, %v1662
    %v1759 = vmul.f32 %v1735, %v1686
    %v1760 = vmul.f32 %v1736, %v1602
    %v1761 = vmul.f32 %v1737, %v1626
    %v1762 = vmul.f32 %v1738, %v1650
    %v1763 = vmul.f32 %v1739, %v1674
    %v1764 = vmul.f32 %v1740, %v1604
    %v1765 = vmul.f32 %v1741, %v1628
    %v1766 = vmul.f32 %v1742, %v1652
    %v1767 = vmul.f32 %v1743, %v1676
    %v1768 = vmul.f32 %v1744, %v1607
    %v1769 = vmul.f32 %v1745, %v1631
    %v1770 = vmul.f32 %v1746, %v1655
    %v1771 = vmul.f32 %v1747, %v1679
    %v1772 = vmul.f32 %v1748, %v1609
    %v1773 = vmul.f32 %v1749, %v1633
    %v1774 = vmul.f32 %v1750, %v1657
    %v1775 = vmul.f32 %v1751, %v1681
    %v1776 = vmul.f32 %v1752, %v1612
    %v1777 = vmul.f32 %v1753, %v1636
    %v1778 = vmul.f32 %v1754, %v1660
    %v1779 = vmul.f32 %v1755, %v1684
    %v1780 = vmul.f32 %v1756, %v1614
    %v1781 = vmul.f32 %v1757, %v1638
    %v1782 = vmul.f32 %v1758, %v1662
    %v1783 = vmul.f32 %v1759, %v1686
    %v1784 = vadd.f32 %v1602, %v1760
    %v1785 = vadd.f32 %v1626, %v1761
    %v1786 = vadd.f32 %v1650, %v1762
    %v1787 = vadd.f32 %v1674, %v1763
    %v1788 = vadd.f32 %v1604, %v1764
    %v1789 = vadd.f32 %v1628, %v1765
    %v1790 = vadd.f32 %v1652, %v1766
    %v1791 = vadd.f32 %v1676, %v1767
    %v1792 = vadd.f32 %v1607, %v1768
    %v1793 = vadd.f32 %v1631, %v1769
    %v1794 = vadd.f32 %v1655, %v1770
    %v1795 = vadd.f32 %v1679, %v1771
    %v1796 = vadd.f32 %v1609, %v1772
    %v1797 = vadd.f32 %v1633, %v1773
    %v1798 = vadd.f32 %v1657, %v1774
    %v1799 = vadd.f32 %v1681, %v1775
    %v1800 = vadd.f32 %v1612, %v1776
    %v1801 = vadd.f32 %v1636, %v1777
    %v1802 = vadd.f32 %v1660, %v1778
    %v1803 = vadd.f32 %v1684, %v1779
    %v1804 = vadd.f32 %v1614, %v1780
    %v1805 = vadd.f32 %v1638, %v1781
    %v1806 = vadd.f32 %v1662, %v1782
    %v1807 = vadd.f32 %v1686, %v1783
    %v1808 = vmul.f32 %v1784, 0.7978846
    %v1809 = vmul.f32 %v1785, 0.7978846
    %v1810 = vmul.f32 %v1786, 0.7978846
    %v1811 = vmul.f32 %v1787, 0.7978846
    %v1812 = vmul.f32 %v1788, 0.7978846
    %v1813 = vmul.f32 %v1789, 0.7978846
    %v1814 = vmul.f32 %v1790, 0.7978846
    %v1815 = vmul.f32 %v1791, 0.7978846
    %v1816 = vmul.f32 %v1792, 0.7978846
    %v1817 = vmul.f32 %v1793, 0.7978846
    %v1818 = vmul.f32 %v1794, 0.7978846
    %v1819 = vmul.f32 %v1795, 0.7978846
    %v1820 = vmul.f32 %v1796, 0.7978846
    %v1821 = vmul.f32 %v1797, 0.7978846
    %v1822 = vmul.f32 %v1798, 0.7978846
    %v1823 = vmul.f32 %v1799, 0.7978846
    %v1824 = vmul.f32 %v1800, 0.7978846
    %v1825 = vmul.f32 %v1801, 0.7978846
    %v1826 = vmul.f32 %v1802, 0.7978846
    %v1827 = vmul.f32 %v1803, 0.7978846
    %v1828 = vmul.f32 %v1804, 0.7978846
    %v1829 = vmul.f32 %v1805, 0.7978846
    %v1830 = vmul.f32 %v1806, 0.7978846
    %v1831 = vmul.f32 %v1807, 0.7978846
    %v1832 = vtanh.pop %v1808
    %v1833 = vtanh.pop %v1809
    %v1834 = vtanh.pop %v1810
    %v1835 = vtanh.pop %v1811
    %v1836 = vtanh.pop %v1812
    %v1837 = vtanh.pop %v1813
    %v1838 = vtanh.pop %v1814
    %v1839 = vtanh.pop %v1815
    %v1840 = vtanh.pop %v1816
    %v1841 = vtanh.pop %v1817
    %v1842 = vtanh.pop %v1818
    %v1843 = vtanh.pop %v1819
    %v1844 = vtanh.pop %v1820
    %v1845 = vtanh.pop %v1821
    %v1846 = vtanh.pop %v1822
    %v1847 = vtanh.pop %v1823
    %v1848 = vtanh.pop %v1824
    %v1849 = vtanh.pop %v1825
    %v1850 = vtanh.pop %v1826
    %v1851 = vtanh.pop %v1827
    %v1852 = vtanh.pop %v1828
    %v1853 = vtanh.pop %v1829
    %v1854 = vtanh.pop %v1830
    %v1855 = vtanh.pop %v1831
    %v1856 = vadd.f32 %v1832, 1.0
    %v1857 = vadd.f32 %v1833, 1.0
    %v1858 = vadd.f32 %v1834, 1.0
    %v1859 = vadd.f32 %v1835, 1.0
    %v1860 = vadd.f32 %v1836, 1.0
    %v1861 = vadd.f32 %v1837, 1.0
    %v1862 = vadd.f32 %v1838, 1.0
    %v1863 = vadd.f32 %v1839, 1.0
    %v1864 = vadd.f32 %v1840, 1.0
    %v1865 = vadd.f32 %v1841, 1.0
    %v1866 = vadd.f32 %v1842, 1.0
    %v1867 = vadd.f32 %v1843, 1.0
    %v1868 = vadd.f32 %v1844, 1.0
    %v1869 = vadd.f32 %v1845, 1.0
    %v1870 = vadd.f32 %v1846, 1.0
    %v1871 = vadd.f32 %v1847, 1.0
    %v1872 = vadd.f32 %v1848, 1.0
    %v1873 = vadd.f32 %v1849, 1.0
    %v1874 = vadd.f32 %v1850, 1.0
    %v1875 = vadd.f32 %v1851, 1.0
    %v1876 = vadd.f32 %v1852, 1.0
    %v1877 = vadd.f32 %v1853, 1.0
    %v1878 = vadd.f32 %v1854, 1.0
    %v1879 = vadd.f32 %v1855, 1.0
    %v1880 = vmul.f32 %v1688, %v1856
    %v1881 = vmul.f32 %v1689, %v1857
    %v1882 = vmul.f32 %v1690, %v1858
    %v1883 = vmul.f32 %v1691, %v1859
    %v1884 = vmul.f32 %v1692, %v1860
    %v1885 = vmul.f32 %v1693, %v1861
    %v1886 = vmul.f32 %v1694, %v1862
    %v1887 = vmul.f32 %v1695, %v1863
    %v1888 = vmul.f32 %v1696, %v1864
    %v1889 = vmul.f32 %v1697, %v1865
    %v1890 = vmul.f32 %v1698, %v1866
    %v1891 = vmul.f32 %v1699, %v1867
    %v1892 = vmul.f32 %v1700, %v1868
    %v1893 = vmul.f32 %v1701, %v1869
    %v1894 = vmul.f32 %v1702, %v1870
    %v1895 = vmul.f32 %v1703, %v1871
    %v1896 = vmul.f32 %v1704, %v1872
    %v1897 = vmul.f32 %v1705, %v1873
    %v1898 = vmul.f32 %v1706, %v1874
    %v1899 = vmul.f32 %v1707, %v1875
    %v1900 = vmul.f32 %v1708, %v1876
    %v1901 = vmul.f32 %v1709, %v1877
    %v1902 = vmul.f32 %v1710, %v1878
    %v1903 = vmul.f32 %v1711, %v1879
    %v1904 = vpack.c.bf16 %v1884, %v1880
    %v1905 = vpack.c.bf16 %v1885, %v1881
    %v1906 = vpack.c.bf16 %v1886, %v1882
    %v1907 = vpack.c.bf16 %v1887, %v1883
    %v1908 = vpack.c.bf16 %v1892, %v1888
    %v1909 = vpack.c.bf16 %v1893, %v1889
    %v1910 = vpack.c.bf16 %v1894, %v1890
    %v1911 = vpack.c.bf16 %v1895, %v1891
    %v1912 = vpack.c.bf16 %v1900, %v1896
    %v1913 = vpack.c.bf16 %v1901, %v1897
    %v1914 = vpack.c.bf16 %v1902, %v1898
    %v1915 = vpack.c.bf16 %v1903, %v1899
    %v1916 = vld [vmem:[%s5] sm:$0xf]
    %v1917 = vld [vmem:[%s5 + $0x4] sm:$0xf]
    %v1918 = vld [vmem:[%s5 + $0x8] sm:$0xf]
    %v1919 = vld [vmem:[%s5 + $0xc] sm:$0xf]
    %v1920 = vld [vmem:[%s5 + $0x10] sm:$0xf]
    %v1921 = vld [vmem:[%s5 + $0x14] sm:$0xf]
    %v1922 = vld [vmem:[%s5 + $0x18] sm:$0xf]
    %v1923 = vld [vmem:[%s5 + $0x1c] sm:$0xf]
    %v1924 = vld [vmem:[%s5 + $0x20] sm:$0xf]
    %v1925 = vld [vmem:[%s5 + $0x24] sm:$0xf]
    %v1926 = vld [vmem:[%s5 + $0x28] sm:$0xf]
    %v1927 = vld [vmem:[%s5 + $0x2c] sm:$0xf]
    %v1928 = vld [vmem:[%s5 + $0x30] sm:$0xf]
    %v1929 = vld [vmem:[%s5 + $0x34] sm:$0xf]
    %v1930 = vld [vmem:[%s5 + $0x38] sm:$0xf]
    %v1931 = vld [vmem:[%s5 + $0x3c] sm:$0xf]
    %v1932 = vld [vmem:[%s5 + $0x40] sm:$0xf]
    %v1933 = vld [vmem:[%s5 + $0x44] sm:$0xf]
    %v1934 = vld [vmem:[%s5 + $0x48] sm:$0xf]
    %v1935 = vld [vmem:[%s5 + $0x4c] sm:$0xf]
    %v1936 = vld [vmem:[%s5 + $0x50] sm:$0xf]
    %v1937 = vld [vmem:[%s5 + $0x54] sm:$0xf]
    %v1938 = vld [vmem:[%s5 + $0x58] sm:$0xf]
    %v1939 = vld [vmem:[%s5 + $0x5c] sm:$0xf]
    %v1940 = vld [vmem:[%s5 + $0x60] sm:$0xf]
    %v1941 = vld [vmem:[%s5 + $0x64] sm:$0xf]
    %v1942 = vld [vmem:[%s5 + $0x68] sm:$0xf]
    %v1943 = vld [vmem:[%s5 + $0x6c] sm:$0xf]
    %v1944 = vld [vmem:[%s5 + $0x70] sm:$0xf]
    %v1945 = vld [vmem:[%s5 + $0x74] sm:$0xf]
    %v1946 = vld [vmem:[%s5 + $0x78] sm:$0xf]
    %v1947 = vld [vmem:[%s5 + $0x7c] sm:$0xf]
    %v1948 = vld [vmem:[%s5 + $0x80] sm:$0xf]
    %v1949 = vld [vmem:[%s5 + $0x84] sm:$0xf]
    %v1950 = vld [vmem:[%s5 + $0x88] sm:$0xf]
    %v1951 = vld [vmem:[%s5 + $0x8c] sm:$0xf]
    %v1952 = vld [vmem:[%s5 + $0x90] sm:$0xf]
    %v1953 = vld [vmem:[%s5 + $0x94] sm:$0xf]
    %v1954 = vld [vmem:[%s5 + $0x98] sm:$0xf]
    %v1955 = vld [vmem:[%s5 + $0x9c] sm:$0xf]
    %v1956 = vld [vmem:[%s5 + $0xa0] sm:$0xf]
    %v1957 = vld [vmem:[%s5 + $0xa4] sm:$0xf]
    %v1958 = vld [vmem:[%s5 + $0xa8] sm:$0xf]
    %v1959 = vld [vmem:[%s5 + $0xac] sm:$0xf]
    %v1960 = vld [vmem:[%s5 + $0xb0] sm:$0xf]
    %v1961 = vld [vmem:[%s5 + $0xb4] sm:$0xf]
    %v1962 = vld [vmem:[%s5 + $0xb8] sm:$0xf]
    %v1963 = vld [vmem:[%s5 + $0xbc] sm:$0xf]
    %v1964 = vld [vmem:[%s5 + $0xc0] sm:$0xf]
    %v1965 = vld [vmem:[%s5 + $0xc4] sm:$0xf]
    %v1966 = vld [vmem:[%s5 + $0xc8] sm:$0xf]
    %v1967 = vld [vmem:[%s5 + $0xcc] sm:$0xf]
    %v1968 = vld [vmem:[%s5 + $0xd0] sm:$0xf]
    %v1969 = vld [vmem:[%s5 + $0xd4] sm:$0xf]
    %v1970 = vld [vmem:[%s5 + $0xd8] sm:$0xf]
    %v1971 = vld [vmem:[%s5 + $0xdc] sm:$0xf]
    %v1972 = vld [vmem:[%s5 + $0xe0] sm:$0xf]
    %v1973 = vld [vmem:[%s5 + $0xe4] sm:$0xf]
    %v1974 = vld [vmem:[%s5 + $0xe8] sm:$0xf]
    %v1975 = vld [vmem:[%s5 + $0xec] sm:$0xf]
    %v1976 = vld [vmem:[%s5 + $0xf0] sm:$0xf]
    %v1977 = vld [vmem:[%s5 + $0xf4] sm:$0xf]
    %v1978 = vld [vmem:[%s5 + $0xf8] sm:$0xf]
    %v1979 = vld [vmem:[%s5 + $0xfc] sm:$0xf]
    %v1980 = vperm.slane %v58, 4
    %v2045 = vunpack.c.l.b16 %v1916
    %v2046 = vunpack.c.l.b16 %v1917
    %v2047 = vunpack.c.l.b16 %v1918
    %v2048 = vunpack.c.l.b16 %v1919
    %v2049 = vunpack.c.l.b16 %v1920
    %v2050 = vunpack.c.l.b16 %v1921
    %v2051 = vunpack.c.l.b16 %v1922
    %v2052 = vunpack.c.l.b16 %v1923
    %v2053 = vunpack.c.l.b16 %v1924
    %v2054 = vunpack.c.l.b16 %v1925
    %v2055 = vunpack.c.l.b16 %v1926
    %v2056 = vunpack.c.l.b16 %v1927
    %v2057 = vunpack.c.l.b16 %v1928
    %v2058 = vunpack.c.l.b16 %v1929
    %v2059 = vunpack.c.l.b16 %v1930
    %v2060 = vunpack.c.l.b16 %v1931
    %v2061 = vunpack.c.l.b16 %v1932
    %v2062 = vunpack.c.l.b16 %v1933
    %v2063 = vunpack.c.l.b16 %v1934
    %v2064 = vunpack.c.l.b16 %v1935
    %v2065 = vunpack.c.l.b16 %v1936
    %v2066 = vunpack.c.l.b16 %v1937
    %v2067 = vunpack.c.l.b16 %v1938
    %v2068 = vunpack.c.l.b16 %v1939
    %v2069 = vunpack.c.l.b16 %v1940
    %v2070 = vunpack.c.l.b16 %v1941
    %v2071 = vunpack.c.l.b16 %v1942
    %v2072 = vunpack.c.l.b16 %v1943
    %v2073 = vunpack.c.l.b16 %v1944
    %v2074 = vunpack.c.l.b16 %v1945
    %v2075 = vunpack.c.l.b16 %v1946
    %v2076 = vunpack.c.l.b16 %v1947
    %v2077 = vunpack.c.l.b16 %v1948
    %v2078 = vunpack.c.l.b16 %v1949
    %v2079 = vunpack.c.l.b16 %v1950
    %v2080 = vunpack.c.l.b16 %v1951
    %v2081 = vunpack.c.l.b16 %v1952
    %v2082 = vunpack.c.l.b16 %v1953
    %v2083 = vunpack.c.l.b16 %v1954
    %v2084 = vunpack.c.l.b16 %v1955
    %v2085 = vunpack.c.l.b16 %v1956
    %v2086 = vunpack.c.l.b16 %v1957
    %v2087 = vunpack.c.l.b16 %v1958
    %v2088 = vunpack.c.l.b16 %v1959
    %v2089 = vunpack.c.l.b16 %v1960
    %v2090 = vunpack.c.l.b16 %v1961
    %v2091 = vunpack.c.l.b16 %v1962
    %v2092 = vunpack.c.l.b16 %v1963
    %v2093 = vunpack.c.l.b16 %v1964
    %v2094 = vunpack.c.l.b16 %v1965
    %v2095 = vunpack.c.l.b16 %v1966
    %v2096 = vunpack.c.l.b16 %v1967
    %v2097 = vunpack.c.l.b16 %v1968
    %v2098 = vunpack.c.l.b16 %v1969
    %v2099 = vunpack.c.l.b16 %v1970
    %v2100 = vunpack.c.l.b16 %v1971
    %v2101 = vunpack.c.l.b16 %v1972
    %v2102 = vunpack.c.l.b16 %v1973
    %v2103 = vunpack.c.l.b16 %v1974
    %v2104 = vunpack.c.l.b16 %v1975
    %v2105 = vunpack.c.l.b16 %v1976
    %v2106 = vunpack.c.l.b16 %v1977
    %v2107 = vunpack.c.l.b16 %v1978
    %v2108 = vunpack.c.l.b16 %v1979
    %v2109 = vpack.c.b16 %v2046, %v2045
    %v2110 = vpack.c.b16 %v2048, %v2047
    %v2111 = vpack.c.b16 %v2050, %v2049
    %v2112 = vpack.c.b16 %v2052, %v2051
    %v2113 = vpack.c.b16 %v2054, %v2053
    %v2114 = vpack.c.b16 %v2056, %v2055
    %v2115 = vpack.c.b16 %v2058, %v2057
    %v2116 = vpack.c.b16 %v2060, %v2059
    %v2117 = vpack.c.b16 %v2062, %v2061
    %v2118 = vpack.c.b16 %v2064, %v2063
    %v2119 = vpack.c.b16 %v2066, %v2065
    %v2120 = vpack.c.b16 %v2068, %v2067
    %v2121 = vpack.c.b16 %v2070, %v2069
    %v2122 = vpack.c.b16 %v2072, %v2071
    %v2123 = vpack.c.b16 %v2074, %v2073
    %v2124 = vpack.c.b16 %v2076, %v2075
    %v2125 = vpack.c.b16 %v2078, %v2077
    %v2126 = vpack.c.b16 %v2080, %v2079
    %v2127 = vpack.c.b16 %v2082, %v2081
    %v2128 = vpack.c.b16 %v2084, %v2083
    %v2129 = vpack.c.b16 %v2086, %v2085
    %v2130 = vpack.c.b16 %v2088, %v2087
    %v2131 = vpack.c.b16 %v2090, %v2089
    %v2132 = vpack.c.b16 %v2092, %v2091
    %v2133 = vpack.c.b16 %v2094, %v2093
    %v2134 = vpack.c.b16 %v2096, %v2095
    %v2135 = vpack.c.b16 %v2098, %v2097
    %v2136 = vpack.c.b16 %v2100, %v2099
    %v2137 = vpack.c.b16 %v2102, %v2101
    %v2138 = vpack.c.b16 %v2104, %v2103
    %v2139 = vpack.c.b16 %v2106, %v2105
    %v2140 = vpack.c.b16 %v2108, %v2107
    %2173 = vmatpush.bf16.msra.mxu0 %v2116
    %2174 = vmatpush.bf16.msra.mxu0 %v2115
    %2175 = vmatpush.bf16.msra.mxu0 %v2114
    %2176 = vmatpush.bf16.msra.mxu0 %v2113
    %2177 = vmatpush.bf16.msra.mxu0 %v2112
    %2178 = vmatpush.bf16.msra.mxu0 %v2111
    %2179 = vmatpush.bf16.msra.mxu0 %v2110
    %2180 = vmatpush.bf16.msra.mxu0 %v2109
    %2181 = vmatmul.bf16.gmra.mxu0 %v1904
    %v2182 = vpop.f32.mrf.mxu0
    %v2183 = vadd.f32 %v1980, %v2182
    %v2184 = vpop.f32.mrf.mxu0
    %v2185 = vadd.f32 %v1980, %v2184
    %2186 = vmatmul.bf16.gmra.mxu0 %v1908
    %v2187 = vpop.f32.mrf.mxu0
    %v2188 = vadd.f32 %v1980, %v2187
    %v2189 = vpop.f32.mrf.mxu0
    %v2190 = vadd.f32 %v1980, %v2189
    %2191 = vmatmul.bf16.gmra.mxu0 %v1912
    %v2192 = vpop.f32.mrf.mxu0
    %v2193 = vadd.f32 %v1980, %v2192
    %v2194 = vpop.f32.mrf.mxu0
    %v2195 = vadd.f32 %v1980, %v2194
    %2196 = vdwg.mxu0
    %2197 = vmatpush.bf16.msra.mxu0 %v2124
    %2198 = vmatpush.bf16.msra.mxu0 %v2123
    %2199 = vmatpush.bf16.msra.mxu0 %v2122
    %2200 = vmatpush.bf16.msra.mxu0 %v2121
    %2201 = vmatpush.bf16.msra.mxu0 %v2120
    %2202 = vmatpush.bf16.msra.mxu0 %v2119
    %2203 = vmatpush.bf16.msra.mxu0 %v2118
    %2204 = vmatpush.bf16.msra.mxu0 %v2117
    %2205 = vmatmul.bf16.gmra.mxu0 %v1905
    %v2206 = vpop.f32.mrf.mxu0
    %v2207 = vadd.f32 %v2183, %v2206
    %v2208 = vpop.f32.mrf.mxu0
    %v2209 = vadd.f32 %v2185, %v2208
    %2210 = vmatmul.bf16.gmra.mxu0 %v1909
    %v2211 = vpop.f32.mrf.mxu0
    %v2212 = vadd.f32 %v2188, %v2211
    %v2213 = vpop.f32.mrf.mxu0
    %v2214 = vadd.f32 %v2190, %v2213
    %2215 = vmatmul.bf16.gmra.mxu0 %v1913
    %v2216 = vpop.f32.mrf.mxu0
    %v2217 = vadd.f32 %v2193, %v2216
    %v2218 = vpop.f32.mrf.mxu0
    %v2219 = vadd.f32 %v2195, %v2218
    %2220 = vdwg.mxu0
    %2221 = vmatpush.bf16.msra.mxu0 %v2132
    %2222 = vmatpush.bf16.msra.mxu0 %v2131
    %2223 = vmatpush.bf16.msra.mxu0 %v2130
    %2224 = vmatpush.bf16.msra.mxu0 %v2129
    %2225 = vmatpush.bf16.msra.mxu0 %v2128
    %2226 = vmatpush.bf16.msra.mxu0 %v2127
    %2227 = vmatpush.bf16.msra.mxu0 %v2126
    %2228 = vmatpush.bf16.msra.mxu0 %v2125
    %2229 = vmatmul.bf16.gmra.mxu0 %v1906
    %v2230 = vpop.f32.mrf.mxu0
    %v2231 = vadd.f32 %v2207, %v2230
    %v2232 = vpop.f32.mrf.mxu0
    %v2233 = vadd.f32 %v2209, %v2232
    %2234 = vmatmul.bf16.gmra.mxu0 %v1910
    %v2235 = vpop.f32.mrf.mxu0
    %v2236 = vadd.f32 %v2212, %v2235
    %v2237 = vpop.f32.mrf.mxu0
    %v2238 = vadd.f32 %v2214, %v2237
    %2239 = vmatmul.bf16.gmra.mxu0 %v1914
    %v2240 = vpop.f32.mrf.mxu0
    %v2241 = vadd.f32 %v2217, %v2240
    %v2242 = vpop.f32.mrf.mxu0
    %v2243 = vadd.f32 %v2219, %v2242
    %2244 = vdwg.mxu0
    %2245 = vmatpush.bf16.msra.mxu0 %v2140
    %2246 = vmatpush.bf16.msra.mxu0 %v2139
    %2247 = vmatpush.bf16.msra.mxu0 %v2138
    %2248 = vmatpush.bf16.msra.mxu0 %v2137
    %2249 = vmatpush.bf16.msra.mxu0 %v2136
    %2250 = vmatpush.bf16.msra.mxu0 %v2135
    %2251 = vmatpush.bf16.msra.mxu0 %v2134
    %2252 = vmatpush.bf16.msra.mxu0 %v2133
    %2253 = vmatmul.bf16.gmra.mxu0 %v1907
    %v2254 = vpop.f32.mrf.mxu0
    %v2255 = vadd.f32 %v2231, %v2254
    %v2256 = vpop.f32.mrf.mxu0
    %v2257 = vadd.f32 %v2233, %v2256
    %2258 = vmatmul.bf16.gmra.mxu0 %v1911
    %v2259 = vpop.f32.mrf.mxu0
    %v2260 = vadd.f32 %v2236, %v2259
    %v2261 = vpop.f32.mrf.mxu0
    %v2262 = vadd.f32 %v2238, %v2261
    %2263 = vmatmul.bf16.gmra.mxu0 %v1915
    %v2264 = vpop.f32.mrf.mxu0
    %v2265 = vadd.f32 %v2241, %v2264
    %v2266 = vpop.f32.mrf.mxu0
    %v2267 = vadd.f32 %v2243, %v2266
    %2268 = vdwg.mxu0
    %v2269 = vadd.f32 %v1381, %v2255
    %v2270 = vadd.f32 %v1382, %v2257
    %v2271 = vadd.f32 %v1383, %v2260
    %v2272 = vadd.f32 %v1384, %v2262
    %v2273 = vadd.f32 %v1385, %v2265
    %v2274 = vadd.f32 %v1386, %v2267
    %2275 = vadd.xlane.f32.xlu0 %v2269
    %v2276 = vpop.xlane.xlu0 %2275
    %2277 = vadd.xlane.f32.xlu0 %v2270
    %v2278 = vpop.xlane.xlu0 %2277
    %2279 = vadd.xlane.f32.xlu0 %v2271
    %v2280 = vpop.xlane.xlu0 %2279
    %2281 = vadd.xlane.f32.xlu0 %v2272
    %v2282 = vpop.xlane.xlu0 %2281
    %2283 = vadd.xlane.f32.xlu0 %v2273
    %v2284 = vpop.xlane.xlu0 %2283
    %2285 = vadd.xlane.f32.xlu0 %v2274
    %v2286 = vpop.xlane.xlu0 %2285
    %v2287 = vmul.f32 %v2276, %v1264
    %v2288 = vmul.f32 %v2278, %v1264
    %v2289 = vmul.f32 %v2280, %v1264
    %v2290 = vmul.f32 %v2282, %v1264
    %v2291 = vmul.f32 %v2284, %v1264
    %v2292 = vmul.f32 %v2286, %v1264
    %v2293 = vsub.f32 %v2269, %v2287
    %v2294 = vsub.f32 %v2270, %v2288
    %v2295 = vsub.f32 %v2271, %v2289
    %v2296 = vsub.f32 %v2272, %v2290
    %v2297 = vsub.f32 %v2273, %v2291
    %v2298 = vsub.f32 %v2274, %v2292
    %v2299 = vmul.f32 %v2293, %v2293
    %v2300 = vmul.f32 %v2294, %v2294
    %v2301 = vmul.f32 %v2295, %v2295
    %v2302 = vmul.f32 %v2296, %v2296
    %v2303 = vmul.f32 %v2297, %v2297
    %v2304 = vmul.f32 %v2298, %v2298
    %2305 = vadd.xlane.f32.xlu0 %v2299
    %v2306 = vpop.xlane.xlu0 %2305
    %2307 = vadd.xlane.f32.xlu0 %v2300
    %v2308 = vpop.xlane.xlu0 %2307
    %2309 = vadd.xlane.f32.xlu0 %v2301
    %v2310 = vpop.xlane.xlu0 %2309
    %2311 = vadd.xlane.f32.xlu0 %v2302
    %v2312 = vpop.xlane.xlu0 %2311
    %2313 = vadd.xlane.f32.xlu0 %v2303
    %v2314 = vpop.xlane.xlu0 %2313
    %2315 = vadd.xlane.f32.xlu0 %v2304
    %v2316 = vpop.xlane.xlu0 %2315
    %v2317 = vmul.f32 %v2306, %v1264
    %v2318 = vmul.f32 %v2308, %v1264
    %v2319 = vmul.f32 %v2310, %v1264
    %v2320 = vmul.f32 %v2312, %v1264
    %v2321 = vmul.f32 %v2314, %v1264
    %v2322 = vmul.f32 %v2316, %v1264
    %v2323 = vadd.f32 %v2317, 1e-05
    %v2324 = vadd.f32 %v2318, 1e-05
    %v2325 = vadd.f32 %v2319, 1e-05
    %v2326 = vadd.f32 %v2320, 1e-05
    %v2327 = vadd.f32 %v2321, 1e-05
    %v2328 = vadd.f32 %v2322, 1e-05
    %v2329 = vrsqrt.pop %v2323
    %v2330 = vmul.f32 %v2329, %v2323
    %v2331 = vmul.f32 %v2330, %v2329
    %v2332 = vmul.f32 0.5, %v2331
    %v2333 = vsub.f32 1.5, %v2332
    %v2334 = vmul.f32 %v2329, %v2333
    %vm2335 = vweird.f32 %v2323
    %vm2336 = vweird.f32 %v2329
    %vm2337 = vmor %vm2335, %vm2336
    %v2338 = vsel %vm2337, %v2329, %v2334
    %v2339 = vrsqrt.pop %v2324
    %v2340 = vmul.f32 %v2339, %v2324
    %v2341 = vmul.f32 %v2340, %v2339
    %v2342 = vmul.f32 0.5, %v2341
    %v2343 = vsub.f32 1.5, %v2342
    %v2344 = vmul.f32 %v2339, %v2343
    %vm2345 = vweird.f32 %v2324
    %vm2346 = vweird.f32 %v2339
    %vm2347 = vmor %vm2345, %vm2346
    %v2348 = vsel %vm2347, %v2339, %v2344
    %v2349 = vrsqrt.pop %v2325
    %v2350 = vmul.f32 %v2349, %v2325
    %v2351 = vmul.f32 %v2350, %v2349
    %v2352 = vmul.f32 0.5, %v2351
    %v2353 = vsub.f32 1.5, %v2352
    %v2354 = vmul.f32 %v2349, %v2353
    %vm2355 = vweird.f32 %v2325
    %vm2356 = vweird.f32 %v2349
    %vm2357 = vmor %vm2355, %vm2356
    %v2358 = vsel %vm2357, %v2349, %v2354
    %v2359 = vrsqrt.pop %v2326
    %v2360 = vmul.f32 %v2359, %v2326
    %v2361 = vmul.f32 %v2360, %v2359
    %v2362 = vmul.f32 0.5, %v2361
    %v2363 = vsub.f32 1.5, %v2362
    %v2364 = vmul.f32 %v2359, %v2363
    %vm2365 = vweird.f32 %v2326
    %vm2366 = vweird.f32 %v2359
    %vm2367 = vmor %vm2365, %vm2366
    %v2368 = vsel %vm2367, %v2359, %v2364
    %v2369 = vrsqrt.pop %v2327
    %v2370 = vmul.f32 %v2369, %v2327
    %v2371 = vmul.f32 %v2370, %v2369
    %v2372 = vmul.f32 0.5, %v2371
    %v2373 = vsub.f32 1.5, %v2372
    %v2374 = vmul.f32 %v2369, %v2373
    %vm2375 = vweird.f32 %v2327
    %vm2376 = vweird.f32 %v2369
    %vm2377 = vmor %vm2375, %vm2376
    %v2378 = vsel %vm2377, %v2369, %v2374
    %v2379 = vrsqrt.pop %v2328
    %v2380 = vmul.f32 %v2379, %v2328
    %v2381 = vmul.f32 %v2380, %v2379
    %v2382 = vmul.f32 0.5, %v2381
    %v2383 = vsub.f32 1.5, %v2382
    %v2384 = vmul.f32 %v2379, %v2383
    %vm2385 = vweird.f32 %v2328
    %vm2386 = vweird.f32 %v2379
    %vm2387 = vmor %vm2385, %vm2386
    %v2388 = vsel %vm2387, %v2379, %v2384
    %v2389 = vmul.f32 %v2293, %v2338
    %v2390 = vmul.f32 %v2294, %v2348
    %v2391 = vmul.f32 %v2295, %v2358
    %v2392 = vmul.f32 %v2296, %v2368
    %v2393 = vmul.f32 %v2297, %v2378
    %v2394 = vmul.f32 %v2298, %v2388
    %v2395 = vperm.slane %v58, 7
    %v2396 = vmul.f32 %v2389, %v2395
    %v2397 = vmul.f32 %v2390, %v2395
    %v2398 = vmul.f32 %v2391, %v2395
    %v2399 = vmul.f32 %v2392, %v2395
    %v2400 = vmul.f32 %v2393, %v2395
    %v2401 = vmul.f32 %v2394, %v2395
    %v2402 = vperm.slane %v59, 0
    %v2403 = vadd.f32 %v2396, %v2402
    %v2404 = vadd.f32 %v2397, %v2402
    %v2405 = vadd.f32 %v2398, %v2402
    %v2406 = vadd.f32 %v2399, %v2402
    %v2407 = vadd.f32 %v2400, %v2402
    %v2408 = vadd.f32 %v2401, %v2402
    %s2409 = scalar_lea.vmem %s7, 16
    %v2410 = vld [vmem:[%s2409] sm:$0xff]
    %v2411 = vld [vmem:[%s2409 + $0x8] sm:$0x1]
    %v2412 = vpack.c.bf16 %v2404, %v2403
    %v2413 = vpack.c.bf16 %v2406, %v2405
    %v2414 = vpack.c.bf16 %v2408, %v2407
    %s2415 = scalar_lea.vmem [#allocation2], 192
    %v2416 = vld [vmem:[%s2415] sm:$0xff]
    %v2417 = vld [vmem:[%s2415 + $0x8] sm:$0xf]
    %v2418 = vld [vmem:[%s2415 + $0xc] sm:$0xff]
    %v2419 = vld [vmem:[%s2415 + $0x14] sm:$0xf]
    %v2420 = vld [vmem:[%s2415 + $0x18] sm:$0xff]
    %v2421 = vld [vmem:[%s2415 + $0x20] sm:$0xf]
    %v2422 = vld [vmem:[%s2415 + $0x24] sm:$0xff]
    %v2423 = vld [vmem:[%s2415 + $0x2c] sm:$0xf]
    %v2424 = vld [vmem:[%s2415 + $0x30] sm:$0xff]
    %v2425 = vld [vmem:[%s2415 + $0x38] sm:$0xf]
    %v2426 = vld [vmem:[%s2415 + $0x3c] sm:$0xff]
    %v2427 = vld [vmem:[%s2415 + $0x44] sm:$0xf]
    %v2428 = vld [vmem:[%s2415 + $0x48] sm:$0xff]
    %v2429 = vld [vmem:[%s2415 + $0x50] sm:$0xf]
    %v2430 = vld [vmem:[%s2415 + $0x54] sm:$0xff]
    %v2431 = vld [vmem:[%s2415 + $0x5c] sm:$0xf]
    %v2432 = vld [vmem:[%s2415 + $0x60] sm:$0xff]
    %v2433 = vld [vmem:[%s2415 + $0x68] sm:$0xf]
    %v2434 = vld [vmem:[%s2415 + $0x6c] sm:$0xff]
    %v2435 = vld [vmem:[%s2415 + $0x74] sm:$0xf]
    %v2436 = vld [vmem:[%s2415 + $0x78] sm:$0xff]
    %v2437 = vld [vmem:[%s2415 + $0x80] sm:$0xf]
    %v2438 = vld [vmem:[%s2415 + $0x84] sm:$0xff]
    %v2439 = vld [vmem:[%s2415 + $0x8c] sm:$0xf]
    %v2440 = vld [vmem:[%s2415 + $0x90] sm:$0xff]
    %v2441 = vld [vmem:[%s2415 + $0x98] sm:$0xf]
    %v2442 = vld [vmem:[%s2415 + $0x9c] sm:$0xff]
    %v2443 = vld [vmem:[%s2415 + $0xa4] sm:$0xf]
    %v2444 = vld [vmem:[%s2415 + $0xa8] sm:$0xff]
    %v2445 = vld [vmem:[%s2415 + $0xb0] sm:$0xf]
    %v2446 = vld [vmem:[%s2415 + $0xb4] sm:$0xff]
    %v2447 = vld [vmem:[%s2415 + $0xbc] sm:$0xf]
    %v2480 = vunpack.c.l.b16 %v2416
    %v2481 = vunpack.c.h.b16 %v2416
    %v2482 = vunpack.c.l.b16 %v2417
    %v2483 = vunpack.c.l.b16 %v2418
    %v2484 = vunpack.c.h.b16 %v2418
    %v2485 = vunpack.c.l.b16 %v2419
    %v2486 = vunpack.c.l.b16 %v2420
    %v2487 = vunpack.c.h.b16 %v2420
    %v2488 = vunpack.c.l.b16 %v2421
    %v2489 = vunpack.c.l.b16 %v2422
    %v2490 = vunpack.c.h.b16 %v2422
    %v2491 = vunpack.c.l.b16 %v2423
    %v2492 = vunpack.c.l.b16 %v2424
    %v2493 = vunpack.c.h.b16 %v2424
    %v2494 = vunpack.c.l.b16 %v2425
    %v2495 = vunpack.c.l.b16 %v2426
    %v2496 = vunpack.c.h.b16 %v2426
    %v2497 = vunpack.c.l.b16 %v2427
    %v2498 = vunpack.c.l.b16 %v2428
    %v2499 = vunpack.c.h.b16 %v2428
    %v2500 = vunpack.c.l.b16 %v2429
    %v2501 = vunpack.c.l.b16 %v2430
    %v2502 = vunpack.c.h.b16 %v2430
    %v2503 = vunpack.c.l.b16 %v2431
    %v2504 = vunpack.c.l.b16 %v2432
    %v2505 = vunpack.c.h.b16 %v2432
    %v2506 = vunpack.c.l.b16 %v2433
    %v2507 = vunpack.c.l.b16 %v2434
    %v2508 = vunpack.c.h.b16 %v2434
    %v2509 = vunpack.c.l.b16 %v2435
    %v2510 = vunpack.c.l.b16 %v2436
    %v2511 = vunpack.c.h.b16 %v2436
    %v2512 = vunpack.c.l.b16 %v2437
    %v2513 = vunpack.c.l.b16 %v2438
    %v2514 = vunpack.c.h.b16 %v2438
    %v2515 = vunpack.c.l.b16 %v2439
    %v2516 = vunpack.c.l.b16 %v2440
    %v2517 = vunpack.c.h.b16 %v2440
    %v2518 = vunpack.c.l.b16 %v2441
    %v2519 = vunpack.c.l.b16 %v2442
    %v2520 = vunpack.c.h.b16 %v2442
    %v2521 = vunpack.c.l.b16 %v2443
    %v2522 = vunpack.c.l.b16 %v2444
    %v2523 = vunpack.c.h.b16 %v2444
    %v2524 = vunpack.c.l.b16 %v2445
    %v2525 = vunpack.c.l.b16 %v2446
    %v2526 = vunpack.c.h.b16 %v2446
    %v2527 = vunpack.c.l.b16 %v2447
    %v2528 = vpack.c.b16 %v2483, %v2480
    %v2529 = vpack.c.b16 %v2484, %v2481
    %v2530 = vpack.c.b16 %v2485, %v2482
    %v2531 = vpack.c.b16 %v2489, %v2486
    %v2532 = vpack.c.b16 %v2490, %v2487
    %v2533 = vpack.c.b16 %v2491, %v2488
    %v2534 = vpack.c.b16 %v2495, %v2492
    %v2535 = vpack.c.b16 %v2496, %v2493
    %v2536 = vpack.c.b16 %v2497, %v2494
    %v2537 = vpack.c.b16 %v2501, %v2498
    %v2538 = vpack.c.b16 %v2502, %v2499
    %v2539 = vpack.c.b16 %v2503, %v2500
    %v2540 = vpack.c.b16 %v2507, %v2504
    %v2541 = vpack.c.b16 %v2508, %v2505
    %v2542 = vpack.c.b16 %v2509, %v2506
    %v2543 = vpack.c.b16 %v2513, %v2510
    %v2544 = vpack.c.b16 %v2514, %v2511
    %v2545 = vpack.c.b16 %v2515, %v2512
    %v2546 = vpack.c.b16 %v2519, %v2516
    %v2547 = vpack.c.b16 %v2520, %v2517
    %v2548 = vpack.c.b16 %v2521, %v2518
    %v2549 = vpack.c.b16 %v2525, %v2522
    %v2550 = vpack.c.b16 %v2526, %v2523
    %v2551 = vpack.c.b16 %v2527, %v2524
    %2576 = vmatpush.bf16.msra.mxu0 %v2549
    %2577 = vmatpush.bf16.msra.mxu0 %v2546
    %2578 = vmatpush.bf16.msra.mxu0 %v2543
    %2579 = vmatpush.bf16.msra.mxu0 %v2540
    %2580 = vmatpush.bf16.msra.mxu0 %v2537
    %2581 = vmatpush.bf16.msra.mxu0 %v2534
    %2582 = vmatpush.bf16.msra.mxu0 %v2531
    %2583 = vmatpush.bf16.msra.mxu0 %v2528
    %2584 = vmatmul.bf16.gmra.mxu0 %v2412
    %v2585 = vpop.f32.mrf.mxu0
    %v2586 = vadd.f32 0.0, %v2585
    %v2587 = vpop.f32.mrf.mxu0
    %v2588 = vadd.f32 0.0, %v2587
    %2589 = vmatmul.bf16.gmra.mxu0 %v2413
    %v2590 = vpop.f32.mrf.mxu0
    %v2591 = vadd.f32 0.0, %v2590
    %v2592 = vpop.f32.mrf.mxu0
    %v2593 = vadd.f32 0.0, %v2592
    %2594 = vmatmul.bf16.gmra.mxu0 %v2414
    %v2595 = vpop.f32.mrf.mxu0
    %v2596 = vadd.f32 0.0, %v2595
    %v2597 = vpop.f32.mrf.mxu0
    %v2598 = vadd.f32 0.0, %v2597
    %2599 = vdwg.mxu0
    %2600 = vmatpush.bf16.msra.mxu0 %v2550
    %2601 = vmatpush.bf16.msra.mxu0 %v2547
    %2602 = vmatpush.bf16.msra.mxu0 %v2544
    %2603 = vmatpush.bf16.msra.mxu0 %v2541
    %2604 = vmatpush.bf16.msra.mxu0 %v2538
    %2605 = vmatpush.bf16.msra.mxu0 %v2535
    %2606 = vmatpush.bf16.msra.mxu0 %v2532
    %2607 = vmatpush.bf16.msra.mxu0 %v2529
    %2608 = vmatmul.bf16.gmra.mxu0 %v2412
    %v2609 = vpop.f32.mrf.mxu0
    %v2610 = vadd.f32 0.0, %v2609
    %v2611 = vpop.f32.mrf.mxu0
    %v2612 = vadd.f32 0.0, %v2611
    %2613 = vmatmul.bf16.gmra.mxu0 %v2413
    %v2614 = vpop.f32.mrf.mxu0
    %v2615 = vadd.f32 0.0, %v2614
    %v2616 = vpop.f32.mrf.mxu0
    %v2617 = vadd.f32 0.0, %v2616
    %2618 = vmatmul.bf16.gmra.mxu0 %v2414
    %v2619 = vpop.f32.mrf.mxu0
    %v2620 = vadd.f32 0.0, %v2619
    %v2621 = vpop.f32.mrf.mxu0
    %v2622 = vadd.f32 0.0, %v2621
    %2623 = vdwg.mxu0
    %2624 = vmatpush.bf16.msra.mxu0 %v2551
    %2625 = vmatpush.bf16.msra.mxu0 %v2548
    %2626 = vmatpush.bf16.msra.mxu0 %v2545
    %2627 = vmatpush.bf16.msra.mxu0 %v2542
    %2628 = vmatpush.bf16.msra.mxu0 %v2539
    %2629 = vmatpush.bf16.msra.mxu0 %v2536
    %2630 = vmatpush.bf16.msra.mxu0 %v2533
    %2631 = vmatpush.bf16.msra.mxu0 %v2530
    %2632 = vmatmul.bf16.gmra.mxu0 %v2412
    %v2633 = vpop.f32.mrf.mxu0
    %v2634 = vadd.f32 0.0, %v2633
    %v2635 = vpop.f32.mrf.mxu0
    %v2636 = vadd.f32 0.0, %v2635
    %2637 = vmatmul.bf16.gmra.mxu0 %v2413
    %v2638 = vpop.f32.mrf.mxu0
    %v2639 = vadd.f32 0.0, %v2638
    %v2640 = vpop.f32.mrf.mxu0
    %v2641 = vadd.f32 0.0, %v2640
    %2642 = vmatmul.bf16.gmra.mxu0 %v2414
    %v2643 = vpop.f32.mrf.mxu0
    %v2644 = vadd.f32 0.0, %v2643
    %v2645 = vpop.f32.mrf.mxu0
    %v2646 = vadd.f32 0.0, %v2645
    %2647 = vdwg.mxu0
    %v2648 = vperm.slane %v2410, 0
    %v2649 = vadd.f32 %v2586, %v2648
    %v2650 = vadd.f32 %v2588, %v2648
    %v2651 = vadd.f32 %v2591, %v2648
    %v2652 = vadd.f32 %v2593, %v2648
    %v2653 = vadd.f32 %v2596, %v2648
    %v2654 = vadd.f32 %v2598, %v2648
    %v2655 = vperm.slane %v2410, 1
    %v2656 = vadd.f32 %v2610, %v2655
    %v2657 = vadd.f32 %v2612, %v2655
    %v2658 = vadd.f32 %v2615, %v2655
    %v2659 = vadd.f32 %v2617, %v2655
    %v2660 = vadd.f32 %v2620, %v2655
    %v2661 = vadd.f32 %v2622, %v2655
    %v2662 = vperm.slane %v2410, 2
    %v2663 = vadd.f32 %v2634, %v2662
    %v2664 = vadd.f32 %v2636, %v2662
    %v2665 = vadd.f32 %v2639, %v2662
    %v2666 = vadd.f32 %v2641, %v2662
    %v2667 = vadd.f32 %v2644, %v2662
    %v2668 = vadd.f32 %v2646, %v2662
    %v2669 = vpack.c.bf16 %v2650, %v2649
    %v2670 = vpack.c.bf16 %v2652, %v2651
    %v2671 = vpack.c.bf16 %v2654, %v2653
    %v2672 = vpack.c.bf16 %v2657, %v2656
    %v2673 = vpack.c.bf16 %v2659, %v2658
    %v2674 = vpack.c.bf16 %v2661, %v2660
    %v2675 = vpack.c.bf16 %v2664, %v2663
    %v2676 = vpack.c.bf16 %v2666, %v2665
    %v2677 = vpack.c.bf16 %v2668, %v2667
    %v2679 = vsel %vm325, %v2669, 0
    %v2682 = vsel %vm325, %v2670, 0
    %v2685 = vsel %vm325, %v2671, 0
    %v2688 = vsel %vm325, %v2672, 0
    %v2691 = vsel %vm325, %v2673, 0
    %v2694 = vsel %vm325, %v2674, 0
    %2696 = vmatpush.bf16.xpose.msra.mxu0 0
    %2697 = vmatpush.bf16.xpose.msra.mxu0 0
    %2698 = vmatpush.bf16.xpose.msra.mxu0 0
    %2699 = vmatpush.bf16.xpose.msra.mxu0 0
    %2700 = vmatpush.bf16.xpose.msra.mxu0 0
    %2701 = vmatpush.bf16.xpose.msra.mxu0 %v2694
    %2702 = vmatpush.bf16.xpose.msra.mxu0 %v2691
    %2703 = vmatpush.bf16.xpose.msra.mxu0 %v2688
    %2704 = vmatmul.bf16.gmra.mxu0 %v2679
    %v2705 = vpop.f32.mrf.mxu0
    %v2706 = vadd.f32 0.0, %v2705
    %v2707 = vpop.f32.mrf.mxu0
    %v2708 = vadd.f32 0.0, %v2707
    %2709 = vmatmul.bf16.gmra.mxu0 %v2682
    %v2710 = vpop.f32.mrf.mxu0
    %v2711 = vadd.f32 0.0, %v2710
    %v2712 = vpop.f32.mrf.mxu0
    %v2713 = vadd.f32 0.0, %v2712
    %2714 = vmatmul.bf16.gmra.mxu0 %v2685
    %v2715 = vpop.f32.mrf.mxu0
    %v2716 = vadd.f32 0.0, %v2715
    %v2717 = vpop.f32.mrf.mxu0
    %v2718 = vadd.f32 0.0, %v2717
    %2719 = vdwg.mxu0
    %v2720 = vmul.f32 %v2706, 0.17677669
    %v2721 = vmul.f32 %v2708, 0.17677669
    %v2722 = vmul.f32 %v2711, 0.17677669
    %v2723 = vmul.f32 %v2713, 0.17677669
    %v2724 = vmul.f32 %v2716, 0.17677669
    %v2725 = vmul.f32 %v2718, 0.17677669
    %v2726 = vadd.f32 %v2720, %v52
    %v2727 = vadd.f32 %v2721, %v53
    %v2728 = vadd.f32 %v2722, %v54
    %v2729 = vadd.f32 %v2723, %v55
    %v2730 = vadd.f32 %v2724, %v56
    %v2731 = vadd.f32 %v2725, %v57
    %v2732 = vsel %vm380, %v2726, -inf
    %2733 = vmax.xlane.f32.xlu0 %v2732
    %v2734 = vpop.xlane.xlu0 %2733
    %v2735 = vsel %vm380, %v2727, -inf
    %2736 = vmax.xlane.f32.xlu0 %v2735
    %v2737 = vpop.xlane.xlu0 %2736
    %v2738 = vsel %vm380, %v2728, -inf
    %2739 = vmax.xlane.f32.xlu0 %v2738
    %v2740 = vpop.xlane.xlu0 %2739
    %v2741 = vsel %vm380, %v2729, -inf
    %2742 = vmax.xlane.f32.xlu0 %v2741
    %v2743 = vpop.xlane.xlu0 %2742
    %v2744 = vsel %vm380, %v2730, -inf
    %2745 = vmax.xlane.f32.xlu0 %v2744
    %v2746 = vpop.xlane.xlu0 %2745
    %v2747 = vsel %vm380, %v2731, -inf
    %2748 = vmax.xlane.f32.xlu0 %v2747
    %v2749 = vpop.xlane.xlu0 %2748
    %v2750 = vsub.f32 %v2726, %v2734
    %v2751 = vsub.f32 %v2727, %v2737
    %v2752 = vsub.f32 %v2728, %v2740
    %v2753 = vsub.f32 %v2729, %v2743
    %v2754 = vsub.f32 %v2730, %v2746
    %v2755 = vsub.f32 %v2731, %v2749
    %v2756 = vmul.f32 %v2750, 1.442695
    %v2757 = vpow.pop %v2756
    %v2758 = vmul.f32 %v2751, 1.442695
    %v2759 = vpow.pop %v2758
    %v2760 = vmul.f32 %v2752, 1.442695
    %v2761 = vpow.pop %v2760
    %v2762 = vmul.f32 %v2753, 1.442695
    %v2763 = vpow.pop %v2762
    %v2764 = vmul.f32 %v2754, 1.442695
    %v2765 = vpow.pop %v2764
    %v2766 = vmul.f32 %v2755, 1.442695
    %v2767 = vpow.pop %v2766
    %v2768 = vsel %vm380, %v2757, 0.0
    %2769 = vadd.xlane.f32.xlu0 %v2768
    %v2770 = vpop.xlane.xlu0 %2769
    %v2771 = vsel %vm380, %v2759, 0.0
    %2772 = vadd.xlane.f32.xlu0 %v2771
    %v2773 = vpop.xlane.xlu0 %2772
    %v2774 = vsel %vm380, %v2761, 0.0
    %2775 = vadd.xlane.f32.xlu0 %v2774
    %v2776 = vpop.xlane.xlu0 %2775
    %v2777 = vsel %vm380, %v2763, 0.0
    %2778 = vadd.xlane.f32.xlu0 %v2777
    %v2779 = vpop.xlane.xlu0 %2778
    %v2780 = vsel %vm380, %v2765, 0.0
    %2781 = vadd.xlane.f32.xlu0 %v2780
    %v2782 = vpop.xlane.xlu0 %2781
    %v2783 = vsel %vm380, %v2767, 0.0
    %2784 = vadd.xlane.f32.xlu0 %v2783
    %v2785 = vpop.xlane.xlu0 %2784
    %v2786 = vrcp.pop %v2770
    %v2787 = vrcp.pop %v2773
    %v2788 = vrcp.pop %v2776
    %v2789 = vrcp.pop %v2779
    %v2790 = vrcp.pop %v2782
    %v2791 = vrcp.pop %v2785
    %v2792 = vmul.f32 %v2757, %v2786
    %v2793 = vmul.f32 %v2759, %v2787
    %v2794 = vmul.f32 %v2761, %v2788
    %v2795 = vmul.f32 %v2763, %v2789
    %v2796 = vmul.f32 %v2765, %v2790
    %v2797 = vmul.f32 %v2767, %v2791
    %v2798 = vpack.c.bf16 %v2793, %v2792
    %v2799 = vpack.c.bf16 %v2795, %v2794
    %v2800 = vpack.c.bf16 %v2797, %v2796
    %v2802 = vsel %vm380, %v2798, 0
    %v2805 = vsel %vm380, %v2799, 0
    %v2808 = vsel %vm380, %v2800, 0
    %2810 = vmatpush.bf16.msra.mxu0 0
    %2811 = vmatpush.bf16.msra.mxu0 0
    %2812 = vmatpush.bf16.msra.mxu0 0
    %2813 = vmatpush.bf16.msra.mxu0 0
    %2814 = vmatpush.bf16.msra.mxu0 0
    %2815 = vmatpush.bf16.msra.mxu0 %v2677
    %2816 = vmatpush.bf16.msra.mxu0 %v2676
    %2817 = vmatpush.bf16.msra.mxu0 %v2675
    %2818 = vmatmul.bf16.gmra.mxu0 %v2802
    %v2819 = vpop.f32.mrf.mxu0
    %v2820 = vadd.f32 0.0, %v2819
    %v2821 = vpop.f32.mrf.mxu0
    %v2822 = vadd.f32 0.0, %v2821
    %2823 = vmatmul.bf16.gmra.mxu0 %v2805
    %v2824 = vpop.f32.mrf.mxu0
    %v2825 = vadd.f32 0.0, %v2824
    %v2826 = vpop.f32.mrf.mxu0
    %v2827 = vadd.f32 0.0, %v2826
    %2828 = vmatmul.bf16.gmra.mxu0 %v2808
    %v2829 = vpop.f32.mrf.mxu0
    %v2830 = vadd.f32 0.0, %v2829
    %v2831 = vpop.f32.mrf.mxu0
    %v2832 = vadd.f32 0.0, %v2831
    %2833 = vdwg.mxu0
    %v2834 = vpack.c.bf16 %v2820, %v2820
    %v2835 = vpack.c.bf16 %v2822, %v2822
    %v2836 = vpack.c.bf16 %v2825, %v2825
    %v2837 = vpack.c.bf16 %v2827, %v2827
    %v2838 = vpack.c.bf16 %v2830, %v2830
    %v2839 = vpack.c.bf16 %v2832, %v2832
    %2843 = vrot.lane.b32.xlu0 %v2669, 96
    %v2844 = vpop.permute.xlu0 %2843
    %2845 = vrot.lane.b32.xlu0 %v2670, 96
    %v2846 = vpop.permute.xlu0 %2845
    %2847 = vrot.lane.b32.xlu0 %v2671, 96
    %v2848 = vpop.permute.xlu0 %2847
    %2852 = vrot.lane.b32.xlu0 %v2672, 96
    %v2853 = vpop.permute.xlu0 %2852
    %2854 = vrot.lane.b32.xlu0 %v2673, 96
    %v2855 = vpop.permute.xlu0 %2854
    %2856 = vrot.lane.b32.xlu0 %v2674, 96
    %v2857 = vpop.permute.xlu0 %2856
    %v2859 = vsel %vm325, %v2844, 0
    %v2862 = vsel %vm325, %v2846, 0
    %v2865 = vsel %vm325, %v2848, 0
    %v2868 = vsel %vm325, %v2853, 0
    %v2871 = vsel %vm325, %v2855, 0
    %v2874 = vsel %vm325, %v2857, 0
    %2876 = vmatpush.bf16.xpose.msra.mxu0 0
    %2877 = vmatpush.bf16.xpose.msra.mxu0 0
    %2878 = vmatpush.bf16.xpose.msra.mxu0 0
    %2879 = vmatpush.bf16.xpose.msra.mxu0 0
    %2880 = vmatpush.bf16.xpose.msra.mxu0 0
    %2881 = vmatpush.bf16.xpose.msra.mxu0 %v2874
    %2882 = vmatpush.bf16.xpose.msra.mxu0 %v2871
    %2883 = vmatpush.bf16.xpose.msra.mxu0 %v2868
    %2884 = vmatmul.bf16.gmra.mxu0 %v2859
    %v2885 = vpop.f32.mrf.mxu0
    %v2886 = vadd.f32 0.0, %v2885
    %v2887 = vpop.f32.mrf.mxu0
    %v2888 = vadd.f32 0.0, %v2887
    %2889 = vmatmul.bf16.gmra.mxu0 %v2862
    %v2890 = vpop.f32.mrf.mxu0
    %v2891 = vadd.f32 0.0, %v2890
    %v2892 = vpop.f32.mrf.mxu0
    %v2893 = vadd.f32 0.0, %v2892
    %2894 = vmatmul.bf16.gmra.mxu0 %v2865
    %v2895 = vpop.f32.mrf.mxu0
    %v2896 = vadd.f32 0.0, %v2895
    %v2897 = vpop.f32.mrf.mxu0
    %v2898 = vadd.f32 0.0, %v2897
    %2899 = vdwg.mxu0
    %v2900 = vmul.f32 %v2886, 0.17677669
    %v2901 = vmul.f32 %v2888, 0.17677669
    %v2902 = vmul.f32 %v2891, 0.17677669
    %v2903 = vmul.f32 %v2893, 0.17677669
    %v2904 = vmul.f32 %v2896, 0.17677669
    %v2905 = vmul.f32 %v2898, 0.17677669
    %v2906 = vadd.f32 %v2900, %v52
    %v2907 = vadd.f32 %v2901, %v53
    %v2908 = vadd.f32 %v2902, %v54
    %v2909 = vadd.f32 %v2903, %v55
    %v2910 = vadd.f32 %v2904, %v56
    %v2911 = vadd.f32 %v2905, %v57
    %v2912 = vsel %vm380, %v2906, -inf
    %2913 = vmax.xlane.f32.xlu0 %v2912
    %v2914 = vpop.xlane.xlu0 %2913
    %v2915 = vsel %vm380, %v2907, -inf
    %2916 = vmax.xlane.f32.xlu0 %v2915
    %v2917 = vpop.xlane.xlu0 %2916
    %v2918 = vsel %vm380, %v2908, -inf
    %2919 = vmax.xlane.f32.xlu0 %v2918
    %v2920 = vpop.xlane.xlu0 %2919
    %v2921 = vsel %vm380, %v2909, -inf
    %2922 = vmax.xlane.f32.xlu0 %v2921
    %v2923 = vpop.xlane.xlu0 %2922
    %v2924 = vsel %vm380, %v2910, -inf
    %2925 = vmax.xlane.f32.xlu0 %v2924
    %v2926 = vpop.xlane.xlu0 %2925
    %v2927 = vsel %vm380, %v2911, -inf
    %2928 = vmax.xlane.f32.xlu0 %v2927
    %v2929 = vpop.xlane.xlu0 %2928
    %v2930 = vsub.f32 %v2906, %v2914
    %v2931 = vsub.f32 %v2907, %v2917
    %v2932 = vsub.f32 %v2908, %v2920
    %v2933 = vsub.f32 %v2909, %v2923
    %v2934 = vsub.f32 %v2910, %v2926
    %v2935 = vsub.f32 %v2911, %v2929
    %v2936 = vmul.f32 %v2930, 1.442695
    %v2937 = vpow.pop %v2936
    %v2938 = vmul.f32 %v2931, 1.442695
    %v2939 = vpow.pop %v2938
    %v2940 = vmul.f32 %v2932, 1.442695
    %v2941 = vpow.pop %v2940
    %v2942 = vmul.f32 %v2933, 1.442695
    %v2943 = vpow.pop %v2942
    %v2944 = vmul.f32 %v2934, 1.442695
    %v2945 = vpow.pop %v2944
    %v2946 = vmul.f32 %v2935, 1.442695
    %v2947 = vpow.pop %v2946
    %v2948 = vsel %vm380, %v2937, 0.0
    %2949 = vadd.xlane.f32.xlu0 %v2948
    %v2950 = vpop.xlane.xlu0 %2949
    %v2951 = vsel %vm380, %v2939, 0.0
    %2952 = vadd.xlane.f32.xlu0 %v2951
    %v2953 = vpop.xlane.xlu0 %2952
    %v2954 = vsel %vm380, %v2941, 0.0
    %2955 = vadd.xlane.f32.xlu0 %v2954
    %v2956 = vpop.xlane.xlu0 %2955
    %v2957 = vsel %vm380, %v2943, 0.0
    %2958 = vadd.xlane.f32.xlu0 %v2957
    %v2959 = vpop.xlane.xlu0 %2958
    %v2960 = vsel %vm380, %v2945, 0.0
    %2961 = vadd.xlane.f32.xlu0 %v2960
    %v2962 = vpop.xlane.xlu0 %2961
    %v2963 = vsel %vm380, %v2947, 0.0
    %2964 = vadd.xlane.f32.xlu0 %v2963
    %v2965 = vpop.xlane.xlu0 %2964
    %v2966 = vrcp.pop %v2950
    %v2967 = vrcp.pop %v2953
    %v2968 = vrcp.pop %v2956
    %v2969 = vrcp.pop %v2959
    %v2970 = vrcp.pop %v2962
    %v2971 = vrcp.pop %v2965
    %v2972 = vmul.f32 %v2937, %v2966
    %v2973 = vmul.f32 %v2939, %v2967
    %v2974 = vmul.f32 %v2941, %v2968
    %v2975 = vmul.f32 %v2943, %v2969
    %v2976 = vmul.f32 %v2945, %v2970
    %v2977 = vmul.f32 %v2947, %v2971
    %v2978 = vpack.c.bf16 %v2973, %v2972
    %v2979 = vpack.c.bf16 %v2975, %v2974
    %v2980 = vpack.c.bf16 %v2977, %v2976
    %2984 = vrot.lane.b32.xlu0 %v2675, 96
    %v2985 = vpop.permute.xlu0 %2984
    %2986 = vrot.lane.b32.xlu0 %v2676, 96
    %v2987 = vpop.permute.xlu0 %2986
    %2988 = vrot.lane.b32.xlu0 %v2677, 96
    %v2989 = vpop.permute.xlu0 %2988
    %v2994 = vsel %vm380, %v2978, 0
    %v2997 = vsel %vm380, %v2979, 0
    %v3000 = vsel %vm380, %v2980, 0
    %3002 = vmatpush.bf16.msra.mxu0 0
    %3003 = vmatpush.bf16.msra.mxu0 0
    %3004 = vmatpush.bf16.msra.mxu0 0
    %3005 = vmatpush.bf16.msra.mxu0 0
    %3006 = vmatpush.bf16.msra.mxu0 0
    %3007 = vmatpush.bf16.msra.mxu0 %v2989
    %3008 = vmatpush.bf16.msra.mxu0 %v2987
    %3009 = vmatpush.bf16.msra.mxu0 %v2985
    %3010 = vmatmul.bf16.gmra.mxu0 %v2994
    %v3011 = vpop.f32.mrf.mxu0
    %v3012 = vadd.f32 0.0, %v3011
    %v3013 = vpop.f32.mrf.mxu0
    %v3014 = vadd.f32 0.0, %v3013
    %3015 = vmatmul.bf16.gmra.mxu0 %v2997
    %v3016 = vpop.f32.mrf.mxu0
    %v3017 = vadd.f32 0.0, %v3016
    %v3018 = vpop.f32.mrf.mxu0
    %v3019 = vadd.f32 0.0, %v3018
    %3020 = vmatmul.bf16.gmra.mxu0 %v3000
    %v3021 = vpop.f32.mrf.mxu0
    %v3022 = vadd.f32 0.0, %v3021
    %v3023 = vpop.f32.mrf.mxu0
    %v3024 = vadd.f32 0.0, %v3023
    %3025 = vdwg.mxu0
    %v3026 = vpack.c.bf16 %v3012, %v3012
    %v3027 = vpack.c.bf16 %v3014, %v3014
    %v3028 = vpack.c.bf16 %v3017, %v3017
    %v3029 = vpack.c.bf16 %v3019, %v3019
    %v3030 = vpack.c.bf16 %v3022, %v3022
    %v3031 = vpack.c.bf16 %v3024, %v3024
    %3032 = vrot.lane.b32.xlu0 %v2669, 64
    %v3033 = vpop.permute.xlu0 %3032
    %3034 = vrot.lane.b32.xlu0 %v2670, 64
    %v3035 = vpop.permute.xlu0 %3034
    %3036 = vrot.lane.b32.xlu0 %v2671, 64
    %v3037 = vpop.permute.xlu0 %3036
    %3038 = vrot.lane.b32.xlu0 %v2672, 64
    %v3039 = vpop.permute.xlu0 %3038
    %3040 = vrot.lane.b32.xlu0 %v2673, 64
    %v3041 = vpop.permute.xlu0 %3040
    %3042 = vrot.lane.b32.xlu0 %v2674, 64
    %v3043 = vpop.permute.xlu0 %3042
    %v3045 = vsel %vm325, %v3033, 0
    %v3048 = vsel %vm325, %v3035, 0
    %v3051 = vsel %vm325, %v3037, 0
    %v3054 = vsel %vm325, %v3039, 0
    %v3057 = vsel %vm325, %v3041, 0
    %v3060 = vsel %vm325, %v3043, 0
    %3062 = vmatpush.bf16.xpose.msra.mxu0 0
    %3063 = vmatpush.bf16.xpose.msra.mxu0 0
    %3064 = vmatpush.bf16.xpose.msra.mxu0 0
    %3065 = vmatpush.bf16.xpose.msra.mxu0 0
    %3066 = vmatpush.bf16.xpose.msra.mxu0 0
    %3067 = vmatpush.bf16.xpose.msra.mxu0 %v3060
    %3068 = vmatpush.bf16.xpose.msra.mxu0 %v3057
    %3069 = vmatpush.bf16.xpose.msra.mxu0 %v3054
    %3070 = vmatmul.bf16.gmra.mxu0 %v3045
    %v3071 = vpop.f32.mrf.mxu0
    %v3072 = vadd.f32 0.0, %v3071
    %v3073 = vpop.f32.mrf.mxu0
    %v3074 = vadd.f32 0.0, %v3073
    %3075 = vmatmul.bf16.gmra.mxu0 %v3048
    %v3076 = vpop.f32.mrf.mxu0
    %v3077 = vadd.f32 0.0, %v3076
    %v3078 = vpop.f32.mrf.mxu0
    %v3079 = vadd.f32 0.0, %v3078
    %3080 = vmatmul.bf16.gmra.mxu0 %v3051
    %v3081 = vpop.f32.mrf.mxu0
    %v3082 = vadd.f32 0.0, %v3081
    %v3083 = vpop.f32.mrf.mxu0
    %v3084 = vadd.f32 0.0, %v3083
    %3085 = vdwg.mxu0
    %v3086 = vmul.f32 %v3072, 0.17677669
    %v3087 = vmul.f32 %v3074, 0.17677669
    %v3088 = vmul.f32 %v3077, 0.17677669
    %v3089 = vmul.f32 %v3079, 0.17677669
    %v3090 = vmul.f32 %v3082, 0.17677669
    %v3091 = vmul.f32 %v3084, 0.17677669
    %v3092 = vadd.f32 %v3086, %v52
    %v3093 = vadd.f32 %v3087, %v53
    %v3094 = vadd.f32 %v3088, %v54
    %v3095 = vadd.f32 %v3089, %v55
    %v3096 = vadd.f32 %v3090, %v56
    %v3097 = vadd.f32 %v3091, %v57
    %v3098 = vsel %vm380, %v3092, -inf
    %3099 = vmax.xlane.f32.xlu0 %v3098
    %v3100 = vpop.xlane.xlu0 %3099
    %v3101 = vsel %vm380, %v3093, -inf
    %3102 = vmax.xlane.f32.xlu0 %v3101
    %v3103 = vpop.xlane.xlu0 %3102
    %v3104 = vsel %vm380, %v3094, -inf
    %3105 = vmax.xlane.f32.xlu0 %v3104
    %v3106 = vpop.xlane.xlu0 %3105
    %v3107 = vsel %vm380, %v3095, -inf
    %3108 = vmax.xlane.f32.xlu0 %v3107
    %v3109 = vpop.xlane.xlu0 %3108
    %v3110 = vsel %vm380, %v3096, -inf
    %3111 = vmax.xlane.f32.xlu0 %v3110
    %v3112 = vpop.xlane.xlu0 %3111
    %v3113 = vsel %vm380, %v3097, -inf
    %3114 = vmax.xlane.f32.xlu0 %v3113
    %v3115 = vpop.xlane.xlu0 %3114
    %v3116 = vsub.f32 %v3092, %v3100
    %v3117 = vsub.f32 %v3093, %v3103
    %v3118 = vsub.f32 %v3094, %v3106
    %v3119 = vsub.f32 %v3095, %v3109
    %v3120 = vsub.f32 %v3096, %v3112
    %v3121 = vsub.f32 %v3097, %v3115
    %v3122 = vmul.f32 %v3116, 1.442695
    %v3123 = vpow.pop %v3122
    %v3124 = vmul.f32 %v3117, 1.442695
    %v3125 = vpow.pop %v3124
    %v3126 = vmul.f32 %v3118, 1.442695
    %v3127 = vpow.pop %v3126
    %v3128 = vmul.f32 %v3119, 1.442695
    %v3129 = vpow.pop %v3128
    %v3130 = vmul.f32 %v3120, 1.442695
    %v3131 = vpow.pop %v3130
    %v3132 = vmul.f32 %v3121, 1.442695
    %v3133 = vpow.pop %v3132
    %v3134 = vsel %vm380, %v3123, 0.0
    %3135 = vadd.xlane.f32.xlu0 %v3134
    %v3136 = vpop.xlane.xlu0 %3135
    %v3137 = vsel %vm380, %v3125, 0.0
    %3138 = vadd.xlane.f32.xlu0 %v3137
    %v3139 = vpop.xlane.xlu0 %3138
    %v3140 = vsel %vm380, %v3127, 0.0
    %3141 = vadd.xlane.f32.xlu0 %v3140
    %v3142 = vpop.xlane.xlu0 %3141
    %v3143 = vsel %vm380, %v3129, 0.0
    %3144 = vadd.xlane.f32.xlu0 %v3143
    %v3145 = vpop.xlane.xlu0 %3144
    %v3146 = vsel %vm380, %v3131, 0.0
    %3147 = vadd.xlane.f32.xlu0 %v3146
    %v3148 = vpop.xlane.xlu0 %3147
    %v3149 = vsel %vm380, %v3133, 0.0
    %3150 = vadd.xlane.f32.xlu0 %v3149
    %v3151 = vpop.xlane.xlu0 %3150
    %v3152 = vrcp.pop %v3136
    %v3153 = vrcp.pop %v3139
    %v3154 = vrcp.pop %v3142
    %v3155 = vrcp.pop %v3145
    %v3156 = vrcp.pop %v3148
    %v3157 = vrcp.pop %v3151
    %v3158 = vmul.f32 %v3123, %v3152
    %v3159 = vmul.f32 %v3125, %v3153
    %v3160 = vmul.f32 %v3127, %v3154
    %v3161 = vmul.f32 %v3129, %v3155
    %v3162 = vmul.f32 %v3131, %v3156
    %v3163 = vmul.f32 %v3133, %v3157
    %v3164 = vpack.c.bf16 %v3159, %v3158
    %v3165 = vpack.c.bf16 %v3161, %v3160
    %v3166 = vpack.c.bf16 %v3163, %v3162
    %3167 = vrot.lane.b32.xlu0 %v2675, 64
    %v3168 = vpop.permute.xlu0 %3167
    %3169 = vrot.lane.b32.xlu0 %v2676, 64
    %v3170 = vpop.permute.xlu0 %3169
    %3171 = vrot.lane.b32.xlu0 %v2677, 64
    %v3172 = vpop.permute.xlu0 %3171
    %v3177 = vsel %vm380, %v3164, 0
    %v3180 = vsel %vm380, %v3165, 0
    %v3183 = vsel %vm380, %v3166, 0
    %3185 = vmatpush.bf16.msra.mxu0 0
    %3186 = vmatpush.bf16.msra.mxu0 0
    %3187 = vmatpush.bf16.msra.mxu0 0
    %3188 = vmatpush.bf16.msra.mxu0 0
    %3189 = vmatpush.bf16.msra.mxu0 0
    %3190 = vmatpush.bf16.msra.mxu0 %v3172
    %3191 = vmatpush.bf16.msra.mxu0 %v3170
    %3192 = vmatpush.bf16.msra.mxu0 %v3168
    %3193 = vmatmul.bf16.gmra.mxu0 %v3177
    %v3194 = vpop.f32.mrf.mxu0
    %v3195 = vadd.f32 0.0, %v3194
    %v3196 = vpop.f32.mrf.mxu0
    %v3197 = vadd.f32 0.0, %v3196
    %3198 = vmatmul.bf16.gmra.mxu0 %v3180
    %v3199 = vpop.f32.mrf.mxu0
    %v3200 = vadd.f32 0.0, %v3199
    %v3201 = vpop.f32.mrf.mxu0
    %v3202 = vadd.f32 0.0, %v3201
    %3203 = vmatmul.bf16.gmra.mxu0 %v3183
    %v3204 = vpop.f32.mrf.mxu0
    %v3205 = vadd.f32 0.0, %v3204
    %v3206 = vpop.f32.mrf.mxu0
    %v3207 = vadd.f32 0.0, %v3206
    %3208 = vdwg.mxu0
    %v3209 = vpack.c.bf16 %v3195, %v3195
    %v3210 = vpack.c.bf16 %v3197, %v3197
    %v3211 = vpack.c.bf16 %v3200, %v3200
    %v3212 = vpack.c.bf16 %v3202, %v3202
    %v3213 = vpack.c.bf16 %v3205, %v3205
    %v3214 = vpack.c.bf16 %v3207, %v3207
    %3215 = vrot.lane.b32.xlu0 %v2669, 32
    %v3216 = vpop.permute.xlu0 %3215
    %3217 = vrot.lane.b32.xlu0 %v2670, 32
    %v3218 = vpop.permute.xlu0 %3217
    %3219 = vrot.lane.b32.xlu0 %v2671, 32
    %v3220 = vpop.permute.xlu0 %3219
    %3221 = vrot.lane.b32.xlu0 %v2672, 32
    %v3222 = vpop.permute.xlu0 %3221
    %3223 = vrot.lane.b32.xlu0 %v2673, 32
    %v3224 = vpop.permute.xlu0 %3223
    %3225 = vrot.lane.b32.xlu0 %v2674, 32
    %v3226 = vpop.permute.xlu0 %3225
    %v3228 = vsel %vm325, %v3216, 0
    %v3231 = vsel %vm325, %v3218, 0
    %v3234 = vsel %vm325, %v3220, 0
    %v3237 = vsel %vm325, %v3222, 0
    %v3240 = vsel %vm325, %v3224, 0
    %v3243 = vsel %vm325, %v3226, 0
    %3245 = vmatpush.bf16.xpose.msra.mxu0 0
    %3246 = vmatpush.bf16.xpose.msra.mxu0 0
    %3247 = vmatpush.bf16.xpose.msra.mxu0 0
    %3248 = vmatpush.bf16.xpose.msra.mxu0 0
    %3249 = vmatpush.bf16.xpose.msra.mxu0 0
    %3250 = vmatpush.bf16.xpose.msra.mxu0 %v3243
    %3251 = vmatpush.bf16.xpose.msra.mxu0 %v3240
    %3252 = vmatpush.bf16.xpose.msra.mxu0 %v3237
    %3253 = vmatmul.bf16.gmra.mxu0 %v3228
    %v3254 = vpop.f32.mrf.mxu0
    %v3255 = vadd.f32 0.0, %v3254
    %v3256 = vpop.f32.mrf.mxu0
    %v3257 = vadd.f32 0.0, %v3256
    %3258 = vmatmul.bf16.gmra.mxu0 %v3231
    %v3259 = vpop.f32.mrf.mxu0
    %v3260 = vadd.f32 0.0, %v3259
    %v3261 = vpop.f32.mrf.mxu0
    %v3262 = vadd.f32 0.0, %v3261
    %3263 = vmatmul.bf16.gmra.mxu0 %v3234
    %v3264 = vpop.f32.mrf.mxu0
    %v3265 = vadd.f32 0.0, %v3264
    %v3266 = vpop.f32.mrf.mxu0
    %v3267 = vadd.f32 0.0, %v3266
    %3268 = vdwg.mxu0
    %v3269 = vmul.f32 %v3255, 0.17677669
    %v3270 = vmul.f32 %v3257, 0.17677669
    %v3271 = vmul.f32 %v3260, 0.17677669
    %v3272 = vmul.f32 %v3262, 0.17677669
    %v3273 = vmul.f32 %v3265, 0.17677669
    %v3274 = vmul.f32 %v3267, 0.17677669
    %v3275 = vadd.f32 %v3269, %v52
    %v3276 = vadd.f32 %v3270, %v53
    %v3277 = vadd.f32 %v3271, %v54
    %v3278 = vadd.f32 %v3272, %v55
    %v3279 = vadd.f32 %v3273, %v56
    %v3280 = vadd.f32 %v3274, %v57
    %v3281 = vsel %vm380, %v3275, -inf
    %3282 = vmax.xlane.f32.xlu0 %v3281
    %v3283 = vpop.xlane.xlu0 %3282
    %v3284 = vsel %vm380, %v3276, -inf
    %3285 = vmax.xlane.f32.xlu0 %v3284
    %v3286 = vpop.xlane.xlu0 %3285
    %v3287 = vsel %vm380, %v3277, -inf
    %3288 = vmax.xlane.f32.xlu0 %v3287
    %v3289 = vpop.xlane.xlu0 %3288
    %v3290 = vsel %vm380, %v3278, -inf
    %3291 = vmax.xlane.f32.xlu0 %v3290
    %v3292 = vpop.xlane.xlu0 %3291
    %v3293 = vsel %vm380, %v3279, -inf
    %3294 = vmax.xlane.f32.xlu0 %v3293
    %v3295 = vpop.xlane.xlu0 %3294
    %v3296 = vsel %vm380, %v3280, -inf
    %3297 = vmax.xlane.f32.xlu0 %v3296
    %v3298 = vpop.xlane.xlu0 %3297
    %v3299 = vsub.f32 %v3275, %v3283
    %v3300 = vsub.f32 %v3276, %v3286
    %v3301 = vsub.f32 %v3277, %v3289
    %v3302 = vsub.f32 %v3278, %v3292
    %v3303 = vsub.f32 %v3279, %v3295
    %v3304 = vsub.f32 %v3280, %v3298
    %v3305 = vmul.f32 %v3299, 1.442695
    %v3306 = vpow.pop %v3305
    %v3307 = vmul.f32 %v3300, 1.442695
    %v3308 = vpow.pop %v3307
    %v3309 = vmul.f32 %v3301, 1.442695
    %v3310 = vpow.pop %v3309
    %v3311 = vmul.f32 %v3302, 1.442695
    %v3312 = vpow.pop %v3311
    %v3313 = vmul.f32 %v3303, 1.442695
    %v3314 = vpow.pop %v3313
    %v3315 = vmul.f32 %v3304, 1.442695
    %v3316 = vpow.pop %v3315
    %v3317 = vsel %vm380, %v3306, 0.0
    %3318 = vadd.xlane.f32.xlu0 %v3317
    %v3319 = vpop.xlane.xlu0 %3318
    %v3320 = vsel %vm380, %v3308, 0.0
    %3321 = vadd.xlane.f32.xlu0 %v3320
    %v3322 = vpop.xlane.xlu0 %3321
    %v3323 = vsel %vm380, %v3310, 0.0
    %3324 = vadd.xlane.f32.xlu0 %v3323
    %v3325 = vpop.xlane.xlu0 %3324
    %v3326 = vsel %vm380, %v3312, 0.0
    %3327 = vadd.xlane.f32.xlu0 %v3326
    %v3328 = vpop.xlane.xlu0 %3327
    %v3329 = vsel %vm380, %v3314, 0.0
    %3330 = vadd.xlane.f32.xlu0 %v3329
    %v3331 = vpop.xlane.xlu0 %3330
    %v3332 = vsel %vm380, %v3316, 0.0
    %3333 = vadd.xlane.f32.xlu0 %v3332
    %v3334 = vpop.xlane.xlu0 %3333
    %v3335 = vrcp.pop %v3319
    %v3336 = vrcp.pop %v3322
    %v3337 = vrcp.pop %v3325
    %v3338 = vrcp.pop %v3328
    %v3339 = vrcp.pop %v3331
    %v3340 = vrcp.pop %v3334
    %v3341 = vmul.f32 %v3306, %v3335
    %v3342 = vmul.f32 %v3308, %v3336
    %v3343 = vmul.f32 %v3310, %v3337
    %v3344 = vmul.f32 %v3312, %v3338
    %v3345 = vmul.f32 %v3314, %v3339
    %v3346 = vmul.f32 %v3316, %v3340
    %v3347 = vpack.c.bf16 %v3342, %v3341
    %v3348 = vpack.c.bf16 %v3344, %v3343
    %v3349 = vpack.c.bf16 %v3346, %v3345
    %3350 = vrot.lane.b32.xlu0 %v2675, 32
    %v3351 = vpop.permute.xlu0 %3350
    %3352 = vrot.lane.b32.xlu0 %v2676, 32
    %v3353 = vpop.permute.xlu0 %3352
    %3354 = vrot.lane.b32.xlu0 %v2677, 32
    %v3355 = vpop.permute.xlu0 %3354
    %v3360 = vsel %vm380, %v3347, 0
    %v3363 = vsel %vm380, %v3348, 0
    %v3366 = vsel %vm380, %v3349, 0
    %3368 = vmatpush.bf16.msra.mxu0 0
    %3369 = vmatpush.bf16.msra.mxu0 0
    %3370 = vmatpush.bf16.msra.mxu0 0
    %3371 = vmatpush.bf16.msra.mxu0 0
    %3372 = vmatpush.bf16.msra.mxu0 0
    %3373 = vmatpush.bf16.msra.mxu0 %v3355
    %3374 = vmatpush.bf16.msra.mxu0 %v3353
    %3375 = vmatpush.bf16.msra.mxu0 %v3351
    %3376 = vmatmul.bf16.gmra.mxu0 %v3360
    %v3377 = vpop.f32.mrf.mxu0
    %v3378 = vadd.f32 0.0, %v3377
    %v3379 = vpop.f32.mrf.mxu0
    %v3380 = vadd.f32 0.0, %v3379
    %3381 = vmatmul.bf16.gmra.mxu0 %v3363
    %v3382 = vpop.f32.mrf.mxu0
    %v3383 = vadd.f32 0.0, %v3382
    %v3384 = vpop.f32.mrf.mxu0
    %v3385 = vadd.f32 0.0, %v3384
    %3386 = vmatmul.bf16.gmra.mxu0 %v3366
    %v3387 = vpop.f32.mrf.mxu0
    %v3388 = vadd.f32 0.0, %v3387
    %v3389 = vpop.f32.mrf.mxu0
    %v3390 = vadd.f32 0.0, %v3389
    %3391 = vdwg.mxu0
    %v3392 = vpack.c.bf16 %v3378, %v3378
    %v3393 = vpack.c.bf16 %v3380, %v3380
    %v3394 = vpack.c.bf16 %v3383, %v3383
    %v3395 = vpack.c.bf16 %v3385, %v3385
    %v3396 = vpack.c.bf16 %v3388, %v3388
    %v3397 = vpack.c.bf16 %v3390, %v3390
    %v3404 = vunpack.c.l.b16 %v2834
    %v3405 = vunpack.c.l.b16 %v2835
    %v3406 = vunpack.c.l.b16 %v2836
    %v3407 = vunpack.c.l.b16 %v2837
    %v3408 = vunpack.c.l.b16 %v2838
    %v3409 = vunpack.c.l.b16 %v2839
    %v3410 = vpack.c.b16 %v3405, %v3404
    %v3411 = vpack.c.b16 %v3407, %v3406
    %v3412 = vpack.c.b16 %v3409, %v3408
    %v3419 = vunpack.c.l.b16 %v3026
    %v3420 = vunpack.c.l.b16 %v3027
    %v3421 = vunpack.c.l.b16 %v3028
    %v3422 = vunpack.c.l.b16 %v3029
    %v3423 = vunpack.c.l.b16 %v3030
    %v3424 = vunpack.c.l.b16 %v3031
    %v3425 = vpack.c.b16 %v3420, %v3419
    %v3426 = vpack.c.b16 %v3422, %v3421
    %v3427 = vpack.c.b16 %v3424, %v3423
    %3428 = vrot.lane.b32.xlu0 %v3425, 32
    %v3429 = vpop.permute.xlu0 %3428
    %3430 = vrot.lane.b32.xlu0 %v3426, 32
    %v3431 = vpop.permute.xlu0 %3430
    %3432 = vrot.lane.b32.xlu0 %v3427, 32
    %v3433 = vpop.permute.xlu0 %3432
    %v3440 = vunpack.c.l.b16 %v3209
    %v3441 = vunpack.c.l.b16 %v3210
    %v3442 = vunpack.c.l.b16 %v3211
    %v3443 = vunpack.c.l.b16 %v3212
    %v3444 = vunpack.c.l.b16 %v3213
    %v3445 = vunpack.c.l.b16 %v3214
    %v3446 = vpack.c.b16 %v3441, %v3440
    %v3447 = vpack.c.b16 %v3443, %v3442
    %v3448 = vpack.c.b16 %v3445, %v3444
    %3449 = vrot.lane.b32.xlu0 %v3446, 64
    %v3450 = vpop.permute.xlu0 %3449
    %3451 = vrot.lane.b32.xlu0 %v3447, 64
    %v3452 = vpop.permute.xlu0 %3451
    %3453 = vrot.lane.b32.xlu0 %v3448, 64
    %v3454 = vpop.permute.xlu0 %3453
    %v3461 = vunpack.c.l.b16 %v3392
    %v3462 = vunpack.c.l.b16 %v3393
    %v3463 = vunpack.c.l.b16 %v3394
    %v3464 = vunpack.c.l.b16 %v3395
    %v3465 = vunpack.c.l.b16 %v3396
    %v3466 = vunpack.c.l.b16 %v3397
    %v3467 = vpack.c.b16 %v3462, %v3461
    %v3468 = vpack.c.b16 %v3464, %v3463
    %v3469 = vpack.c.b16 %v3466, %v3465
    %3470 = vrot.lane.b32.xlu0 %v3467, 96
    %v3471 = vpop.permute.xlu0 %3470
    %3472 = vrot.lane.b32.xlu0 %v3468, 96
    %v3473 = vpop.permute.xlu0 %3472
    %3474 = vrot.lane.b32.xlu0 %v3469, 96
    %v3475 = vpop.permute.xlu0 %3474
    %v3478 = vsel %vm325, %v3410, %v3429
    %v3481 = vsel %vm325, %v3411, %v3431
    %v3484 = vsel %vm325, %v3412, %v3433
    %v3486 = vsel %vm1134, %v3478, %v3450
    %v3488 = vsel %vm1134, %v3481, %v3452
    %v3490 = vsel %vm1134, %v3484, %v3454
    %v3492 = vsel %vm1141, %v3486, %v3471
    %v3495 = vsel %vm1141, %v3488, %v3473
    %v3498 = vsel %vm1141, %v3490, %v3475
    %s3500 = scalar_lea.vmem %s3, 64
    %v3501 = vld [vmem:[%s3500] sm:$0xf]
    %v3502 = vld [vmem:[%s3500 + $0x4] sm:$0xf]
    %v3503 = vld [vmem:[%s3500 + $0x8] sm:$0xf]
    %v3504 = vld [vmem:[%s3500 + $0xc] sm:$0xf]
    %v3505 = vld [vmem:[%s3500 + $0x10] sm:$0xf]
    %v3506 = vld [vmem:[%s3500 + $0x14] sm:$0xf]
    %v3507 = vld [vmem:[%s3500 + $0x18] sm:$0xf]
    %v3508 = vld [vmem:[%s3500 + $0x1c] sm:$0xf]
    %v3509 = vld [vmem:[%s3500 + $0x20] sm:$0xf]
    %v3510 = vld [vmem:[%s3500 + $0x24] sm:$0xf]
    %v3511 = vld [vmem:[%s3500 + $0x28] sm:$0xf]
    %v3512 = vld [vmem:[%s3500 + $0x2c] sm:$0xf]
    %v3513 = vld [vmem:[%s3500 + $0x30] sm:$0xf]
    %v3514 = vld [vmem:[%s3500 + $0x34] sm:$0xf]
    %v3515 = vld [vmem:[%s3500 + $0x38] sm:$0xf]
    %v3516 = vld [vmem:[%s3500 + $0x3c] sm:$0xf]
    %v3517 = vperm.slane %v2410, 3
    %v3534 = vunpack.c.l.b16 %v3501
    %v3535 = vunpack.c.l.b16 %v3502
    %v3536 = vunpack.c.l.b16 %v3503
    %v3537 = vunpack.c.l.b16 %v3504
    %v3538 = vunpack.c.l.b16 %v3505
    %v3539 = vunpack.c.l.b16 %v3506
    %v3540 = vunpack.c.l.b16 %v3507
    %v3541 = vunpack.c.l.b16 %v3508
    %v3542 = vunpack.c.l.b16 %v3509
    %v3543 = vunpack.c.l.b16 %v3510
    %v3544 = vunpack.c.l.b16 %v3511
    %v3545 = vunpack.c.l.b16 %v3512
    %v3546 = vunpack.c.l.b16 %v3513
    %v3547 = vunpack.c.l.b16 %v3514
    %v3548 = vunpack.c.l.b16 %v3515
    %v3549 = vunpack.c.l.b16 %v3516
    %v3550 = vpack.c.b16 %v3535, %v3534
    %v3551 = vpack.c.b16 %v3537, %v3536
    %v3552 = vpack.c.b16 %v3539, %v3538
    %v3553 = vpack.c.b16 %v3541, %v3540
    %v3554 = vpack.c.b16 %v3543, %v3542
    %v3555 = vpack.c.b16 %v3545, %v3544
    %v3556 = vpack.c.b16 %v3547, %v3546
    %v3557 = vpack.c.b16 %v3549, %v3548
    %3566 = vmatpush.bf16.msra.mxu0 %v3557
    %3567 = vmatpush.bf16.msra.mxu0 %v3556
    %3568 = vmatpush.bf16.msra.mxu0 %v3555
    %3569 = vmatpush.bf16.msra.mxu0 %v3554
    %3570 = vmatpush.bf16.msra.mxu0 %v3553
    %3571 = vmatpush.bf16.msra.mxu0 %v3552
    %3572 = vmatpush.bf16.msra.mxu0 %v3551
    %3573 = vmatpush.bf16.msra.mxu0 %v3550
    %3574 = vmatmul.bf16.gmra.mxu0 %v3492
    %v3575 = vpop.f32.mrf.mxu0
    %v3576 = vadd.f32 %v3517, %v3575
    %v3577 = vpop.f32.mrf.mxu0
    %v3578 = vadd.f32 %v3517, %v3577
    %3579 = vmatmul.bf16.gmra.mxu0 %v3495
    %v3580 = vpop.f32.mrf.mxu0
    %v3581 = vadd.f32 %v3517, %v3580
    %v3582 = vpop.f32.mrf.mxu0
    %v3583 = vadd.f32 %v3517, %v3582
    %3584 = vmatmul.bf16.gmra.mxu0 %v3498
    %v3585 = vpop.f32.mrf.mxu0
    %v3586 = vadd.f32 %v3517, %v3585
    %v3587 = vpop.f32.mrf.mxu0
    %v3588 = vadd.f32 %v3517, %v3587
    %3589 = vdwg.mxu0
    %v3590 = vadd.f32 %v2403, %v3576
    %v3591 = vadd.f32 %v2404, %v3578
    %v3592 = vadd.f32 %v2405, %v3581
    %v3593 = vadd.f32 %v2406, %v3583
    %v3594 = vadd.f32 %v2407, %v3586
    %v3595 = vadd.f32 %v2408, %v3588
    %3596 = vadd.xlane.f32.xlu0 %v3590
    %v3597 = vpop.xlane.xlu0 %3596
    %3598 = vadd.xlane.f32.xlu0 %v3591
    %v3599 = vpop.xlane.xlu0 %3598
    %3600 = vadd.xlane.f32.xlu0 %v3592
    %v3601 = vpop.xlane.xlu0 %3600
    %3602 = vadd.xlane.f32.xlu0 %v3593
    %v3603 = vpop.xlane.xlu0 %3602
    %3604 = vadd.xlane.f32.xlu0 %v3594
    %v3605 = vpop.xlane.xlu0 %3604
    %3606 = vadd.xlane.f32.xlu0 %v3595
    %v3607 = vpop.xlane.xlu0 %3606
    %v3608 = vmul.f32 %v3597, %v1264
    %v3609 = vmul.f32 %v3599, %v1264
    %v3610 = vmul.f32 %v3601, %v1264
    %v3611 = vmul.f32 %v3603, %v1264
    %v3612 = vmul.f32 %v3605, %v1264
    %v3613 = vmul.f32 %v3607, %v1264
    %v3614 = vsub.f32 %v3590, %v3608
    %v3615 = vsub.f32 %v3591, %v3609
    %v3616 = vsub.f32 %v3592, %v3610
    %v3617 = vsub.f32 %v3593, %v3611
    %v3618 = vsub.f32 %v3594, %v3612
    %v3619 = vsub.f32 %v3595, %v3613
    %v3620 = vmul.f32 %v3614, %v3614
    %v3621 = vmul.f32 %v3615, %v3615
    %v3622 = vmul.f32 %v3616, %v3616
    %v3623 = vmul.f32 %v3617, %v3617
    %v3624 = vmul.f32 %v3618, %v3618
    %v3625 = vmul.f32 %v3619, %v3619
    %3626 = vadd.xlane.f32.xlu0 %v3620
    %v3627 = vpop.xlane.xlu0 %3626
    %3628 = vadd.xlane.f32.xlu0 %v3621
    %v3629 = vpop.xlane.xlu0 %3628
    %3630 = vadd.xlane.f32.xlu0 %v3622
    %v3631 = vpop.xlane.xlu0 %3630
    %3632 = vadd.xlane.f32.xlu0 %v3623
    %v3633 = vpop.xlane.xlu0 %3632
    %3634 = vadd.xlane.f32.xlu0 %v3624
    %v3635 = vpop.xlane.xlu0 %3634
    %3636 = vadd.xlane.f32.xlu0 %v3625
    %v3637 = vpop.xlane.xlu0 %3636
    %v3638 = vmul.f32 %v3627, %v1264
    %v3639 = vmul.f32 %v3629, %v1264
    %v3640 = vmul.f32 %v3631, %v1264
    %v3641 = vmul.f32 %v3633, %v1264
    %v3642 = vmul.f32 %v3635, %v1264
    %v3643 = vmul.f32 %v3637, %v1264
    %v3644 = vadd.f32 %v3638, 1e-05
    %v3645 = vadd.f32 %v3639, 1e-05
    %v3646 = vadd.f32 %v3640, 1e-05
    %v3647 = vadd.f32 %v3641, 1e-05
    %v3648 = vadd.f32 %v3642, 1e-05
    %v3649 = vadd.f32 %v3643, 1e-05
    %v3650 = vrsqrt.pop %v3644
    %v3651 = vmul.f32 %v3650, %v3644
    %v3652 = vmul.f32 %v3651, %v3650
    %v3653 = vmul.f32 0.5, %v3652
    %v3654 = vsub.f32 1.5, %v3653
    %v3655 = vmul.f32 %v3650, %v3654
    %vm3656 = vweird.f32 %v3644
    %vm3657 = vweird.f32 %v3650
    %vm3658 = vmor %vm3656, %vm3657
    %v3659 = vsel %vm3658, %v3650, %v3655
    %v3660 = vrsqrt.pop %v3645
    %v3661 = vmul.f32 %v3660, %v3645
    %v3662 = vmul.f32 %v3661, %v3660
    %v3663 = vmul.f32 0.5, %v3662
    %v3664 = vsub.f32 1.5, %v3663
    %v3665 = vmul.f32 %v3660, %v3664
    %vm3666 = vweird.f32 %v3645
    %vm3667 = vweird.f32 %v3660
    %vm3668 = vmor %vm3666, %vm3667
    %v3669 = vsel %vm3668, %v3660, %v3665
    %v3670 = vrsqrt.pop %v3646
    %v3671 = vmul.f32 %v3670, %v3646
    %v3672 = vmul.f32 %v3671, %v3670
    %v3673 = vmul.f32 0.5, %v3672
    %v3674 = vsub.f32 1.5, %v3673
    %v3675 = vmul.f32 %v3670, %v3674
    %vm3676 = vweird.f32 %v3646
    %vm3677 = vweird.f32 %v3670
    %vm3678 = vmor %vm3676, %vm3677
    %v3679 = vsel %vm3678, %v3670, %v3675
    %v3680 = vrsqrt.pop %v3647
    %v3681 = vmul.f32 %v3680, %v3647
    %v3682 = vmul.f32 %v3681, %v3680
    %v3683 = vmul.f32 0.5, %v3682
    %v3684 = vsub.f32 1.5, %v3683
    %v3685 = vmul.f32 %v3680, %v3684
    %vm3686 = vweird.f32 %v3647
    %vm3687 = vweird.f32 %v3680
    %vm3688 = vmor %vm3686, %vm3687
    %v3689 = vsel %vm3688, %v3680, %v3685
    %v3690 = vrsqrt.pop %v3648
    %v3691 = vmul.f32 %v3690, %v3648
    %v3692 = vmul.f32 %v3691, %v3690
    %v3693 = vmul.f32 0.5, %v3692
    %v3694 = vsub.f32 1.5, %v3693
    %v3695 = vmul.f32 %v3690, %v3694
    %vm3696 = vweird.f32 %v3648
    %vm3697 = vweird.f32 %v3690
    %vm3698 = vmor %vm3696, %vm3697
    %v3699 = vsel %vm3698, %v3690, %v3695
    %v3700 = vrsqrt.pop %v3649
    %v3701 = vmul.f32 %v3700, %v3649
    %v3702 = vmul.f32 %v3701, %v3700
    %v3703 = vmul.f32 0.5, %v3702
    %v3704 = vsub.f32 1.5, %v3703
    %v3705 = vmul.f32 %v3700, %v3704
    %vm3706 = vweird.f32 %v3649
    %vm3707 = vweird.f32 %v3700
    %vm3708 = vmor %vm3706, %vm3707
    %v3709 = vsel %vm3708, %v3700, %v3705
    %v3710 = vmul.f32 %v3614, %v3659
    %v3711 = vmul.f32 %v3615, %v3669
    %v3712 = vmul.f32 %v3616, %v3679
    %v3713 = vmul.f32 %v3617, %v3689
    %v3714 = vmul.f32 %v3618, %v3699
    %v3715 = vmul.f32 %v3619, %v3709
    %v3716 = vperm.slane %v2410, 5
    %v3717 = vmul.f32 %v3710, %v3716
    %v3718 = vmul.f32 %v3711, %v3716
    %v3719 = vmul.f32 %v3712, %v3716
    %v3720 = vmul.f32 %v3713, %v3716
    %v3721 = vmul.f32 %v3714, %v3716
    %v3722 = vmul.f32 %v3715, %v3716
    %v3723 = vperm.slane %v2410, 6
    %v3724 = vadd.f32 %v3717, %v3723
    %v3725 = vadd.f32 %v3718, %v3723
    %v3726 = vadd.f32 %v3719, %v3723
    %v3727 = vadd.f32 %v3720, %v3723
    %v3728 = vadd.f32 %v3721, %v3723
    %v3729 = vadd.f32 %v3722, %v3723
    %v3730 = vpack.c.bf16 %v3725, %v3724
    %v3731 = vpack.c.bf16 %v3727, %v3726
    %v3732 = vpack.c.bf16 %v3729, %v3728
    %s3733 = scalar_lea.vmem %s4, 256
    %v3734 = vld [vmem:[%s3733] sm:$0xff]
    %v3735 = vld [vmem:[%s3733 + $0x8] sm:$0xff]
    %v3736 = vld [vmem:[%s3733 + $0x10] sm:$0xff]
    %v3737 = vld [vmem:[%s3733 + $0x18] sm:$0xff]
    %v3738 = vld [vmem:[%s3733 + $0x20] sm:$0xff]
    %v3739 = vld [vmem:[%s3733 + $0x28] sm:$0xff]
    %v3740 = vld [vmem:[%s3733 + $0x30] sm:$0xff]
    %v3741 = vld [vmem:[%s3733 + $0x38] sm:$0xff]
    %v3742 = vld [vmem:[%s3733 + $0x40] sm:$0xff]
    %v3743 = vld [vmem:[%s3733 + $0x48] sm:$0xff]
    %v3744 = vld [vmem:[%s3733 + $0x50] sm:$0xff]
    %v3745 = vld [vmem:[%s3733 + $0x58] sm:$0xff]
    %v3746 = vld [vmem:[%s3733 + $0x60] sm:$0xff]
    %v3747 = vld [vmem:[%s3733 + $0x68] sm:$0xff]
    %v3748 = vld [vmem:[%s3733 + $0x70] sm:$0xff]
    %v3749 = vld [vmem:[%s3733 + $0x78] sm:$0xff]
    %v3750 = vld [vmem:[%s3733 + $0x80] sm:$0xff]
    %v3751 = vld [vmem:[%s3733 + $0x88] sm:$0xff]
    %v3752 = vld [vmem:[%s3733 + $0x90] sm:$0xff]
    %v3753 = vld [vmem:[%s3733 + $0x98] sm:$0xff]
    %v3754 = vld [vmem:[%s3733 + $0xa0] sm:$0xff]
    %v3755 = vld [vmem:[%s3733 + $0xa8] sm:$0xff]
    %v3756 = vld [vmem:[%s3733 + $0xb0] sm:$0xff]
    %v3757 = vld [vmem:[%s3733 + $0xb8] sm:$0xff]
    %v3758 = vld [vmem:[%s3733 + $0xc0] sm:$0xff]
    %v3759 = vld [vmem:[%s3733 + $0xc8] sm:$0xff]
    %v3760 = vld [vmem:[%s3733 + $0xd0] sm:$0xff]
    %v3761 = vld [vmem:[%s3733 + $0xd8] sm:$0xff]
    %v3762 = vld [vmem:[%s3733 + $0xe0] sm:$0xff]
    %v3763 = vld [vmem:[%s3733 + $0xe8] sm:$0xff]
    %v3764 = vld [vmem:[%s3733 + $0xf0] sm:$0xff]
    %v3765 = vld [vmem:[%s3733 + $0xf8] sm:$0xff]
    %s3766 = scalar_lea.vmem %s6, 4
    %v3767 = vld [vmem:[%s3766] sm:$0xf]
    %v3769 = vperm.slane %v3767, 0
    %v3770 = vperm.slane %v3767, 1
    %v3771 = vperm.slane %v3767, 2
    %v3772 = vperm.slane %v3767, 3
    %v3809 = vunpack.c.l.b16 %v3734
    %v3810 = vunpack.c.h.b16 %v3734
    %v3811 = vunpack.c.l.b16 %v3735
    %v3812 = vunpack.c.h.b16 %v3735
    %v3813 = vunpack.c.l.b16 %v3736
    %v3814 = vunpack.c.h.b16 %v3736
    %v3815 = vunpack.c.l.b16 %v3737
    %v3816 = vunpack.c.h.b16 %v3737
    %v3817 = vunpack.c.l.b16 %v3738
    %v3818 = vunpack.c.h.b16 %v3738
    %v3819 = vunpack.c.l.b16 %v3739
    %v3820 = vunpack.c.h.b16 %v3739
    %v3821 = vunpack.c.l.b16 %v3740
    %v3822 = vunpack.c.h.b16 %v3740
    %v3823 = vunpack.c.l.b16 %v3741
    %v3824 = vunpack.c.h.b16 %v3741
    %v3825 = vunpack.c.l.b16 %v3742
    %v3826 = vunpack.c.h.b16 %v3742
    %v3827 = vunpack.c.l.b16 %v3743
    %v3828 = vunpack.c.h.b16 %v3743
    %v3829 = vunpack.c.l.b16 %v3744
    %v3830 = vunpack.c.h.b16 %v3744
    %v3831 = vunpack.c.l.b16 %v3745
    %v3832 = vunpack.c.h.b16 %v3745
    %v3833 = vunpack.c.l.b16 %v3746
    %v3834 = vunpack.c.h.b16 %v3746
    %v3835 = vunpack.c.l.b16 %v3747
    %v3836 = vunpack.c.h.b16 %v3747
    %v3837 = vunpack.c.l.b16 %v3748
    %v3838 = vunpack.c.h.b16 %v3748
    %v3839 = vunpack.c.l.b16 %v3749
    %v3840 = vunpack.c.h.b16 %v3749
    %v3841 = vunpack.c.l.b16 %v3750
    %v3842 = vunpack.c.h.b16 %v3750
    %v3843 = vunpack.c.l.b16 %v3751
    %v3844 = vunpack.c.h.b16 %v3751
    %v3845 = vunpack.c.l.b16 %v3752
    %v3846 = vunpack.c.h.b16 %v3752
    %v3847 = vunpack.c.l.b16 %v3753
    %v3848 = vunpack.c.h.b16 %v3753
    %v3849 = vunpack.c.l.b16 %v3754
    %v3850 = vunpack.c.h.b16 %v3754
    %v3851 = vunpack.c.l.b16 %v3755
    %v3852 = vunpack.c.h.b16 %v3755
    %v3853 = vunpack.c.l.b16 %v3756
    %v3854 = vunpack.c.h.b16 %v3756
    %v3855 = vunpack.c.l.b16 %v3757
    %v3856 = vunpack.c.h.b16 %v3757
    %v3857 = vunpack.c.l.b16 %v3758
    %v3858 = vunpack.c.h.b16 %v3758
    %v3859 = vunpack.c.l.b16 %v3759
    %v3860 = vunpack.c.h.b16 %v3759
    %v3861 = vunpack.c.l.b16 %v3760
    %v3862 = vunpack.c.h.b16 %v3760
    %v3863 = vunpack.c.l.b16 %v3761
    %v3864 = vunpack.c.h.b16 %v3761
    %v3865 = vunpack.c.l.b16 %v3762
    %v3866 = vunpack.c.h.b16 %v3762
    %v3867 = vunpack.c.l.b16 %v3763
    %v3868 = vunpack.c.h.b16 %v3763
    %v3869 = vunpack.c.l.b16 %v3764
    %v3870 = vunpack.c.h.b16 %v3764
    %v3871 = vunpack.c.l.b16 %v3765
    %v3872 = vunpack.c.h.b16 %v3765
    %v3873 = vpack.c.b16 %v3813, %v3809
    %v3874 = vpack.c.b16 %v3814, %v3810
    %v3875 = vpack.c.b16 %v3815, %v3811
    %v3876 = vpack.c.b16 %v3816, %v3812
    %v3877 = vpack.c.b16 %v3821, %v3817
    %v3878 = vpack.c.b16 %v3822, %v3818
    %v3879 = vpack.c.b16 %v3823, %v3819
    %v3880 = vpack.c.b16 %v3824, %v3820
    %v3881 = vpack.c.b16 %v3829, %v3825
    %v3882 = vpack.c.b16 %v3830, %v3826
    %v3883 = vpack.c.b16 %v3831, %v3827
    %v3884 = vpack.c.b16 %v3832, %v3828
    %v3885 = vpack.c.b16 %v3837, %v3833
    %v3886 = vpack.c.b16 %v3838, %v3834
    %v3887 = vpack.c.b16 %v3839, %v3835
    %v3888 = vpack.c.b16 %v3840, %v3836
    %v3889 = vpack.c.b16 %v3845, %v3841
    %v3890 = vpack.c.b16 %v3846, %v3842
    %v3891 = vpack.c.b16 %v3847, %v3843
    %v3892 = vpack.c.b16 %v3848, %v3844
    %v3893 = vpack.c.b16 %v3853, %v3849
    %v3894 = vpack.c.b16 %v3854, %v3850
    %v3895 = vpack.c.b16 %v3855, %v3851
    %v3896 = vpack.c.b16 %v3856, %v3852
    %v3897 = vpack.c.b16 %v3861, %v3857
    %v3898 = vpack.c.b16 %v3862, %v3858
    %v3899 = vpack.c.b16 %v3863, %v3859
    %v3900 = vpack.c.b16 %v3864, %v3860
    %v3901 = vpack.c.b16 %v3869, %v3865
    %v3902 = vpack.c.b16 %v3870, %v3866
    %v3903 = vpack.c.b16 %v3871, %v3867
    %v3904 = vpack.c.b16 %v3872, %v3868
    %3937 = vmatpush.bf16.msra.mxu0 %v3901
    %3938 = vmatpush.bf16.msra.mxu0 %v3897
    %3939 = vmatpush.bf16.msra.mxu0 %v3893
    %3940 = vmatpush.bf16.msra.mxu0 %v3889
    %3941 = vmatpush.bf16.msra.mxu0 %v3885
    %3942 = vmatpush.bf16.msra.mxu0 %v3881
    %3943 = vmatpush.bf16.msra.mxu0 %v3877
    %3944 = vmatpush.bf16.msra.mxu0 %v3873
    %3945 = vmatmul.bf16.gmra.mxu0 %v3730
    %v3946 = vpop.f32.mrf.mxu0
    %v3947 = vadd.f32 %v3769, %v3946
    %v3948 = vpop.f32.mrf.mxu0
    %v3949 = vadd.f32 %v3769, %v3948
    %3950 = vmatmul.bf16.gmra.mxu0 %v3731
    %v3951 = vpop.f32.mrf.mxu0
    %v3952 = vadd.f32 %v3769, %v3951
    %v3953 = vpop.f32.mrf.mxu0
    %v3954 = vadd.f32 %v3769, %v3953
    %3955 = vmatmul.bf16.gmra.mxu0 %v3732
    %v3956 = vpop.f32.mrf.mxu0
    %v3957 = vadd.f32 %v3769, %v3956
    %v3958 = vpop.f32.mrf.mxu0
    %v3959 = vadd.f32 %v3769, %v3958
    %3960 = vdwg.mxu0
    %3961 = vmatpush.bf16.msra.mxu0 %v3902
    %3962 = vmatpush.bf16.msra.mxu0 %v3898
    %3963 = vmatpush.bf16.msra.mxu0 %v3894
    %3964 = vmatpush.bf16.msra.mxu0 %v3890
    %3965 = vmatpush.bf16.msra.mxu0 %v3886
    %3966 = vmatpush.bf16.msra.mxu0 %v3882
    %3967 = vmatpush.bf16.msra.mxu0 %v3878
    %3968 = vmatpush.bf16.msra.mxu0 %v3874
    %3969 = vmatmul.bf16.gmra.mxu0 %v3730
    %v3970 = vpop.f32.mrf.mxu0
    %v3971 = vadd.f32 %v3770, %v3970
    %v3972 = vpop.f32.mrf.mxu0
    %v3973 = vadd.f32 %v3770, %v3972
    %3974 = vmatmul.bf16.gmra.mxu0 %v3731
    %v3975 = vpop.f32.mrf.mxu0
    %v3976 = vadd.f32 %v3770, %v3975
    %v3977 = vpop.f32.mrf.mxu0
    %v3978 = vadd.f32 %v3770, %v3977
    %3979 = vmatmul.bf16.gmra.mxu0 %v3732
    %v3980 = vpop.f32.mrf.mxu0
    %v3981 = vadd.f32 %v3770, %v3980
    %v3982 = vpop.f32.mrf.mxu0
    %v3983 = vadd.f32 %v3770, %v3982
    %3984 = vdwg.mxu0
    %3985 = vmatpush.bf16.msra.mxu0 %v3903
    %3986 = vmatpush.bf16.msra.mxu0 %v3899
    %3987 = vmatpush.bf16.msra.mxu0 %v3895
    %3988 = vmatpush.bf16.msra.mxu0 %v3891
    %3989 = vmatpush.bf16.msra.mxu0 %v3887
    %3990 = vmatpush.bf16.msra.mxu0 %v3883
    %3991 = vmatpush.bf16.msra.mxu0 %v3879
    %3992 = vmatpush.bf16.msra.mxu0 %v3875
    %3993 = vmatmul.bf16.gmra.mxu0 %v3730
    %v3994 = vpop.f32.mrf.mxu0
    %v3995 = vadd.f32 %v3771, %v3994
    %v3996 = vpop.f32.mrf.mxu0
    %v3997 = vadd.f32 %v3771, %v3996
    %3998 = vmatmul.bf16.gmra.mxu0 %v3731
    %v3999 = vpop.f32.mrf.mxu0
    %v4000 = vadd.f32 %v3771, %v3999
    %v4001 = vpop.f32.mrf.mxu0
    %v4002 = vadd.f32 %v3771, %v4001
    %4003 = vmatmul.bf16.gmra.mxu0 %v3732
    %v4004 = vpop.f32.mrf.mxu0
    %v4005 = vadd.f32 %v3771, %v4004
    %v4006 = vpop.f32.mrf.mxu0
    %v4007 = vadd.f32 %v3771, %v4006
    %4008 = vdwg.mxu0
    %4009 = vmatpush.bf16.msra.mxu0 %v3904
    %4010 = vmatpush.bf16.msra.mxu0 %v3900
    %4011 = vmatpush.bf16.msra.mxu0 %v3896
    %4012 = vmatpush.bf16.msra.mxu0 %v3892
    %4013 = vmatpush.bf16.msra.mxu0 %v3888
    %4014 = vmatpush.bf16.msra.mxu0 %v3884
    %4015 = vmatpush.bf16.msra.mxu0 %v3880
    %4016 = vmatpush.bf16.msra.mxu0 %v3876
    %4017 = vmatmul.bf16.gmra.mxu0 %v3730
    %v4018 = vpop.f32.mrf.mxu0
    %v4019 = vadd.f32 %v3772, %v4018
    %v4020 = vpop.f32.mrf.mxu0
    %v4021 = vadd.f32 %v3772, %v4020
    %4022 = vmatmul.bf16.gmra.mxu0 %v3731
    %v4023 = vpop.f32.mrf.mxu0
    %v4024 = vadd.f32 %v3772, %v4023
    %v4025 = vpop.f32.mrf.mxu0
    %v4026 = vadd.f32 %v3772, %v4025
    %4027 = vmatmul.bf16.gmra.mxu0 %v3732
    %v4028 = vpop.f32.mrf.mxu0
    %v4029 = vadd.f32 %v3772, %v4028
    %v4030 = vpop.f32.mrf.mxu0
    %v4031 = vadd.f32 %v3772, %v4030
    %4032 = vdwg.mxu0
    %v4033 = vmul.f32 %v3947, 0.5
    %v4034 = vmul.f32 %v3971, 0.5
    %v4035 = vmul.f32 %v3995, 0.5
    %v4036 = vmul.f32 %v4019, 0.5
    %v4037 = vmul.f32 %v3949, 0.5
    %v4038 = vmul.f32 %v3973, 0.5
    %v4039 = vmul.f32 %v3997, 0.5
    %v4040 = vmul.f32 %v4021, 0.5
    %v4041 = vmul.f32 %v3952, 0.5
    %v4042 = vmul.f32 %v3976, 0.5
    %v4043 = vmul.f32 %v4000, 0.5
    %v4044 = vmul.f32 %v4024, 0.5
    %v4045 = vmul.f32 %v3954, 0.5
    %v4046 = vmul.f32 %v3978, 0.5
    %v4047 = vmul.f32 %v4002, 0.5
    %v4048 = vmul.f32 %v4026, 0.5
    %v4049 = vmul.f32 %v3957, 0.5
    %v4050 = vmul.f32 %v3981, 0.5
    %v4051 = vmul.f32 %v4005, 0.5
    %v4052 = vmul.f32 %v4029, 0.5
    %v4053 = vmul.f32 %v3959, 0.5
    %v4054 = vmul.f32 %v3983, 0.5
    %v4055 = vmul.f32 %v4007, 0.5
    %v4056 = vmul.f32 %v4031, 0.5
    %v4057 = vmul.f32 %v3947, 0.044715
    %v4058 = vmul.f32 %v3971, 0.044715
    %v4059 = vmul.f32 %v3995, 0.044715
    %v4060 = vmul.f32 %v4019, 0.044715
    %v4061 = vmul.f32 %v3949, 0.044715
    %v4062 = vmul.f32 %v3973, 0.044715
    %v4063 = vmul.f32 %v3997, 0.044715
    %v4064 = vmul.f32 %v4021, 0.044715
    %v4065 = vmul.f32 %v3952, 0.044715
    %v4066 = vmul.f32 %v3976, 0.044715
    %v4067 = vmul.f32 %v4000, 0.044715
    %v4068 = vmul.f32 %v4024, 0.044715
    %v4069 = vmul.f32 %v3954, 0.044715
    %v4070 = vmul.f32 %v3978, 0.044715
    %v4071 = vmul.f32 %v4002, 0.044715
    %v4072 = vmul.f32 %v4026, 0.044715
    %v4073 = vmul.f32 %v3957, 0.044715
    %v4074 = vmul.f32 %v3981, 0.044715
    %v4075 = vmul.f32 %v4005, 0.044715
    %v4076 = vmul.f32 %v4029, 0.044715
    %v4077 = vmul.f32 %v3959, 0.044715
    %v4078 = vmul.f32 %v3983, 0.044715
    %v4079 = vmul.f32 %v4007, 0.044715
    %v4080 = vmul.f32 %v4031, 0.044715
    %v4081 = vmul.f32 %v4057, %v3947
    %v4082 = vmul.f32 %v4058, %v3971
    %v4083 = vmul.f32 %v4059, %v3995
    %v4084 = vmul.f32 %v4060, %v4019
    %v4085 = vmul.f32 %v4061, %v3949
    %v4086 = vmul.f32 %v4062, %v3973
    %v4087 = vmul.f32 %v4063, %v3997
    %v4088 = vmul.f32 %v4064, %v4021
    %v4089 = vmul.f32 %v4065, %v3952
    %v4090 = vmul.f32 %v4066, %v3976
    %v4091 = vmul.f32 %v4067, %v4000
    %v4092 = vmul.f32 %v4068, %v4024
    %v4093 = vmul.f32 %v4069, %v3954
    %v4094 = vmul.f32 %v4070, %v3978
    %v4095 = vmul.f32 %v4071, %v4002
    %v4096 = vmul.f32 %v4072, %v4026
    %v4097 = vmul.f32 %v4073, %v3957
    %v4098 = vmul.f32 %v4074, %v3981
    %v4099 = vmul.f32 %v4075, %v4005
    %v4100 = vmul.f32 %v4076, %v4029
    %v4101 = vmul.f32 %v4077, %v3959
    %v4102 = vmul.f32 %v4078, %v3983
    %v4103 = vmul.f32 %v4079, %v4007
    %v4104 = vmul.f32 %v4080, %v4031
    %v4105 = vmul.f32 %v4081, %v3947
    %v4106 = vmul.f32 %v4082, %v3971
    %v4107 = vmul.f32 %v4083, %v3995
    %v4108 = vmul.f32 %v4084, %v4019
    %v4109 = vmul.f32 %v4085, %v3949
    %v4110 = vmul.f32 %v4086, %v3973
    %v4111 = vmul.f32 %v4087, %v3997
    %v4112 = vmul.f32 %v4088, %v4021
    %v4113 = vmul.f32 %v4089, %v3952
    %v4114 = vmul.f32 %v4090, %v3976
    %v4115 = vmul.f32 %v4091, %v4000
    %v4116 = vmul.f32 %v4092, %v4024
    %v4117 = vmul.f32 %v4093, %v3954
    %v4118 = vmul.f32 %v4094, %v3978
    %v4119 = vmul.f32 %v4095, %v4002
    %v4120 = vmul.f32 %v4096, %v4026
    %v4121 = vmul.f32 %v4097, %v3957
    %v4122 = vmul.f32 %v4098, %v3981
    %v4123 = vmul.f32 %v4099, %v4005
    %v4124 = vmul.f32 %v4100, %v4029
    %v4125 = vmul.f32 %v4101, %v3959
    %v4126 = vmul.f32 %v4102, %v3983
    %v4127 = vmul.f32 %v4103, %v4007
    %v4128 = vmul.f32 %v4104, %v4031
    %v4129 = vadd.f32 %v3947, %v4105
    %v4130 = vadd.f32 %v3971, %v4106
    %v4131 = vadd.f32 %v3995, %v4107
    %v4132 = vadd.f32 %v4019, %v4108
    %v4133 = vadd.f32 %v3949, %v4109
    %v4134 = vadd.f32 %v3973, %v4110
    %v4135 = vadd.f32 %v3997, %v4111
    %v4136 = vadd.f32 %v4021, %v4112
    %v4137 = vadd.f32 %v3952, %v4113
    %v4138 = vadd.f32 %v3976, %v4114
    %v4139 = vadd.f32 %v4000, %v4115
    %v4140 = vadd.f32 %v4024, %v4116
    %v4141 = vadd.f32 %v3954, %v4117
    %v4142 = vadd.f32 %v3978, %v4118
    %v4143 = vadd.f32 %v4002, %v4119
    %v4144 = vadd.f32 %v4026, %v4120
    %v4145 = vadd.f32 %v3957, %v4121
    %v4146 = vadd.f32 %v3981, %v4122
    %v4147 = vadd.f32 %v4005, %v4123
    %v4148 = vadd.f32 %v4029, %v4124
    %v4149 = vadd.f32 %v3959, %v4125
    %v4150 = vadd.f32 %v3983, %v4126
    %v4151 = vadd.f32 %v4007, %v4127
    %v4152 = vadd.f32 %v4031, %v4128
    %v4153 = vmul.f32 %v4129, 0.7978846
    %v4154 = vmul.f32 %v4130, 0.7978846
    %v4155 = vmul.f32 %v4131, 0.7978846
    %v4156 = vmul.f32 %v4132, 0.7978846
    %v4157 = vmul.f32 %v4133, 0.7978846
    %v4158 = vmul.f32 %v4134, 0.7978846
    %v4159 = vmul.f32 %v4135, 0.7978846
    %v4160 = vmul.f32 %v4136, 0.7978846
    %v4161 = vmul.f32 %v4137, 0.7978846
    %v4162 = vmul.f32 %v4138, 0.7978846
    %v4163 = vmul.f32 %v4139, 0.7978846
    %v4164 = vmul.f32 %v4140, 0.7978846
    %v4165 = vmul.f32 %v4141, 0.7978846
    %v4166 = vmul.f32 %v4142, 0.7978846
    %v4167 = vmul.f32 %v4143, 0.7978846
    %v4168 = vmul.f32 %v4144, 0.7978846
    %v4169 = vmul.f32 %v4145, 0.7978846
    %v4170 = vmul.f32 %v4146, 0.7978846
    %v4171 = vmul.f32 %v4147, 0.7978846
    %v4172 = vmul.f32 %v4148, 0.7978846
    %v4173 = vmul.f32 %v4149, 0.7978846
    %v4174 = vmul.f32 %v4150, 0.7978846
    %v4175 = vmul.f32 %v4151, 0.7978846
    %v4176 = vmul.f32 %v4152, 0.7978846
    %v4177 = vtanh.pop %v4153
    %v4178 = vtanh.pop %v4154
    %v4179 = vtanh.pop %v4155
    %v4180 = vtanh.pop %v4156
    %v4181 = vtanh.pop %v4157
    %v4182 = vtanh.pop %v4158
    %v4183 = vtanh.pop %v4159
    %v4184 = vtanh.pop %v4160
    %v4185 = vtanh.pop %v4161
    %v4186 = vtanh.pop %v4162
    %v4187 = vtanh.pop %v4163
    %v4188 = vtanh.pop %v4164
    %v4189 = vtanh.pop %v4165
    %v4190 = vtanh.pop %v4166
    %v4191 = vtanh.pop %v4167
    %v4192 = vtanh.pop %v4168
    %v4193 = vtanh.pop %v4169
    %v4194 = vtanh.pop %v4170
    %v4195 = vtanh.pop %v4171
    %v4196 = vtanh.pop %v4172
    %v4197 = vtanh.pop %v4173
    %v4198 = vtanh.pop %v4174
    %v4199 = vtanh.pop %v4175
    %v4200 = vtanh.pop %v4176
    %v4201 = vadd.f32 %v4177, 1.0
    %v4202 = vadd.f32 %v4178, 1.0
    %v4203 = vadd.f32 %v4179, 1.0
    %v4204 = vadd.f32 %v4180, 1.0
    %v4205 = vadd.f32 %v4181, 1.0
    %v4206 = vadd.f32 %v4182, 1.0
    %v4207 = vadd.f32 %v4183, 1.0
    %v4208 = vadd.f32 %v4184, 1.0
    %v4209 = vadd.f32 %v4185, 1.0
    %v4210 = vadd.f32 %v4186, 1.0
    %v4211 = vadd.f32 %v4187, 1.0
    %v4212 = vadd.f32 %v4188, 1.0
    %v4213 = vadd.f32 %v4189, 1.0
    %v4214 = vadd.f32 %v4190, 1.0
    %v4215 = vadd.f32 %v4191, 1.0
    %v4216 = vadd.f32 %v4192, 1.0
    %v4217 = vadd.f32 %v4193, 1.0
    %v4218 = vadd.f32 %v4194, 1.0
    %v4219 = vadd.f32 %v4195, 1.0
    %v4220 = vadd.f32 %v4196, 1.0
    %v4221 = vadd.f32 %v4197, 1.0
    %v4222 = vadd.f32 %v4198, 1.0
    %v4223 = vadd.f32 %v4199, 1.0
    %v4224 = vadd.f32 %v4200, 1.0
    %v4225 = vmul.f32 %v4033, %v4201
    %v4226 = vmul.f32 %v4034, %v4202
    %v4227 = vmul.f32 %v4035, %v4203
    %v4228 = vmul.f32 %v4036, %v4204
    %v4229 = vmul.f32 %v4037, %v4205
    %v4230 = vmul.f32 %v4038, %v4206
    %v4231 = vmul.f32 %v4039, %v4207
    %v4232 = vmul.f32 %v4040, %v4208
    %v4233 = vmul.f32 %v4041, %v4209
    %v4234 = vmul.f32 %v4042, %v4210
    %v4235 = vmul.f32 %v4043, %v4211
    %v4236 = vmul.f32 %v4044, %v4212
    %v4237 = vmul.f32 %v4045, %v4213
    %v4238 = vmul.f32 %v4046, %v4214
    %v4239 = vmul.f32 %v4047, %v4215
    %v4240 = vmul.f32 %v4048, %v4216
    %v4241 = vmul.f32 %v4049, %v4217
    %v4242 = vmul.f32 %v4050, %v4218
    %v4243 = vmul.f32 %v4051, %v4219
    %v4244 = vmul.f32 %v4052, %v4220
    %v4245 = vmul.f32 %v4053, %v4221
    %v4246 = vmul.f32 %v4054, %v4222
    %v4247 = vmul.f32 %v4055, %v4223
    %v4248 = vmul.f32 %v4056, %v4224
    %v4249 = vpack.c.bf16 %v4229, %v4225
    %v4250 = vpack.c.bf16 %v4230, %v4226
    %v4251 = vpack.c.bf16 %v4231, %v4227
    %v4252 = vpack.c.bf16 %v4232, %v4228
    %v4253 = vpack.c.bf16 %v4237, %v4233
    %v4254 = vpack.c.bf16 %v4238, %v4234
    %v4255 = vpack.c.bf16 %v4239, %v4235
    %v4256 = vpack.c.bf16 %v4240, %v4236
    %v4257 = vpack.c.bf16 %v4245, %v4241
    %v4258 = vpack.c.bf16 %v4246, %v4242
    %v4259 = vpack.c.bf16 %v4247, %v4243
    %v4260 = vpack.c.bf16 %v4248, %v4244
    %s4261 = scalar_lea.vmem %s5, 256
    %v4262 = vld [vmem:[%s4261] sm:$0xf]
    %v4263 = vld [vmem:[%s4261 + $0x4] sm:$0xf]
    %v4264 = vld [vmem:[%s4261 + $0x8] sm:$0xf]
    %v4265 = vld [vmem:[%s4261 + $0xc] sm:$0xf]
    %v4266 = vld [vmem:[%s4261 + $0x10] sm:$0xf]
    %v4267 = vld [vmem:[%s4261 + $0x14] sm:$0xf]
    %v4268 = vld [vmem:[%s4261 + $0x18] sm:$0xf]
    %v4269 = vld [vmem:[%s4261 + $0x1c] sm:$0xf]
    %v4270 = vld [vmem:[%s4261 + $0x20] sm:$0xf]
    %v4271 = vld [vmem:[%s4261 + $0x24] sm:$0xf]
    %v4272 = vld [vmem:[%s4261 + $0x28] sm:$0xf]
    %v4273 = vld [vmem:[%s4261 + $0x2c] sm:$0xf]
    %v4274 = vld [vmem:[%s4261 + $0x30] sm:$0xf]
    %v4275 = vld [vmem:[%s4261 + $0x34] sm:$0xf]
    %v4276 = vld [vmem:[%s4261 + $0x38] sm:$0xf]
    %v4277 = vld [vmem:[%s4261 + $0x3c] sm:$0xf]
    %v4278 = vld [vmem:[%s4261 + $0x40] sm:$0xf]
    %v4279 = vld [vmem:[%s4261 + $0x44] sm:$0xf]
    %v4280 = vld [vmem:[%s4261 + $0x48] sm:$0xf]
    %v4281 = vld [vmem:[%s4261 + $0x4c] sm:$0xf]
    %v4282 = vld [vmem:[%s4261 + $0x50] sm:$0xf]
    %v4283 = vld [vmem:[%s4261 + $0x54] sm:$0xf]
    %v4284 = vld [vmem:[%s4261 + $0x58] sm:$0xf]
    %v4285 = vld [vmem:[%s4261 + $0x5c] sm:$0xf]
    %v4286 = vld [vmem:[%s4261 + $0x60] sm:$0xf]
    %v4287 = vld [vmem:[%s4261 + $0x64] sm:$0xf]
    %v4288 = vld [vmem:[%s4261 + $0x68] sm:$0xf]
    %v4289 = vld [vmem:[%s4261 + $0x6c] sm:$0xf]
    %v4290 = vld [vmem:[%s4261 + $0x70] sm:$0xf]
    %v4291 = vld [vmem:[%s4261 + $0x74] sm:$0xf]
    %v4292 = vld [vmem:[%s4261 + $0x78] sm:$0xf]
    %v4293 = vld [vmem:[%s4261 + $0x7c] sm:$0xf]
    %v4294 = vld [vmem:[%s4261 + $0x80] sm:$0xf]
    %v4295 = vld [vmem:[%s4261 + $0x84] sm:$0xf]
    %v4296 = vld [vmem:[%s4261 + $0x88] sm:$0xf]
    %v4297 = vld [vmem:[%s4261 + $0x8c] sm:$0xf]
    %v4298 = vld [vmem:[%s4261 + $0x90] sm:$0xf]
    %v4299 = vld [vmem:[%s4261 + $0x94] sm:$0xf]
    %v4300 = vld [vmem:[%s4261 + $0x98] sm:$0xf]
    %v4301 = vld [vmem:[%s4261 + $0x9c] sm:$0xf]
    %v4302 = vld [vmem:[%s4261 + $0xa0] sm:$0xf]
    %v4303 = vld [vmem:[%s4261 + $0xa4] sm:$0xf]
    %v4304 = vld [vmem:[%s4261 + $0xa8] sm:$0xf]
    %v4305 = vld [vmem:[%s4261 + $0xac] sm:$0xf]
    %v4306 = vld [vmem:[%s4261 + $0xb0] sm:$0xf]
    %v4307 = vld [vmem:[%s4261 + $0xb4] sm:$0xf]
    %v4308 = vld [vmem:[%s4261 + $0xb8] sm:$0xf]
    %v4309 = vld [vmem:[%s4261 + $0xbc] sm:$0xf]
    %v4310 = vld [vmem:[%s4261 + $0xc0] sm:$0xf]
    %v4311 = vld [vmem:[%s4261 + $0xc4] sm:$0xf]
    %v4312 = vld [vmem:[%s4261 + $0xc8] sm:$0xf]
    %v4313 = vld [vmem:[%s4261 + $0xcc] sm:$0xf]
    %v4314 = vld [vmem:[%s4261 + $0xd0] sm:$0xf]
    %v4315 = vld [vmem:[%s4261 + $0xd4] sm:$0xf]
    %v4316 = vld [vmem:[%s4261 + $0xd8] sm:$0xf]
    %v4317 = vld [vmem:[%s4261 + $0xdc] sm:$0xf]
    %v4318 = vld [vmem:[%s4261 + $0xe0] sm:$0xf]
    %v4319 = vld [vmem:[%s4261 + $0xe4] sm:$0xf]
    %v4320 = vld [vmem:[%s4261 + $0xe8] sm:$0xf]
    %v4321 = vld [vmem:[%s4261 + $0xec] sm:$0xf]
    %v4322 = vld [vmem:[%s4261 + $0xf0] sm:$0xf]
    %v4323 = vld [vmem:[%s4261 + $0xf4] sm:$0xf]
    %v4324 = vld [vmem:[%s4261 + $0xf8] sm:$0xf]
    %v4325 = vld [vmem:[%s4261 + $0xfc] sm:$0xf]
    %v4326 = vperm.slane %v2410, 4
    %v4391 = vunpack.c.l.b16 %v4262
    %v4392 = vunpack.c.l.b16 %v4263
    %v4393 = vunpack.c.l.b16 %v4264
    %v4394 = vunpack.c.l.b16 %v4265
    %v4395 = vunpack.c.l.b16 %v4266
    %v4396 = vunpack.c.l.b16 %v4267
    %v4397 = vunpack.c.l.b16 %v4268
    %v4398 = vunpack.c.l.b16 %v4269
    %v4399 = vunpack.c.l.b16 %v4270
    %v4400 = vunpack.c.l.b16 %v4271
    %v4401 = vunpack.c.l.b16 %v4272
    %v4402 = vunpack.c.l.b16 %v4273
    %v4403 = vunpack.c.l.b16 %v4274
    %v4404 = vunpack.c.l.b16 %v4275
    %v4405 = vunpack.c.l.b16 %v4276
    %v4406 = vunpack.c.l.b16 %v4277
    %v4407 = vunpack.c.l.b16 %v4278
    %v4408 = vunpack.c.l.b16 %v4279
    %v4409 = vunpack.c.l.b16 %v4280
    %v4410 = vunpack.c.l.b16 %v4281
    %v4411 = vunpack.c.l.b16 %v4282
    %v4412 = vunpack.c.l.b16 %v4283
    %v4413 = vunpack.c.l.b16 %v4284
    %v4414 = vunpack.c.l.b16 %v4285
    %v4415 = vunpack.c.l.b16 %v4286
    %v4416 = vunpack.c.l.b16 %v4287
    %v4417 = vunpack.c.l.b16 %v4288
    %v4418 = vunpack.c.l.b16 %v4289
    %v4419 = vunpack.c.l.b16 %v4290
    %v4420 = vunpack.c.l.b16 %v4291
    %v4421 = vunpack.c.l.b16 %v4292
    %v4422 = vunpack.c.l.b16 %v4293
    %v4423 = vunpack.c.l.b16 %v4294
    %v4424 = vunpack.c.l.b16 %v4295
    %v4425 = vunpack.c.l.b16 %v4296
    %v4426 = vunpack.c.l.b16 %v4297
    %v4427 = vunpack.c.l.b16 %v4298
    %v4428 = vunpack.c.l.b16 %v4299
    %v4429 = vunpack.c.l.b16 %v4300
    %v4430 = vunpack.c.l.b16 %v4301
    %v4431 = vunpack.c.l.b16 %v4302
    %v4432 = vunpack.c.l.b16 %v4303
    %v4433 = vunpack.c.l.b16 %v4304
    %v4434 = vunpack.c.l.b16 %v4305
    %v4435 = vunpack.c.l.b16 %v4306
    %v4436 = vunpack.c.l.b16 %v4307
    %v4437 = vunpack.c.l.b16 %v4308
    %v4438 = vunpack.c.l.b16 %v4309
    %v4439 = vunpack.c.l.b16 %v4310
    %v4440 = vunpack.c.l.b16 %v4311
    %v4441 = vunpack.c.l.b16 %v4312
    %v4442 = vunpack.c.l.b16 %v4313
    %v4443 = vunpack.c.l.b16 %v4314
    %v4444 = vunpack.c.l.b16 %v4315
    %v4445 = vunpack.c.l.b16 %v4316
    %v4446 = vunpack.c.l.b16 %v4317
    %v4447 = vunpack.c.l.b16 %v4318
    %v4448 = vunpack.c.l.b16 %v4319
    %v4449 = vunpack.c.l.b16 %v4320
    %v4450 = vunpack.c.l.b16 %v4321
    %v4451 = vunpack.c.l.b16 %v4322
    %v4452 = vunpack.c.l.b16 %v4323
    %v4453 = vunpack.c.l.b16 %v4324
    %v4454 = vunpack.c.l.b16 %v4325
    %v4455 = vpack.c.b16 %v4392, %v4391
    %v4456 = vpack.c.b16 %v4394, %v4393
    %v4457 = vpack.c.b16 %v4396, %v4395
    %v4458 = vpack.c.b16 %v4398, %v4397
    %v4459 = vpack.c.b16 %v4400, %v4399
    %v4460 = vpack.c.b16 %v4402, %v4401
    %v4461 = vpack.c.b16 %v4404, %v4403
    %v4462 = vpack.c.b16 %v4406, %v4405
    %v4463 = vpack.c.b16 %v4408, %v4407
    %v4464 = vpack.c.b16 %v4410, %v4409
    %v4465 = vpack.c.b16 %v4412, %v4411
    %v4466 = vpack.c.b16 %v4414, %v4413
    %v4467 = vpack.c.b16 %v4416, %v4415
    %v4468 = vpack.c.b16 %v4418, %v4417
    %v4469 = vpack.c.b16 %v4420, %v4419
    %v4470 = vpack.c.b16 %v4422, %v4421
    %v4471 = vpack.c.b16 %v4424, %v4423
    %v4472 = vpack.c.b16 %v4426, %v4425
    %v4473 = vpack.c.b16 %v4428, %v4427
    %v4474 = vpack.c.b16 %v4430, %v4429
    %v4475 = vpack.c.b16 %v4432, %v4431
    %v4476 = vpack.c.b16 %v4434, %v4433
    %v4477 = vpack.c.b16 %v4436, %v4435
    %v4478 = vpack.c.b16 %v4438, %v4437
    %v4479 = vpack.c.b16 %v4440, %v4439
    %v4480 = vpack.c.b16 %v4442, %v4441
    %v4481 = vpack.c.b16 %v4444, %v4443
    %v4482 = vpack.c.b16 %v4446, %v4445
    %v4483 = vpack.c.b16 %v4448, %v4447
    %v4484 = vpack.c.b16 %v4450, %v4449
    %v4485 = vpack.c.b16 %v4452, %v4451
    %v4486 = vpack.c.b16 %v4454, %v4453
    %4519 = vmatpush.bf16.msra.mxu0 %v4462
    %4520 = vmatpush.bf16.msra.mxu0 %v4461
    %4521 = vmatpush.bf16.msra.mxu0 %v4460
    %4522 = vmatpush.bf16.msra.mxu0 %v4459
    %4523 = vmatpush.bf16.msra.mxu0 %v4458
    %4524 = vmatpush.bf16.msra.mxu0 %v4457
    %4525 = vmatpush.bf16.msra.mxu0 %v4456
    %4526 = vmatpush.bf16.msra.mxu0 %v4455
    %4527 = vmatmul.bf16.gmra.mxu0 %v4249
    %v4528 = vpop.f32.mrf.mxu0
    %v4529 = vadd.f32 %v4326, %v4528
    %v4530 = vpop.f32.mrf.mxu0
    %v4531 = vadd.f32 %v4326, %v4530
    %4532 = vmatmul.bf16.gmra.mxu0 %v4253
    %v4533 = vpop.f32.mrf.mxu0
    %v4534 = vadd.f32 %v4326, %v4533
    %v4535 = vpop.f32.mrf.mxu0
    %v4536 = vadd.f32 %v4326, %v4535
    %4537 = vmatmul.bf16.gmra.mxu0 %v4257
    %v4538 = vpop.f32.mrf.mxu0
    %v4539 = vadd.f32 %v4326, %v4538
    %v4540 = vpop.f32.mrf.mxu0
    %v4541 = vadd.f32 %v4326, %v4540
    %4542 = vdwg.mxu0
    %4543 = vmatpush.bf16.msra.mxu0 %v4470
    %4544 = vmatpush.bf16.msra.mxu0 %v4469
    %4545 = vmatpush.bf16.msra.mxu0 %v4468
    %4546 = vmatpush.bf16.msra.mxu0 %v4467
    %4547 = vmatpush.bf16.msra.mxu0 %v4466
    %4548 = vmatpush.bf16.msra.mxu0 %v4465
    %4549 = vmatpush.bf16.msra.mxu0 %v4464
    %4550 = vmatpush.bf16.msra.mxu0 %v4463
    %4551 = vmatmul.bf16.gmra.mxu0 %v4250
    %v4552 = vpop.f32.mrf.mxu0
    %v4553 = vadd.f32 %v4529, %v4552
    %v4554 = vpop.f32.mrf.mxu0
    %v4555 = vadd.f32 %v4531, %v4554
    %4556 = vmatmul.bf16.gmra.mxu0 %v4254
    %v4557 = vpop.f32.mrf.mxu0
    %v4558 = vadd.f32 %v4534, %v4557
    %v4559 = vpop.f32.mrf.mxu0
    %v4560 = vadd.f32 %v4536, %v4559
    %4561 = vmatmul.bf16.gmra.mxu0 %v4258
    %v4562 = vpop.f32.mrf.mxu0
    %v4563 = vadd.f32 %v4539, %v4562
    %v4564 = vpop.f32.mrf.mxu0
    %v4565 = vadd.f32 %v4541, %v4564
    %4566 = vdwg.mxu0
    %4567 = vmatpush.bf16.msra.mxu0 %v4478
    %4568 = vmatpush.bf16.msra.mxu0 %v4477
    %4569 = vmatpush.bf16.msra.mxu0 %v4476
    %4570 = vmatpush.bf16.msra.mxu0 %v4475
    %4571 = vmatpush.bf16.msra.mxu0 %v4474
    %4572 = vmatpush.bf16.msra.mxu0 %v4473
    %4573 = vmatpush.bf16.msra.mxu0 %v4472
    %4574 = vmatpush.bf16.msra.mxu0 %v4471
    %4575 = vmatmul.bf16.gmra.mxu0 %v4251
    %v4576 = vpop.f32.mrf.mxu0
    %v4577 = vadd.f32 %v4553, %v4576
    %v4578 = vpop.f32.mrf.mxu0
    %v4579 = vadd.f32 %v4555, %v4578
    %4580 = vmatmul.bf16.gmra.mxu0 %v4255
    %v4581 = vpop.f32.mrf.mxu0
    %v4582 = vadd.f32 %v4558, %v4581
    %v4583 = vpop.f32.mrf.mxu0
    %v4584 = vadd.f32 %v4560, %v4583
    %4585 = vmatmul.bf16.gmra.mxu0 %v4259
    %v4586 = vpop.f32.mrf.mxu0
    %v4587 = vadd.f32 %v4563, %v4586
    %v4588 = vpop.f32.mrf.mxu0
    %v4589 = vadd.f32 %v4565, %v4588
    %4590 = vdwg.mxu0
    %4591 = vmatpush.bf16.msra.mxu0 %v4486
    %4592 = vmatpush.bf16.msra.mxu0 %v4485
    %4593 = vmatpush.bf16.msra.mxu0 %v4484
    %4594 = vmatpush.bf16.msra.mxu0 %v4483
    %4595 = vmatpush.bf16.msra.mxu0 %v4482
    %4596 = vmatpush.bf16.msra.mxu0 %v4481
    %4597 = vmatpush.bf16.msra.mxu0 %v4480
    %4598 = vmatpush.bf16.msra.mxu0 %v4479
    %4599 = vmatmul.bf16.gmra.mxu0 %v4252
    %v4600 = vpop.f32.mrf.mxu0
    %v4601 = vadd.f32 %v4577, %v4600
    %v4602 = vpop.f32.mrf.mxu0
    %v4603 = vadd.f32 %v4579, %v4602
    %4604 = vmatmul.bf16.gmra.mxu0 %v4256
    %v4605 = vpop.f32.mrf.mxu0
    %v4606 = vadd.f32 %v4582, %v4605
    %v4607 = vpop.f32.mrf.mxu0
    %v4608 = vadd.f32 %v4584, %v4607
    %4609 = vmatmul.bf16.gmra.mxu0 %v4260
    %v4610 = vpop.f32.mrf.mxu0
    %v4611 = vadd.f32 %v4587, %v4610
    %v4612 = vpop.f32.mrf.mxu0
    %v4613 = vadd.f32 %v4589, %v4612
    %4614 = vdwg.mxu0
    %v4615 = vadd.f32 %v3724, %v4601
    %v4616 = vadd.f32 %v3725, %v4603
    %v4617 = vadd.f32 %v3726, %v4606
    %v4618 = vadd.f32 %v3727, %v4608
    %v4619 = vadd.f32 %v3728, %v4611
    %v4620 = vadd.f32 %v3729, %v4613
    %4621 = vadd.xlane.f32.xlu0 %v4615
    %v4622 = vpop.xlane.xlu0 %4621
    %4623 = vadd.xlane.f32.xlu0 %v4616
    %v4624 = vpop.xlane.xlu0 %4623
    %4625 = vadd.xlane.f32.xlu0 %v4617
    %v4626 = vpop.xlane.xlu0 %4625
    %4627 = vadd.xlane.f32.xlu0 %v4618
    %v4628 = vpop.xlane.xlu0 %4627
    %4629 = vadd.xlane.f32.xlu0 %v4619
    %v4630 = vpop.xlane.xlu0 %4629
    %4631 = vadd.xlane.f32.xlu0 %v4620
    %v4632 = vpop.xlane.xlu0 %4631
    %v4633 = vmul.f32 %v4622, %v1264
    %v4634 = vmul.f32 %v4624, %v1264
    %v4635 = vmul.f32 %v4626, %v1264
    %v4636 = vmul.f32 %v4628, %v1264
    %v4637 = vmul.f32 %v4630, %v1264
    %v4638 = vmul.f32 %v4632, %v1264
    %v4639 = vsub.f32 %v4615, %v4633
    %v4640 = vsub.f32 %v4616, %v4634
    %v4641 = vsub.f32 %v4617, %v4635
    %v4642 = vsub.f32 %v4618, %v4636
    %v4643 = vsub.f32 %v4619, %v4637
    %v4644 = vsub.f32 %v4620, %v4638
    %v4645 = vmul.f32 %v4639, %v4639
    %v4646 = vmul.f32 %v4640, %v4640
    %v4647 = vmul.f32 %v4641, %v4641
    %v4648 = vmul.f32 %v4642, %v4642
    %v4649 = vmul.f32 %v4643, %v4643
    %v4650 = vmul.f32 %v4644, %v4644
    %4651 = vadd.xlane.f32.xlu0 %v4645
    %v4652 = vpop.xlane.xlu0 %4651
    %4653 = vadd.xlane.f32.xlu0 %v4646
    %v4654 = vpop.xlane.xlu0 %4653
    %4655 = vadd.xlane.f32.xlu0 %v4647
    %v4656 = vpop.xlane.xlu0 %4655
    %4657 = vadd.xlane.f32.xlu0 %v4648
    %v4658 = vpop.xlane.xlu0 %4657
    %4659 = vadd.xlane.f32.xlu0 %v4649
    %v4660 = vpop.xlane.xlu0 %4659
    %4661 = vadd.xlane.f32.xlu0 %v4650
    %v4662 = vpop.xlane.xlu0 %4661
    %v4663 = vmul.f32 %v4652, %v1264
    %v4664 = vmul.f32 %v4654, %v1264
    %v4665 = vmul.f32 %v4656, %v1264
    %v4666 = vmul.f32 %v4658, %v1264
    %v4667 = vmul.f32 %v4660, %v1264
    %v4668 = vmul.f32 %v4662, %v1264
    %v4669 = vadd.f32 %v4663, 1e-05
    %v4670 = vadd.f32 %v4664, 1e-05
    %v4671 = vadd.f32 %v4665, 1e-05
    %v4672 = vadd.f32 %v4666, 1e-05
    %v4673 = vadd.f32 %v4667, 1e-05
    %v4674 = vadd.f32 %v4668, 1e-05
    %v4675 = vrsqrt.pop %v4669
    %v4676 = vmul.f32 %v4675, %v4669
    %v4677 = vmul.f32 %v4676, %v4675
    %v4678 = vmul.f32 0.5, %v4677
    %v4679 = vsub.f32 1.5, %v4678
    %v4680 = vmul.f32 %v4675, %v4679
    %vm4681 = vweird.f32 %v4669
    %vm4682 = vweird.f32 %v4675
    %vm4683 = vmor %vm4681, %vm4682
    %v4684 = vsel %vm4683, %v4675, %v4680
    %v4685 = vrsqrt.pop %v4670
    %v4686 = vmul.f32 %v4685, %v4670
    %v4687 = vmul.f32 %v4686, %v4685
    %v4688 = vmul.f32 0.5, %v4687
    %v4689 = vsub.f32 1.5, %v4688
    %v4690 = vmul.f32 %v4685, %v4689
    %vm4691 = vweird.f32 %v4670
    %vm4692 = vweird.f32 %v4685
    %vm4693 = vmor %vm4691, %vm4692
    %v4694 = vsel %vm4693, %v4685, %v4690
    %v4695 = vrsqrt.pop %v4671
    %v4696 = vmul.f32 %v4695, %v4671
    %v4697 = vmul.f32 %v4696, %v4695
    %v4698 = vmul.f32 0.5, %v4697
    %v4699 = vsub.f32 1.5, %v4698
    %v4700 = vmul.f32 %v4695, %v4699
    %vm4701 = vweird.f32 %v4671
    %vm4702 = vweird.f32 %v4695
    %vm4703 = vmor %vm4701, %vm4702
    %v4704 = vsel %vm4703, %v4695, %v4700
    %v4705 = vrsqrt.pop %v4672
    %v4706 = vmul.f32 %v4705, %v4672
    %v4707 = vmul.f32 %v4706, %v4705
    %v4708 = vmul.f32 0.5, %v4707
    %v4709 = vsub.f32 1.5, %v4708
    %v4710 = vmul.f32 %v4705, %v4709
    %vm4711 = vweird.f32 %v4672
    %vm4712 = vweird.f32 %v4705
    %vm4713 = vmor %vm4711, %vm4712
    %v4714 = vsel %vm4713, %v4705, %v4710
    %v4715 = vrsqrt.pop %v4673
    %v4716 = vmul.f32 %v4715, %v4673
    %v4717 = vmul.f32 %v4716, %v4715
    %v4718 = vmul.f32 0.5, %v4717
    %v4719 = vsub.f32 1.5, %v4718
    %v4720 = vmul.f32 %v4715, %v4719
    %vm4721 = vweird.f32 %v4673
    %vm4722 = vweird.f32 %v4715
    %vm4723 = vmor %vm4721, %vm4722
    %v4724 = vsel %vm4723, %v4715, %v4720
    %v4725 = vrsqrt.pop %v4674
    %v4726 = vmul.f32 %v4725, %v4674
    %v4727 = vmul.f32 %v4726, %v4725
    %v4728 = vmul.f32 0.5, %v4727
    %v4729 = vsub.f32 1.5, %v4728
    %v4730 = vmul.f32 %v4725, %v4729
    %vm4731 = vweird.f32 %v4674
    %vm4732 = vweird.f32 %v4725
    %vm4733 = vmor %vm4731, %vm4732
    %v4734 = vsel %vm4733, %v4725, %v4730
    %v4735 = vmul.f32 %v4639, %v4684
    %v4736 = vmul.f32 %v4640, %v4694
    %v4737 = vmul.f32 %v4641, %v4704
    %v4738 = vmul.f32 %v4642, %v4714
    %v4739 = vmul.f32 %v4643, %v4724
    %v4740 = vmul.f32 %v4644, %v4734
    %v4741 = vperm.slane %v2410, 7
    %v4742 = vmul.f32 %v4735, %v4741
    %v4743 = vmul.f32 %v4736, %v4741
    %v4744 = vmul.f32 %v4737, %v4741
    %v4745 = vmul.f32 %v4738, %v4741
    %v4746 = vmul.f32 %v4739, %v4741
    %v4747 = vmul.f32 %v4740, %v4741
    %v4748 = vperm.slane %v2411, 0
    %v4749 = vadd.f32 %v4742, %v4748
    %v4750 = vadd.f32 %v4743, %v4748
    %v4751 = vadd.f32 %v4744, %v4748
    %v4752 = vadd.f32 %v4745, %v4748
    %v4753 = vadd.f32 %v4746, %v4748
    %v4754 = vadd.f32 %v4747, %v4748
    %4755 = vst [vmem:[%s8] sm:$0xff] %v4749
    %4756 = vst [vmem:[%s8 + $0x8] sm:$0xff] %v4750
    %4757 = vst [vmem:[%s8 + $0x10] sm:$0xff] %v4751
    %4758 = vst [vmem:[%s8 + $0x18] sm:$0xff] %v4752
    %4759 = vst [vmem:[%s8 + $0x20] sm:$0xff] %v4753
    %4760 = vst [vmem:[%s8 + $0x28] sm:$0xff] %v4754
    // Predicated region
    $region38: #{forward.1} parent=1 // pred_check
      _
    $region39: #{forward.1} parent=1 // pred_check_branch
      %4762 = sbr.rel (0) target = $region41
    $region40: #{forward.1} parent=1 // pred_region
      _
    $region41: #{forward.1} parent=1 // pred_fallthru
      _
    // Predicated region
    $region42: #{forward.1} parent=1 // pred_check
      _
    $region43: #{forward.1} parent=1 // pred_check_branch
      %4764 = sbr.rel (0) target = $region45
    $region44: #{forward.1} parent=1 // pred_region
      _
    $region45: #{forward.1} parent=1 // pred_fallthru
      _
    %4765 = vsyncpa [#allocation3], 1

</llo_original>
